<compile_context>
chip_gen: v5e
topology: v5e:2x2
jax: 0.10.0
libtpu: 0.0.40
codegen_flags: <defaults>
</compile_context>

<pallas_src>
import functools

import jax
import jax.numpy as jnp
from jax import lax
from jax.experimental import pallas as pl
from jax.experimental.pallas import tpu as pltpu


def _round_up(x, m):
    return (x + m - 1) // m * m


# ----------------------------------------------------------------------------
# Generic Linear(+activation) kernel — used for img_fc (both ctx tensors in one
# call) and for the hoisted LSTM input projection.  Row-tiled "parallel" grid.
# ----------------------------------------------------------------------------
def _linear_kernel(x_ref, w_ref, b_ref, o_ref, *, act):
    y = jnp.dot(x_ref[...], w_ref[...], preferred_element_type=jnp.float32)
    y = y + b_ref[...]
    if act == "tanh":
        y = jnp.tanh(y)
    o_ref[...] = y.astype(o_ref.dtype)


def linear_act(x, w, b, act=None, row_tile=256):
    """x: (..., Din); w: (Din, Dout); b: (Dout,)."""
    lead = x.shape[:-1]
    din = x.shape[-1]
    dout = w.shape[1]
    x2 = x.reshape(-1, din)
    n = x2.shape[0]
    rt = min(row_tile, _round_up(n, 8))          # row tile (multiple of 8 or full)
    n_pad = _round_up(n, rt)
    if n_pad != n:
        x2 = jnp.pad(x2, ((0, n_pad - n), (0, 0)))
    out = pl.pallas_call(
        functools.partial(_linear_kernel, act=act),
        out_shape=jax.ShapeDtypeStruct((n_pad, dout), jnp.float32),
        grid=(n_pad // rt,),
        in_specs=[
            pl.BlockSpec((rt, din), lambda i: (i, 0)),
            pl.BlockSpec((din, dout), lambda i: (0, 0)),
            pl.BlockSpec((1, dout), lambda i: (0, 0)),
        ],
        out_specs=pl.BlockSpec((rt, dout), lambda i: (i, 0)),
        compiler_params=pltpu.CompilerParams(
            dimension_semantics=("parallel",)),
    )(x2, w, b.reshape(1, dout))
    return out[:n].reshape(*lead, dout)


# ----------------------------------------------------------------------------
# Single-layer LSTM (batch_first).  grid = parallel batch tiles; the full time
# loop runs inside the kernel (unrolled fori_loop).  The x-side projection
# (xg = X @ W_ih + b, shape (T, B, 4H)) is precomputed outside the recurrence.
# ----------------------------------------------------------------------------
def _lstm_kernel(xg_ref, h0_ref, c0_ref, whh_ref, y_ref, h1_ref, c1_ref):
    T = xg_ref.shape[0]
    H = h0_ref.shape[-1]
    whh = whh_ref[...]                       # (H, 4H), gate order i,f,g,o

    def step(t, carry):
        h, c = carry
        # one fused, lane-dense (B,H) x (H,4H) matmul per step on the serial path
        g = xg_ref[t] + jnp.dot(h, whh, preferred_element_type=jnp.float32)
        i_g = jax.nn.sigmoid(g[:, 0 * H:1 * H])
        f_g = jax.nn.sigmoid(g[:, 1 * H:2 * H])
        g_g = jnp.tanh(g[:, 2 * H:3 * H])
        o_g = jax.nn.sigmoid(g[:, 3 * H:4 * H])
        c_new = f_g * c + i_g * g_g
        h_new = o_g * jnp.tanh(c_new)
        y_ref[t] = h_new
        return h_new, c_new

    h_fin, c_fin = lax.fori_loop(0, T, step, (h0_ref[...], c0_ref[...]),
                                 unroll=True)
    h1_ref[...] = h_fin
    c1_ref[...] = c_fin


def lstm_forward(embeds, h0, c0, w_ih, w_hh, b):
    """embeds: (B, T, E); h0/c0: (B, H); w_ih: (E, 4H); w_hh: (H, 4H); b: (4H,)."""
    B, T, E = embeds.shape
    H = h0.shape[-1]
    # Hoisted input projection for the whole sequence (no sequential dependency).
    xg = linear_act(embeds, w_ih, b)                    # (B, T, 4H)
    xg = jnp.swapaxes(xg, 0, 1)                         # (T, B, 4H) time-major

    # Batch tile: split across TensorCores (v7x) when B is a multiple of 8.
    bb = 8 if (B >= 8 and B % 8 == 0) else B
    y_tm, h1, c1 = pl.pallas_call(
        _lstm_kernel,
        out_shape=(jax.ShapeDtypeStruct((T, B, H), jnp.float32),
                   jax.ShapeDtypeStruct((B, H), jnp.float32),
                   jax.ShapeDtypeStruct((B, H), jnp.float32)),
        grid=(B // bb,),
        in_specs=[
            pl.BlockSpec((T, bb, 4 * H), lambda i: (0, i, 0)),
            pl.BlockSpec((bb, H), lambda i: (i, 0)),
            pl.BlockSpec((bb, H), lambda i: (i, 0)),
            pl.BlockSpec((H, 4 * H), lambda i: (0, 0)),
        ],
        out_specs=(pl.BlockSpec((T, bb, H), lambda i: (0, i, 0)),
                   pl.BlockSpec((bb, H), lambda i: (i, 0)),
                   pl.BlockSpec((bb, H), lambda i: (i, 0))),
        compiler_params=pltpu.CompilerParams(
            dimension_semantics=("parallel",)),
    )(xg, h0, c0, w_hh)
    return jnp.swapaxes(y_tm, 0, 1), h1, c1


# ----------------------------------------------------------------------------
# attention_cross: bidirectional attention + lang_int / vis_int (concat-then-dot)
# ----------------------------------------------------------------------------
def _softmax(x, axis):
    m = jnp.max(x, axis=axis, keepdims=True)
    e = jnp.exp(x - m)
    # NOTE: pl.reciprocal(..., approx=True) is a further v6e EUP win at slightly
    # relaxed tolerance; exact division kept here for tight numerics.
    return e / jnp.sum(e, axis=axis, keepdims=True)


def _attn_cross_kernel(src_ref, trg_ref, wl_ref, bl_ref, wv_ref, bv_ref,
                       inst_ref, vis_ref):
    s = src_ref[0]                  # (Ls, H)  insts_enc
    v = trg_ref[0]                  # (Lv, H)  visual

    sim = lax.dot_general(s, v, (((1,), (1,)), ((), ())),
                          preferred_element_type=jnp.float32)       # (Ls, Lv)
    sim_v = _softmax(sim, axis=-1)                                  # over Lv
    sim_l = _softmax(sim, axis=0)                                   # over Ls
    ltv = jnp.dot(sim_v, v, preferred_element_type=jnp.float32)     # (Ls, H)
    vtl = lax.dot_general(sim_l, s, (((0,), (0,)), ((), ())),
                          preferred_element_type=jnp.float32)       # (Lv, H)

    # Single K=3H matmuls (concat along lanes), instead of 3 short-K matmuls.
    inst = jnp.dot(jnp.concatenate([s, ltv, s * ltv], axis=-1), wl_ref[...],
                   preferred_element_type=jnp.float32) + bl_ref[...]
    vis = jnp.dot(jnp.concatenate([v, vtl, v * vtl], axis=-1), wv_ref[...],
                  preferred_element_type=jnp.float32) + bv_ref[...]

    inst_ref[0] = inst
    vis_ref[0] = vis


def attention_cross(src, trg, params):
    B, LS, H = src.shape
    LV = trg.shape[1]
    ce = pl.CostEstimate(
        flops=B * (6 * LS * LV * H + 6 * LS * H * H + 6 * LV * H * H),
        transcendentals=2 * B * LS * LV,
        bytes_accessed=4 * (2 * B * (LS + LV) * H + 2 * (3 * H * H + H)))
    # TODO(synk): for realistic LS/LV/H sizes, tile over LS/LV and set
    # vmem_limit_bytes for v7x's 64 MiB VMEM; whole-sequence blocks are fine here.
    return pl.pallas_call(
        _attn_cross_kernel,
        out_shape=(jax.ShapeDtypeStruct((B, LS, H), jnp.float32),
                   jax.ShapeDtypeStruct((B, LV, H), jnp.float32)),
        grid=(B,),
        in_specs=[
            pl.BlockSpec((1, LS, H), lambda b: (b, 0, 0)),
            pl.BlockSpec((1, LV, H), lambda b: (b, 0, 0)),
            pl.BlockSpec((3 * H, H), lambda b: (0, 0)),
            pl.BlockSpec((1, H), lambda b: (0, 0)),
            pl.BlockSpec((3 * H, H), lambda b: (0, 0)),
            pl.BlockSpec((1, H), lambda b: (0, 0)),
        ],
        out_specs=(pl.BlockSpec((1, LS, H), lambda b: (b, 0, 0)),
                   pl.BlockSpec((1, LV, H), lambda b: (b, 0, 0))),
        compiler_params=pltpu.CompilerParams(
            dimension_semantics=("parallel",)),
        cost_estimate=ce,
    )(src, trg, params["lang_w"], params["lang_b"].reshape(1, H),
      params["vis_w"], params["vis_b"].reshape(1, H))


# ----------------------------------------------------------------------------
# Fused head: attention(x, src_att) + attention(x, trg_att) + projection_x +
# projection, all in one kernel (attention outputs never leave VMEM).
# ----------------------------------------------------------------------------
def _attn_project_kernel(x_ref, sa_ref, ta_ref, wpx_ref, bpx_ref,
                         wp_ref, bp_ref, o_ref):
    x = x_ref[0]                    # (T, H)
    s = sa_ref[0]                   # (LS, H)
    v = ta_ref[0]                   # (LV, H)

    def attend(enc):
        sim = lax.dot_general(x, enc, (((1,), (1,)), ((), ())),
                              preferred_element_type=jnp.float32)   # (T, L)
        p = _softmax(sim, axis=-1)
        return jnp.dot(p, enc, preferred_element_type=jnp.float32)  # (T, H)

    a = attend(s)                   # lnag_src_att
    b = attend(v)                   # lnag_trg_att

    # torch.cat order: (a, b, x, x*a, x*b) -> one K=5H matmul.
    feats = jnp.concatenate([a, b, x, x * a, x * b], axis=-1)       # (T, 5H)
    h = jnp.dot(feats, wpx_ref[...],
                preferred_element_type=jnp.float32) + bpx_ref[...]
    logit = jnp.dot(h, wp_ref[...],
                    preferred_element_type=jnp.float32) + bp_ref[...]
    o_ref[0] = logit


def attn_project(x, src_att, trg_att, params):
    B, T, H = x.shape
    LS = src_att.shape[1]
    LV = trg_att.shape[1]
    NT = params["proj_w"].shape[1]
    ce = pl.CostEstimate(
        flops=B * (4 * T * (LS + LV) * H + 10 * T * H * H + 2 * T * H * NT),
        transcendentals=B * T * (LS + LV),
        bytes_accessed=4 * (B * T * H + B * (LS + LV) * H + 5 * H * H + H
                            + H * NT + NT + B * T * NT))
    return pl.pallas_call(
        _attn_project_kernel,
        out_shape=jax.ShapeDtypeStruct((B, T, NT), jnp.float32),
        grid=(B,),
        in_specs=[
            pl.BlockSpec((1, T, H), lambda b: (b, 0, 0)),
            pl.BlockSpec((1, LS, H), lambda b: (b, 0, 0)),
            pl.BlockSpec((1, LV, H), lambda b: (b, 0, 0)),
            pl.BlockSpec((5 * H, H), lambda b: (0, 0)),
            pl.BlockSpec((1, H), lambda b: (0, 0)),
            pl.BlockSpec((H, NT), lambda b: (0, 0)),
            pl.BlockSpec((1, NT), lambda b: (0, 0)),
        ],
        out_specs=pl.BlockSpec((1, T, NT), lambda b: (b, 0, 0)),
        compiler_params=pltpu.CompilerParams(
            dimension_semantics=("parallel",)),
        cost_estimate=ce,
    )(x, src_att, trg_att, params["px_w"], params["px_b"].reshape(1, H),
      params["proj_w"], params["proj_b"].reshape(1, NT))


# ----------------------------------------------------------------------------
# Decoder.forward
# ----------------------------------------------------------------------------
def decoder_forward(params, words, h0, c0, ctx):
    src_ctx, trg_ctx = ctx
    LS = src_ctx.shape[1]

    # img_fc (tanh) applied to both ctx tensors in ONE kernel call.
    both = jnp.concatenate([src_ctx, trg_ctx], axis=1)           # (B, LS+LV, CTX)
    both = linear_act(both, params["img_fc_w"], params["img_fc_b"], act="tanh")
    src, trg = both[:, :LS], both[:, LS:]

    embeds = jnp.take(params["emb"], words, axis=0)              # (B, T, E) glue
    x, h1, c1 = lstm_forward(embeds, h0[0], c0[0],
                             params["w_ih"], params["w_hh"], params["b_lstm"])

    src_att, trg_att = attention_cross(src, trg, params)
    # self.drop(...) is identity at inference time.
    logit = attn_project(x, src_att, trg_att, params)
    return logit, h1[None], c1[None]


# ----------------------------------------------------------------------------
# Pure-JAX reference (mirrors the PyTorch forward) for verification
# ----------------------------------------------------------------------------
def ref_forward(params, words, h0, c0, ctx):
    def lin(x, w, b, act=None):
        y = x @ w + b
        return jnp.tanh(y) if act == "tanh" else y

    src = lin(ctx[0], params["img_fc_w"], params["img_fc_b"], "tanh")
    trg = lin(ctx[1], params["img_fc_w"], params["img_fc_b"], "tanh")
    emb = params["emb"][words]
    H = h0.shape[-1]

    def step(carry, x_t):
        h, c = carry
        g = x_t @ params["w_ih"] + h @ params["w_hh"] + params["b_lstm"]
        i = jax.nn.sigmoid(g[:, 0 * H:1 * H])
        f = jax.nn.sigmoid(g[:, 1 * H:2 * H])
        gg = jnp.tanh(g[:, 2 * H:3 * H])
        o = jax.nn.sigmoid(g[:, 3 * H:4 * H])
        c = f * c + i * gg
        h = o * jnp.tanh(c)
        return (h, c), h

    (h1, c1), ys = lax.scan(step, (h0[0], c0[0]), jnp.swapaxes(emb, 0, 1))
    x = jnp.swapaxes(ys, 0, 1)

    sim = jnp.einsum("bld,bvd->blv", src, trg)
    sim_v = jax.nn.softmax(sim, axis=-1)
    sim_l = jax.nn.softmax(sim, axis=1)
    ltv = jnp.einsum("blv,bvd->bld", sim_v, trg)
    vtl = jnp.einsum("blv,bld->bvd", sim_l, src)
    src_att = lin(jnp.concatenate([src, ltv, src * ltv], -1),
                  params["lang_w"], params["lang_b"])
    trg_att = lin(jnp.concatenate([trg, vtl, trg * vtl], -1),
                  params["vis_w"], params["vis_b"])

    def attn(h_att, enc):
        s = jnp.einsum("btd,bld->btl", h_att, enc)
        p = jax.nn.softmax(s, axis=-1)
        return jnp.einsum("btl,bld->btd", p, enc)

    a = attn(x, src_att)
    b = attn(x, trg_att)
    xcat = jnp.concatenate([a, b, x, x * a, x * b], -1)
    hh = lin(xcat, params["px_w"], params["px_b"])
    logit = lin(hh, params["proj_w"], params["proj_b"])
    return logit, h1[None], c1[None]


# ----------------------------------------------------------------------------
if __name__ == "__main__":
    # Small but lane-friendly shapes: hidden=128 (one lane tile), ntoken=256,
    # so every kernel output is lane-dense and all lane concats are aligned.
    B, T = 2, 8                  # batch, word-sequence length
    NTOKEN, EMB, HID, CTX = 256, 64, 128, 64
    LS, LV = 16, 24              # src / trg context lengths

    key = jax.random.PRNGKey(0)
    ks = jax.random.split(key, 20)

    def u(k, shape, fan_in):
        bound = 1.0 / (fan_in ** 0.5)
        return jax.random.uniform(k, shape, jnp.float32, -bound, bound)

    params = {
        "img_fc_w": u(ks[0], (CTX, HID), CTX),
        "img_fc_b": u(ks[1], (HID,), CTX),
        "emb":      jax.random.normal(ks[2], (NTOKEN, EMB), jnp.float32),
        # Fused LSTM weights: (E, 4H)/(H, 4H), gate order i,f,g,o along 4H;
        # bias = b_ih + b_hh (pre-summed when importing from PyTorch).
        "w_ih":     u(ks[3], (EMB, 4 * HID), HID),
        "w_hh":     u(ks[4], (HID, 4 * HID), HID),
        "b_lstm":   u(ks[5], (4 * HID,), HID),
        "lang_w":   u(ks[6], (3 * HID, HID), 3 * HID),
        "lang_b":   u(ks[7], (HID,), 3 * HID),
        "vis_w":    u(ks[8], (3 * HID, HID), 3 * HID),
        "vis_b":    u(ks[9], (HID,), 3 * HID),
        "px_w":     u(ks[10], (5 * HID, HID), 5 * HID),
        "px_b":     u(ks[11], (HID,), 5 * HID),
        "proj_w":   u(ks[12], (HID, NTOKEN), HID),
        "proj_b":   u(ks[13], (NTOKEN,), HID),
    }

    words = jax.random.randint(ks[14], (B, T), 0, NTOKEN, jnp.int32)
    h0 = jax.random.normal(ks[15], (1, B, HID), jnp.float32)
    c0 = jax.random.normal(ks[16], (1, B, HID), jnp.float32)
    ctx = (jax.random.normal(ks[17], (B, LS, CTX), jnp.float32),
           jax.random.normal(ks[18], (B, LV, CTX), jnp.float32))

    fwd = jax.jit(decoder_forward)
    logit, h1, c1 = fwd(params, words, h0, c0, ctx)
    jax.block_until_ready((logit, h1, c1))

    ref_logit, ref_h1, ref_c1 = ref_forward(params, words, h0, c0, ctx)
    assert logit.shape == (B, T, NTOKEN)
    assert h1.shape == (1, B, HID) and c1.shape == (1, B, HID)
    assert jnp.allclose(logit, ref_logit, atol=2e-3, rtol=2e-3)
    assert jnp.allclose(h1, ref_h1, atol=2e-3, rtol=2e-3)
    assert jnp.allclose(c1, ref_c1, atol=2e-3, rtol=2e-3)

    print("KERNEL_OK")
</pallas_src>

<mosaic_0001>
module attributes {stable_mosaic.version = 11 : i64} {
  func.func @_linear_kernel(%arg0: i32, %arg1: memref<16x64xf32, #tpu.memory_space<vmem>>, %arg2: memref<64x512xf32, #tpu.memory_space<vmem>>, %arg3: memref<1x512xf32, #tpu.memory_space<vmem>>, %arg4: memref<16x512xf32, #tpu.memory_space<vmem>>) attributes {dimension_semantics = [#tpu.dimension_semantics<parallel>], iteration_bounds = array<i64: 1>, scalar_prefetch = 0 : i64, scratch_operands = 0 : i64, tpu.core_type = #tpu.core_type<tc>, window_params = [{transform_indices = @transform_0, window_bounds = array<i64: 16, 64>}, {pipeline_mode = #tpu.pipeline_mode<synchronous>, transform_indices = @transform_1, window_bounds = array<i64: 64, 512>}, {pipeline_mode = #tpu.pipeline_mode<synchronous>, transform_indices = @transform_2, window_bounds = array<i64: 1, 512>}, {transform_indices = @transform_3, window_bounds = array<i64: 16, 512>}]} {
    %c0 = arith.constant 0 : index
    %c0_0 = arith.constant 0 : index
    %0 = vector.load %arg1[%c0, %c0_0] : memref<16x64xf32, #tpu.memory_space<vmem>>, vector<16x64xf32>
    %c0_1 = arith.constant 0 : index
    %c0_2 = arith.constant 0 : index
    %1 = vector.load %arg2[%c0_1, %c0_2] : memref<64x512xf32, #tpu.memory_space<vmem>>, vector<64x512xf32>
    %cst = arith.constant dense<0.000000e+00> : vector<16x512xf32>
    %2 = tpu.matmul %0, %1, %cst {dimension_numbers = #tpu.dot_dimension_numbers<[1], [0], [0], [1], [0, 0, 1, 1], [], []>} : vector<16x64xf32>, vector<64x512xf32>, vector<16x512xf32> -> vector<16x512xf32>
    %c0_3 = arith.constant 0 : index
    %c0_4 = arith.constant 0 : index
    %3 = vector.load %arg3[%c0_3, %c0_4] : memref<1x512xf32, #tpu.memory_space<vmem>>, vector<1x512xf32>
    %4 = vector.broadcast %3 : vector<1x512xf32> to vector<16x512xf32>
    %5 = arith.addf %2, %4 : vector<16x512xf32>
    %c0_5 = arith.constant 0 : index
    %c0_6 = arith.constant 0 : index
    %6 = vector.load %arg4[%c0_5, %c0_6] : memref<16x512xf32, #tpu.memory_space<vmem>>, vector<16x512xf32>
    tpu.vector_store %arg4[%c0_5, %c0_6], %5 {strides = array<i32>} : memref<16x512xf32, #tpu.memory_space<vmem>>, vector<16x512xf32>,
    return
  }
  func.func @transform_0(%arg0: i32) -> (i32, i32) {
    %c0_i32 = arith.constant 0 : i32
    %c0_i32_0 = arith.constant 0 : i32
    return %arg0, %c0_i32 : i32, i32
  }
  func.func @transform_1(%arg0: i32) -> (i32, i32) {
    %c0_i32 = arith.constant 0 : i32
    %c0_i32_0 = arith.constant 0 : i32
    %c0_i32_1 = arith.constant 0 : i32
    return %c0_i32, %c0_i32_0 : i32, i32
  }
  func.func @transform_2(%arg0: i32) -> (i32, i32) {
    %c0_i32 = arith.constant 0 : i32
    %c0_i32_0 = arith.constant 0 : i32
    %c0_i32_1 = arith.constant 0 : i32
    return %c0_i32, %c0_i32_0 : i32, i32
  }
  func.func @transform_3(%arg0: i32) -> (i32, i32) {
    %c0_i32 = arith.constant 0 : i32
    %c0_i32_0 = arith.constant 0 : i32
    return %arg0, %c0_i32 : i32, i32
  }
}

module attributes {stable_mosaic.version = 11 : i64} {
  func.func @_linear_kernel(%arg0: i32, %arg1: memref<80x64xf32, #tpu.memory_space<vmem>>, %arg2: memref<64x128xf32, #tpu.memory_space<vmem>>, %arg3: memref<1x128xf32, #tpu.memory_space<vmem>>, %arg4: memref<80x128xf32, #tpu.memory_space<vmem>>) attributes {dimension_semantics = [#tpu.dimension_semantics<parallel>], iteration_bounds = array<i64: 1>, scalar_prefetch = 0 : i64, scratch_operands = 0 : i64, tpu.core_type = #tpu.core_type<tc>, window_params = [{transform_indices = @transform_0, window_bounds = array<i64: 80, 64>}, {pipeline_mode = #tpu.pipeline_mode<synchronous>, transform_indices = @transform_1, window_bounds = array<i64: 64, 128>}, {pipeline_mode = #tpu.pipeline_mode<synchronous>, transform_indices = @transform_2, window_bounds = array<i64: 1, 128>}, {transform_indices = @transform_3, window_bounds = array<i64: 80, 128>}]} {
    %c0 = arith.constant 0 : index
    %c0_0 = arith.constant 0 : index
    %0 = vector.load %arg1[%c0, %c0_0] : memref<80x64xf32, #tpu.memory_space<vmem>>, vector<80x64xf32>
    %c0_1 = arith.constant 0 : index
    %c0_2 = arith.constant 0 : index
    %1 = vector.load %arg2[%c0_1, %c0_2] : memref<64x128xf32, #tpu.memory_space<vmem>>, vector<64x128xf32>
    %cst = arith.constant dense<0.000000e+00> : vector<80x128xf32>
    %2 = tpu.matmul %0, %1, %cst {dimension_numbers = #tpu.dot_dimension_numbers<[1], [0], [0], [1], [0, 0, 1, 1], [], []>} : vector<80x64xf32>, vector<64x128xf32>, vector<80x128xf32> -> vector<80x128xf32>
    %c0_3 = arith.constant 0 : index
    %c0_4 = arith.constant 0 : index
    %3 = vector.load %arg3[%c0_3, %c0_4] : memref<1x128xf32, #tpu.memory_space<vmem>>, vector<1x128xf32>
    %4 = vector.broadcast %3 : vector<1x128xf32> to vector<80x128xf32>
    %5 = arith.addf %2, %4 : vector<80x128xf32>
    %6 = math.tanh %5 : vector<80x128xf32>
    %c0_5 = arith.constant 0 : index
    %c0_6 = arith.constant 0 : index
    %7 = vector.load %arg4[%c0_5, %c0_6] : memref<80x128xf32, #tpu.memory_space<vmem>>, vector<80x128xf32>
    tpu.vector_store %arg4[%c0_5, %c0_6], %6 {strides = array<i32>} : memref<80x128xf32, #tpu.memory_space<vmem>>, vector<80x128xf32>,
    return
  }
  func.func @transform_0(%arg0: i32) -> (i32, i32) {
    %c0_i32 = arith.constant 0 : i32
    %c0_i32_0 = arith.constant 0 : i32
    return %arg0, %c0_i32 : i32, i32
  }
  func.func @transform_1(%arg0: i32) -> (i32, i32) {
    %c0_i32 = arith.constant 0 : i32
    %c0_i32_0 = arith.constant 0 : i32
    %c0_i32_1 = arith.constant 0 : i32
    return %c0_i32, %c0_i32_0 : i32, i32
  }
  func.func @transform_2(%arg0: i32) -> (i32, i32) {
    %c0_i32 = arith.constant 0 : i32
    %c0_i32_0 = arith.constant 0 : i32
    %c0_i32_1 = arith.constant 0 : i32
    return %c0_i32, %c0_i32_0 : i32, i32
  }
  func.func @transform_3(%arg0: i32) -> (i32, i32) {
    %c0_i32 = arith.constant 0 : i32
    %c0_i32_0 = arith.constant 0 : i32
    return %arg0, %c0_i32 : i32, i32
  }
}

module attributes {stable_mosaic.version = 11 : i64} {
  func.func @_lstm_kernel(%arg0: i32, %arg1: memref<8x2x512xf32, #tpu.memory_space<vmem>>, %arg2: memref<2x128xf32, #tpu.memory_space<vmem>>, %arg3: memref<2x128xf32, #tpu.memory_space<vmem>>, %arg4: memref<128x512xf32, #tpu.memory_space<vmem>>, %arg5: memref<8x2x128xf32, #tpu.memory_space<vmem>>, %arg6: memref<2x128xf32, #tpu.memory_space<vmem>>, %arg7: memref<2x128xf32, #tpu.memory_space<vmem>>) attributes {dimension_semantics = [#tpu.dimension_semantics<parallel>], iteration_bounds = array<i64: 1>, scalar_prefetch = 0 : i64, scratch_operands = 0 : i64, tpu.core_type = #tpu.core_type<tc>, window_params = [{transform_indices = @transform_0, window_bounds = array<i64: 8, 2, 512>}, {transform_indices = @transform_1, window_bounds = array<i64: 2, 128>}, {transform_indices = @transform_2, window_bounds = array<i64: 2, 128>}, {pipeline_mode = #tpu.pipeline_mode<synchronous>, transform_indices = @transform_3, window_bounds = array<i64: 128, 512>}, {transform_indices = @transform_4, window_bounds = array<i64: 8, 2, 128>}, {transform_indices = @transform_5, window_bounds = array<i64: 2, 128>}, {transform_indices = @transform_6, window_bounds = array<i64: 2, 128>}]} {
    %c0 = arith.constant 0 : index
    %c0_0 = arith.constant 0 : index
    %0 = vector.load %arg4[%c0, %c0_0] : memref<128x512xf32, #tpu.memory_space<vmem>>, vector<128x512xf32>
    %c0_1 = arith.constant 0 : index
    %c0_2 = arith.constant 0 : index
    %1 = vector.load %arg2[%c0_1, %c0_2] : memref<2x128xf32, #tpu.memory_space<vmem>>, vector<2x128xf32>
    %c0_3 = arith.constant 0 : index
    %c0_4 = arith.constant 0 : index
    %2 = vector.load %arg3[%c0_3, %c0_4] : memref<2x128xf32, #tpu.memory_space<vmem>>, vector<2x128xf32>
    %c0_i32 = arith.constant 0 : i32
    %3 = arith.index_cast %c0_i32 : i32 to index
    %c0_5 = arith.constant 0 : index
    %c0_6 = arith.constant 0 : index
    %4 = vector.load %arg1[%3, %c0_5, %c0_6] : memref<8x2x512xf32, #tpu.memory_space<vmem>>, vector<1x2x512xf32>
    %5 = vector.shape_cast %4 : vector<1x2x512xf32> to vector<2x512xf32>
    %cst = arith.constant dense<0.000000e+00> : vector<2x512xf32>
    %6 = tpu.matmul %1, %0, %cst {dimension_numbers = #tpu.dot_dimension_numbers<[1], [0], [0], [1], [0, 0, 1, 1], [], []>} : vector<2x128xf32>, vector<128x512xf32>, vector<2x512xf32> -> vector<2x512xf32>
    %7 = arith.addf %5, %6 : vector<2x512xf32>
    %8 = vector.extract_strided_slice %7 {offsets = [0, 0], sizes = [2, 128], strides = [1, 1]} : vector<2x512xf32> to vector<2x128xf32>
    %9 = arith.negf %8 : vector<2x128xf32>
    %10 = math.exp %9 : vector<2x128xf32>
    %cst_7 = arith.constant 1.000000e+00 : f32
    %11 = vector.broadcast %cst_7 : f32 to vector<2x128xf32>
    %12 = arith.addf %11, %10 : vector<2x128xf32>
    %13 = arith.divf %11, %12 : vector<2x128xf32>
    %14 = vector.extract_strided_slice %7 {offsets = [0, 128], sizes = [2, 128], strides = [1, 1]} : vector<2x512xf32> to vector<2x128xf32>
    %15 = arith.negf %14 : vector<2x128xf32>
    %16 = math.exp %15 : vector<2x128xf32>
    %cst_8 = arith.constant 1.000000e+00 : f32
    %17 = vector.broadcast %cst_8 : f32 to vector<2x128xf32>
    %18 = arith.addf %17, %16 : vector<2x128xf32>
    %19 = arith.divf %17, %18 : vector<2x128xf32>
    %20 = vector.extract_strided_slice %7 {offsets = [0, 256], sizes = [2, 128], strides = [1, 1]} : vector<2x512xf32> to vector<2x128xf32>
    %21 = math.tanh %20 : vector<2x128xf32>
    %22 = vector.extract_strided_slice %7 {offsets = [0, 384], sizes = [2, 128], strides = [1, 1]} : vector<2x512xf32> to vector<2x128xf32>
    %23 = arith.negf %22 : vector<2x128xf32>
    %24 = math.exp %23 : vector<2x128xf32>
    %cst_9 = arith.constant 1.000000e+00 : f32
    %25 = vector.broadcast %cst_9 : f32 to vector<2x128xf32>
    %26 = arith.addf %25, %24 : vector<2x128xf32>
    %27 = arith.divf %25, %26 : vector<2x128xf32>
    %28 = arith.mulf %19, %2 : vector<2x128xf32>
    %29 = arith.mulf %13, %21 : vector<2x128xf32>
    %30 = arith.addf %28, %29 : vector<2x128xf32>
    %31 = math.tanh %30 : vector<2x128xf32>
    %32 = arith.mulf %27, %31 : vector<2x128xf32>
    %33 = arith.index_cast %c0_i32 : i32 to index
    %c0_10 = arith.constant 0 : index
    %c0_11 = arith.constant 0 : index
    %34 = vector.load %arg5[%33, %c0_10, %c0_11] : memref<8x2x128xf32, #tpu.memory_space<vmem>>, vector<1x2x128xf32>
    %35 = vector.shape_cast %34 : vector<1x2x128xf32> to vector<2x128xf32>
    %36 = vector.shape_cast %32 : vector<2x128xf32> to vector<1x2x128xf32>
    tpu.vector_store %arg5[%33, %c0_10, %c0_11], %36 {strides = array<i32>} : memref<8x2x128xf32, #tpu.memory_space<vmem>>, vector<1x2x128xf32>,
    %c1_i32 = arith.constant 1 : i32
    %37 = arith.index_cast %c1_i32 : i32 to index
    %c0_12 = arith.constant 0 : index
    %c0_13 = arith.constant 0 : index
    %38 = vector.load %arg1[%37, %c0_12, %c0_13] : memref<8x2x512xf32, #tpu.memory_space<vmem>>, vector<1x2x512xf32>
    %39 = vector.shape_cast %38 : vector<1x2x512xf32> to vector<2x512xf32>
    %cst_14 = arith.constant dense<0.000000e+00> : vector<2x512xf32>
    %40 = tpu.matmul %32, %0, %cst_14 {dimension_numbers = #tpu.dot_dimension_numbers<[1], [0], [0], [1], [0, 0, 1, 1], [], []>} : vector<2x128xf32>, vector<128x512xf32>, vector<2x512xf32> -> vector<2x512xf32>
    %41 = arith.addf %39, %40 : vector<2x512xf32>
    %42 = vector.extract_strided_slice %41 {offsets = [0, 0], sizes = [2, 128], strides = [1, 1]} : vector<2x512xf32> to vector<2x128xf32>
    %43 = arith.negf %42 : vector<2x128xf32>
    %44 = math.exp %43 : vector<2x128xf32>
    %cst_15 = arith.constant 1.000000e+00 : f32
    %45 = vector.broadcast %cst_15 : f32 to vector<2x128xf32>
    %46 = arith.addf %45, %44 : vector<2x128xf32>
    %47 = arith.divf %45, %46 : vector<2x128xf32>
    %48 = vector.extract_strided_slice %41 {offsets = [0, 128], sizes = [2, 128], strides = [1, 1]} : vector<2x512xf32> to vector<2x128xf32>
    %49 = arith.negf %48 : vector<2x128xf32>
    %50 = math.exp %49 : vector<2x128xf32>
    %cst_16 = arith.constant 1.000000e+00 : f32
    %51 = vector.broadcast %cst_16 : f32 to vector<2x128xf32>
    %52 = arith.addf %51, %50 : vector<2x128xf32>
    %53 = arith.divf %51, %52 : vector<2x128xf32>
    %54 = vector.extract_strided_slice %41 {offsets = [0, 256], sizes = [2, 128], strides = [1, 1]} : vector<2x512xf32> to vector<2x128xf32>
    %55 = math.tanh %54 : vector<2x128xf32>
    %56 = vector.extract_strided_slice %41 {offsets = [0, 384], sizes = [2, 128], strides = [1, 1]} : vector<2x512xf32> to vector<2x128xf32>
    %57 = arith.negf %56 : vector<2x128xf32>
    %58 = math.exp %57 : vector<2x128xf32>
    %cst_17 = arith.constant 1.000000e+00 : f32
    %59 = vector.broadcast %cst_17 : f32 to vector<2x128xf32>
    %60 = arith.addf %59, %58 : vector<2x128xf32>
    %61 = arith.divf %59, %60 : vector<2x128xf32>
    %62 = arith.mulf %53, %30 : vector<2x128xf32>
    %63 = arith.mulf %47, %55 : vector<2x128xf32>
    %64 = arith.addf %62, %63 : vector<2x128xf32>
    %65 = math.tanh %64 : vector<2x128xf32>
    %66 = arith.mulf %61, %65 : vector<2x128xf32>
    %67 = arith.index_cast %c1_i32 : i32 to index
    %c0_18 = arith.constant 0 : index
    %c0_19 = arith.constant 0 : index
    %68 = vector.load %arg5[%67, %c0_18, %c0_19] : memref<8x2x128xf32, #tpu.memory_space<vmem>>, vector<1x2x128xf32>
    %69 = vector.shape_cast %68 : vector<1x2x128xf32> to vector<2x128xf32>
    %70 = vector.shape_cast %66 : vector<2x128xf32> to vector<1x2x128xf32>
    tpu.vector_store %arg5[%67, %c0_18, %c0_19], %70 {strides = array<i32>} : memref<8x2x128xf32, #tpu.memory_space<vmem>>, vector<1x2x128xf32>,
    %c2_i32 = arith.constant 2 : i32
    %71 = arith.index_cast %c2_i32 : i32 to index
    %c0_20 = arith.constant 0 : index
    %c0_21 = arith.constant 0 : index
    %72 = vector.load %arg1[%71, %c0_20, %c0_21] : memref<8x2x512xf32, #tpu.memory_space<vmem>>, vector<1x2x512xf32>
    %73 = vector.shape_cast %72 : vector<1x2x512xf32> to vector<2x512xf32>
    %cst_22 = arith.constant dense<0.000000e+00> : vector<2x512xf32>
    %74 = tpu.matmul %66, %0, %cst_22 {dimension_numbers = #tpu.dot_dimension_numbers<[1], [0], [0], [1], [0, 0, 1, 1], [], []>} : vector<2x128xf32>, vector<128x512xf32>, vector<2x512xf32> -> vector<2x512xf32>
    %75 = arith.addf %73, %74 : vector<2x512xf32>
    %76 = vector.extract_strided_slice %75 {offsets = [0, 0], sizes = [2, 128], strides = [1, 1]} : vector<2x512xf32> to vector<2x128xf32>
    %77 = arith.negf %76 : vector<2x128xf32>
    %78 = math.exp %77 : vector<2x128xf32>
    %cst_23 = arith.constant 1.000000e+00 : f32
    %79 = vector.broadcast %cst_23 : f32 to vector<2x128xf32>
    %80 = arith.addf %79, %78 : vector<2x128xf32>
    %81 = arith.divf %79, %80 : vector<2x128xf32>
    %82 = vector.extract_strided_slice %75 {offsets = [0, 128], sizes = [2, 128], strides = [1, 1]} : vector<2x512xf32> to vector<2x128xf32>
    %83 = arith.negf %82 : vector<2x128xf32>
    %84 = math.exp %83 : vector<2x128xf32>
    %cst_24 = arith.constant 1.000000e+00 : f32
    %85 = vector.broadcast %cst_24 : f32 to vector<2x128xf32>
    %86 = arith.addf %85, %84 : vector<2x128xf32>
    %87 = arith.divf %85, %86 : vector<2x128xf32>
    %88 = vector.extract_strided_slice %75 {offsets = [0, 256], sizes = [2, 128], strides = [1, 1]} : vector<2x512xf32> to vector<2x128xf32>
    %89 = math.tanh %88 : vector<2x128xf32>
    %90 = vector.extract_strided_slice %75 {offsets = [0, 384], sizes = [2, 128], strides = [1, 1]} : vector<2x512xf32> to vector<2x128xf32>
    %91 = arith.negf %90 : vector<2x128xf32>
    %92 = math.exp %91 : vector<2x128xf32>
    %cst_25 = arith.constant 1.000000e+00 : f32
    %93 = vector.broadcast %cst_25 : f32 to vector<2x128xf32>
    %94 = arith.addf %93, %92 : vector<2x128xf32>
    %95 = arith.divf %93, %94 : vector<2x128xf32>
    %96 = arith.mulf %87, %64 : vector<2x128xf32>
    %97 = arith.mulf %81, %89 : vector<2x128xf32>
    %98 = arith.addf %96, %97 : vector<2x128xf32>
    %99 = math.tanh %98 : vector<2x128xf32>
    %100 = arith.mulf %95, %99 : vector<2x128xf32>
    %101 = arith.index_cast %c2_i32 : i32 to index
    %c0_26 = arith.constant 0 : index
    %c0_27 = arith.constant 0 : index
    %102 = vector.load %arg5[%101, %c0_26, %c0_27] : memref<8x2x128xf32, #tpu.memory_space<vmem>>, vector<1x2x128xf32>
    %103 = vector.shape_cast %102 : vector<1x2x128xf32> to vector<2x128xf32>
    %104 = vector.shape_cast %100 : vector<2x128xf32> to vector<1x2x128xf32>
    tpu.vector_store %arg5[%101, %c0_26, %c0_27], %104 {strides = array<i32>} : memref<8x2x128xf32, #tpu.memory_space<vmem>>, vector<1x2x128xf32>,
    %c3_i32 = arith.constant 3 : i32
    %105 = arith.index_cast %c3_i32 : i32 to index
    %c0_28 = arith.constant 0 : index
    %c0_29 = arith.constant 0 : index
    %106 = vector.load %arg1[%105, %c0_28, %c0_29] : memref<8x2x512xf32, #tpu.memory_space<vmem>>, vector<1x2x512xf32>
    %107 = vector.shape_cast %106 : vector<1x2x512xf32> to vector<2x512xf32>
    %cst_30 = arith.constant dense<0.000000e+00> : vector<2x512xf32>
    %108 = tpu.matmul %100, %0, %cst_30 {dimension_numbers = #tpu.dot_dimension_numbers<[1], [0], [0], [1], [0, 0, 1, 1], [], []>} : vector<2x128xf32>, vector<128x512xf32>, vector<2x512xf32> -> vector<2x512xf32>
    %109 = arith.addf %107, %108 : vector<2x512xf32>
    %110 = vector.extract_strided_slice %109 {offsets = [0, 0], sizes = [2, 128], strides = [1, 1]} : vector<2x512xf32> to vector<2x128xf32>
    %111 = arith.negf %110 : vector<2x128xf32>
    %112 = math.exp %111 : vector<2x128xf32>
    %cst_31 = arith.constant 1.000000e+00 : f32
    %113 = vector.broadcast %cst_31 : f32 to vector<2x128xf32>
    %114 = arith.addf %113, %112 : vector<2x128xf32>
    %115 = arith.divf %113, %114 : vector<2x128xf32>
    %116 = vector.extract_strided_slice %109 {offsets = [0, 128], sizes = [2, 128], strides = [1, 1]} : vector<2x512xf32> to vector<2x128xf32>
    %117 = arith.negf %116 : vector<2x128xf32>
    %118 = math.exp %117 : vector<2x128xf32>
    %cst_32 = arith.constant 1.000000e+00 : f32
    %119 = vector.broadcast %cst_32 : f32 to vector<2x128xf32>
    %120 = arith.addf %119, %118 : vector<2x128xf32>
    %121 = arith.divf %119, %120 : vector<2x128xf32>
    %122 = vector.extract_strided_slice %109 {offsets = [0, 256], sizes = [2, 128], strides = [1, 1]} : vector<2x512xf32> to vector<2x128xf32>
    %123 = math.tanh %122 : vector<2x128xf32>
    %124 = vector.extract_strided_slice %109 {offsets = [0, 384], sizes = [2, 128], strides = [1, 1]} : vector<2x512xf32> to vector<2x128xf32>
    %125 = arith.negf %124 : vector<2x128xf32>
    %126 = math.exp %125 : vector<2x128xf32>
    %cst_33 = arith.constant 1.000000e+00 : f32
    %127 = vector.broadcast %cst_33 : f32 to vector<2x128xf32>
    %128 = arith.addf %127, %126 : vector<2x128xf32>
    %129 = arith.divf %127, %128 : vector<2x128xf32>
    %130 = arith.mulf %121, %98 : vector<2x128xf32>
    %131 = arith.mulf %115, %123 : vector<2x128xf32>
    %132 = arith.addf %130, %131 : vector<2x128xf32>
    %133 = math.tanh %132 : vector<2x128xf32>
    %134 = arith.mulf %129, %133 : vector<2x128xf32>
    %135 = arith.index_cast %c3_i32 : i32 to index
    %c0_34 = arith.constant 0 : index
    %c0_35 = arith.constant 0 : index
    %136 = vector.load %arg5[%135, %c0_34, %c0_35] : memref<8x2x128xf32, #tpu.memory_space<vmem>>, vector<1x2x128xf32>
    %137 = vector.shape_cast %136 : vector<1x2x128xf32> to vector<2x128xf32>
    %138 = vector.shape_cast %134 : vector<2x128xf32> to vector<1x2x128xf32>
    tpu.vector_store %arg5[%135, %c0_34, %c0_35], %138 {strides = array<i32>} : memref<8x2x128xf32, #tpu.memory_space<vmem>>, vector<1x2x128xf32>,
    %c4_i32 = arith.constant 4 : i32
    %139 = arith.index_cast %c4_i32 : i32 to index
    %c0_36 = arith.constant 0 : index
    %c0_37 = arith.constant 0 : index
    %140 = vector.load %arg1[%139, %c0_36, %c0_37] : memref<8x2x512xf32, #tpu.memory_space<vmem>>, vector<1x2x512xf32>
    %141 = vector.shape_cast %140 : vector<1x2x512xf32> to vector<2x512xf32>
    %cst_38 = arith.constant dense<0.000000e+00> : vector<2x512xf32>
    %142 = tpu.matmul %134, %0, %cst_38 {dimension_numbers = #tpu.dot_dimension_numbers<[1], [0], [0], [1], [0, 0, 1, 1], [], []>} : vector<2x128xf32>, vector<128x512xf32>, vector<2x512xf32> -> vector<2x512xf32>
    %143 = arith.addf %141, %142 : vector<2x512xf32>
    %144 = vector.extract_strided_slice %143 {offsets = [0, 0], sizes = [2, 128], strides = [1, 1]} : vector<2x512xf32> to vector<2x128xf32>
    %145 = arith.negf %144 : vector<2x128xf32>
    %146 = math.exp %145 : vector<2x128xf32>
    %cst_39 = arith.constant 1.000000e+00 : f32
    %147 = vector.broadcast %cst_39 : f32 to vector<2x128xf32>
    %148 = arith.addf %147, %146 : vector<2x128xf32>
    %149 = arith.divf %147, %148 : vector<2x128xf32>
    %150 = vector.extract_strided_slice %143 {offsets = [0, 128], sizes = [2, 128], strides = [1, 1]} : vector<2x512xf32> to vector<2x128xf32>
    %151 = arith.negf %150 : vector<2x128xf32>
    %152 = math.exp %151 : vector<2x128xf32>
    %cst_40 = arith.constant 1.000000e+00 : f32
    %153 = vector.broadcast %cst_40 : f32 to vector<2x128xf32>
    %154 = arith.addf %153, %152 : vector<2x128xf32>
    %155 = arith.divf %153, %154 : vector<2x128xf32>
    %156 = vector.extract_strided_slice %143 {offsets = [0, 256], sizes = [2, 128], strides = [1, 1]} : vector<2x512xf32> to vector<2x128xf32>
    %157 = math.tanh %156 : vector<2x128xf32>
    %158 = vector.extract_strided_slice %143 {offsets = [0, 384], sizes = [2, 128], strides = [1, 1]} : vector<2x512xf32> to vector<2x128xf32>
    %159 = arith.negf %158 : vector<2x128xf32>
    %160 = math.exp %159 : vector<2x128xf32>
    %cst_41 = arith.constant 1.000000e+00 : f32
    %161 = vector.broadcast %cst_41 : f32 to vector<2x128xf32>
    %162 = arith.addf %161, %160 : vector<2x128xf32>
    %163 = arith.divf %161, %162 : vector<2x128xf32>
    %164 = arith.mulf %155, %132 : vector<2x128xf32>
    %165 = arith.mulf %149, %157 : vector<2x128xf32>
    %166 = arith.addf %164, %165 : vector<2x128xf32>
    %167 = math.tanh %166 : vector<2x128xf32>
    %168 = arith.mulf %163, %167 : vector<2x128xf32>
    %169 = arith.index_cast %c4_i32 : i32 to index
    %c0_42 = arith.constant 0 : index
    %c0_43 = arith.constant 0 : index
    %170 = vector.load %arg5[%169, %c0_42, %c0_43] : memref<8x2x128xf32, #tpu.memory_space<vmem>>, vector<1x2x128xf32>
    %171 = vector.shape_cast %170 : vector<1x2x128xf32> to vector<2x128xf32>
    %172 = vector.shape_cast %168 : vector<2x128xf32> to vector<1x2x128xf32>
    tpu.vector_store %arg5[%169, %c0_42, %c0_43], %172 {strides = array<i32>} : memref<8x2x128xf32, #tpu.memory_space<vmem>>, vector<1x2x128xf32>,
    %c5_i32 = arith.constant 5 : i32
    %173 = arith.index_cast %c5_i32 : i32 to index
    %c0_44 = arith.constant 0 : index
    %c0_45 = arith.constant 0 : index
    %174 = vector.load %arg1[%173, %c0_44, %c0_45] : memref<8x2x512xf32, #tpu.memory_space<vmem>>, vector<1x2x512xf32>
    %175 = vector.shape_cast %174 : vector<1x2x512xf32> to vector<2x512xf32>
    %cst_46 = arith.constant dense<0.000000e+00> : vector<2x512xf32>
    %176 = tpu.matmul %168, %0, %cst_46 {dimension_numbers = #tpu.dot_dimension_numbers<[1], [0], [0], [1], [0, 0, 1, 1], [], []>} : vector<2x128xf32>, vector<128x512xf32>, vector<2x512xf32> -> vector<2x512xf32>
    %177 = arith.addf %175, %176 : vector<2x512xf32>
    %178 = vector.extract_strided_slice %177 {offsets = [0, 0], sizes = [2, 128], strides = [1, 1]} : vector<2x512xf32> to vector<2x128xf32>
    %179 = arith.negf %178 : vector<2x128xf32>
    %180 = math.exp %179 : vector<2x128xf32>
    %cst_47 = arith.constant 1.000000e+00 : f32
    %181 = vector.broadcast %cst_47 : f32 to vector<2x128xf32>
    %182 = arith.addf %181, %180 : vector<2x128xf32>
    %183 = arith.divf %181, %182 : vector<2x128xf32>
    %184 = vector.extract_strided_slice %177 {offsets = [0, 128], sizes = [2, 128], strides = [1, 1]} : vector<2x512xf32> to vector<2x128xf32>
    %185 = arith.negf %184 : vector<2x128xf32>
    %186 = math.exp %185 : vector<2x128xf32>
    %cst_48 = arith.constant 1.000000e+00 : f32
    %187 = vector.broadcast %cst_48 : f32 to vector<2x128xf32>
    %188 = arith.addf %187, %186 : vector<2x128xf32>
    %189 = arith.divf %187, %188 : vector<2x128xf32>
    %190 = vector.extract_strided_slice %177 {offsets = [0, 256], sizes = [2, 128], strides = [1, 1]} : vector<2x512xf32> to vector<2x128xf32>
    %191 = math.tanh %190 : vector<2x128xf32>
    %192 = vector.extract_strided_slice %177 {offsets = [0, 384], sizes = [2, 128], strides = [1, 1]} : vector<2x512xf32> to vector<2x128xf32>
    %193 = arith.negf %192 : vector<2x128xf32>
    %194 = math.exp %193 : vector<2x128xf32>
    %cst_49 = arith.constant 1.000000e+00 : f32
    %195 = vector.broadcast %cst_49 : f32 to vector<2x128xf32>
    %196 = arith.addf %195, %194 : vector<2x128xf32>
    %197 = arith.divf %195, %196 : vector<2x128xf32>
    %198 = arith.mulf %189, %166 : vector<2x128xf32>
    %199 = arith.mulf %183, %191 : vector<2x128xf32>
    %200 = arith.addf %198, %199 : vector<2x128xf32>
    %201 = math.tanh %200 : vector<2x128xf32>
    %202 = arith.mulf %197, %201 : vector<2x128xf32>
    %203 = arith.index_cast %c5_i32 : i32 to index
    %c0_50 = arith.constant 0 : index
    %c0_51 = arith.constant 0 : index
    %204 = vector.load %arg5[%203, %c0_50, %c0_51] : memref<8x2x128xf32, #tpu.memory_space<vmem>>, vector<1x2x128xf32>
    %205 = vector.shape_cast %204 : vector<1x2x128xf32> to vector<2x128xf32>
    %206 = vector.shape_cast %202 : vector<2x128xf32> to vector<1x2x128xf32>
    tpu.vector_store %arg5[%203, %c0_50, %c0_51], %206 {strides = array<i32>} : memref<8x2x128xf32, #tpu.memory_space<vmem>>, vector<1x2x128xf32>,
    %c6_i32 = arith.constant 6 : i32
    %207 = arith.index_cast %c6_i32 : i32 to index
    %c0_52 = arith.constant 0 : index
    %c0_53 = arith.constant 0 : index
    %208 = vector.load %arg1[%207, %c0_52, %c0_53] : memref<8x2x512xf32, #tpu.memory_space<vmem>>, vector<1x2x512xf32>
    %209 = vector.shape_cast %208 : vector<1x2x512xf32> to vector<2x512xf32>
    %cst_54 = arith.constant dense<0.000000e+00> : vector<2x512xf32>
    %210 = tpu.matmul %202, %0, %cst_54 {dimension_numbers = #tpu.dot_dimension_numbers<[1], [0], [0], [1], [0, 0, 1, 1], [], []>} : vector<2x128xf32>, vector<128x512xf32>, vector<2x512xf32> -> vector<2x512xf32>
    %211 = arith.addf %209, %210 : vector<2x512xf32>
    %212 = vector.extract_strided_slice %211 {offsets = [0, 0], sizes = [2, 128], strides = [1, 1]} : vector<2x512xf32> to vector<2x128xf32>
    %213 = arith.negf %212 : vector<2x128xf32>
    %214 = math.exp %213 : vector<2x128xf32>
    %cst_55 = arith.constant 1.000000e+00 : f32
    %215 = vector.broadcast %cst_55 : f32 to vector<2x128xf32>
    %216 = arith.addf %215, %214 : vector<2x128xf32>
    %217 = arith.divf %215, %216 : vector<2x128xf32>
    %218 = vector.extract_strided_slice %211 {offsets = [0, 128], sizes = [2, 128], strides = [1, 1]} : vector<2x512xf32> to vector<2x128xf32>
    %219 = arith.negf %218 : vector<2x128xf32>
    %220 = math.exp %219 : vector<2x128xf32>
    %cst_56 = arith.constant 1.000000e+00 : f32
    %221 = vector.broadcast %cst_56 : f32 to vector<2x128xf32>
    %222 = arith.addf %221, %220 : vector<2x128xf32>
    %223 = arith.divf %221, %222 : vector<2x128xf32>
    %224 = vector.extract_strided_slice %211 {offsets = [0, 256], sizes = [2, 128], strides = [1, 1]} : vector<2x512xf32> to vector<2x128xf32>
    %225 = math.tanh %224 : vector<2x128xf32>
    %226 = vector.extract_strided_slice %211 {offsets = [0, 384], sizes = [2, 128], strides = [1, 1]} : vector<2x512xf32> to vector<2x128xf32>
    %227 = arith.negf %226 : vector<2x128xf32>
    %228 = math.exp %227 : vector<2x128xf32>
    %cst_57 = arith.constant 1.000000e+00 : f32
    %229 = vector.broadcast %cst_57 : f32 to vector<2x128xf32>
    %230 = arith.addf %229, %228 : vector<2x128xf32>
    %231 = arith.divf %229, %230 : vector<2x128xf32>
    %232 = arith.mulf %223, %200 : vector<2x128xf32>
    %233 = arith.mulf %217, %225 : vector<2x128xf32>
    %234 = arith.addf %232, %233 : vector<2x128xf32>
    %235 = math.tanh %234 : vector<2x128xf32>
    %236 = arith.mulf %231, %235 : vector<2x128xf32>
    %237 = arith.index_cast %c6_i32 : i32 to index
    %c0_58 = arith.constant 0 : index
    %c0_59 = arith.constant 0 : index
    %238 = vector.load %arg5[%237, %c0_58, %c0_59] : memref<8x2x128xf32, #tpu.memory_space<vmem>>, vector<1x2x128xf32>
    %239 = vector.shape_cast %238 : vector<1x2x128xf32> to vector<2x128xf32>
    %240 = vector.shape_cast %236 : vector<2x128xf32> to vector<1x2x128xf32>
    tpu.vector_store %arg5[%237, %c0_58, %c0_59], %240 {strides = array<i32>} : memref<8x2x128xf32, #tpu.memory_space<vmem>>, vector<1x2x128xf32>,
    %c7_i32 = arith.constant 7 : i32
    %241 = arith.index_cast %c7_i32 : i32 to index
    %c0_60 = arith.constant 0 : index
    %c0_61 = arith.constant 0 : index
    %242 = vector.load %arg1[%241, %c0_60, %c0_61] : memref<8x2x512xf32, #tpu.memory_space<vmem>>, vector<1x2x512xf32>
    %243 = vector.shape_cast %242 : vector<1x2x512xf32> to vector<2x512xf32>
    %cst_62 = arith.constant dense<0.000000e+00> : vector<2x512xf32>
    %244 = tpu.matmul %236, %0, %cst_62 {dimension_numbers = #tpu.dot_dimension_numbers<[1], [0], [0], [1], [0, 0, 1, 1], [], []>} : vector<2x128xf32>, vector<128x512xf32>, vector<2x512xf32> -> vector<2x512xf32>
    %245 = arith.addf %243, %244 : vector<2x512xf32>
    %246 = vector.extract_strided_slice %245 {offsets = [0, 0], sizes = [2, 128], strides = [1, 1]} : vector<2x512xf32> to vector<2x128xf32>
    %247 = arith.negf %246 : vector<2x128xf32>
    %248 = math.exp %247 : vector<2x128xf32>
    %cst_63 = arith.constant 1.000000e+00 : f32
    %249 = vector.broadcast %cst_63 : f32 to vector<2x128xf32>
    %250 = arith.addf %249, %248 : vector<2x128xf32>
    %251 = arith.divf %249, %250 : vector<2x128xf32>
    %252 = vector.extract_strided_slice %245 {offsets = [0, 128], sizes = [2, 128], strides = [1, 1]} : vector<2x512xf32> to vector<2x128xf32>
    %253 = arith.negf %252 : vector<2x128xf32>
    %254 = math.exp %253 : vector<2x128xf32>
    %cst_64 = arith.constant 1.000000e+00 : f32
    %255 = vector.broadcast %cst_64 : f32 to vector<2x128xf32>
    %256 = arith.addf %255, %254 : vector<2x128xf32>
    %257 = arith.divf %255, %256 : vector<2x128xf32>
    %258 = vector.extract_strided_slice %245 {offsets = [0, 256], sizes = [2, 128], strides = [1, 1]} : vector<2x512xf32> to vector<2x128xf32>
    %259 = math.tanh %258 : vector<2x128xf32>
    %260 = vector.extract_strided_slice %245 {offsets = [0, 384], sizes = [2, 128], strides = [1, 1]} : vector<2x512xf32> to vector<2x128xf32>
    %261 = arith.negf %260 : vector<2x128xf32>
    %262 = math.exp %261 : vector<2x128xf32>
    %cst_65 = arith.constant 1.000000e+00 : f32
    %263 = vector.broadcast %cst_65 : f32 to vector<2x128xf32>
    %264 = arith.addf %263, %262 : vector<2x128xf32>
    %265 = arith.divf %263, %264 : vector<2x128xf32>
    %266 = arith.mulf %257, %234 : vector<2x128xf32>
    %267 = arith.mulf %251, %259 : vector<2x128xf32>
    %268 = arith.addf %266, %267 : vector<2x128xf32>
    %269 = math.tanh %268 : vector<2x128xf32>
    %270 = arith.mulf %265, %269 : vector<2x128xf32>
    %271 = arith.index_cast %c7_i32 : i32 to index
    %c0_66 = arith.constant 0 : index
    %c0_67 = arith.constant 0 : index
    %272 = vector.load %arg5[%271, %c0_66, %c0_67] : memref<8x2x128xf32, #tpu.memory_space<vmem>>, vector<1x2x128xf32>
    %273 = vector.shape_cast %272 : vector<1x2x128xf32> to vector<2x128xf32>
    %274 = vector.shape_cast %270 : vector<2x128xf32> to vector<1x2x128xf32>
    tpu.vector_store %arg5[%271, %c0_66, %c0_67], %274 {strides = array<i32>} : memref<8x2x128xf32, #tpu.memory_space<vmem>>, vector<1x2x128xf32>,
    %c8_i32 = arith.constant 8 : i32
    %c0_68 = arith.constant 0 : index
    %c0_69 = arith.constant 0 : index
    %275 = vector.load %arg6[%c0_68, %c0_69] : memref<2x128xf32, #tpu.memory_space<vmem>>, vector<2x128xf32>
    tpu.vector_store %arg6[%c0_68, %c0_69], %270 {strides = array<i32>} : memref<2x128xf32, #tpu.memory_space<vmem>>, vector<2x128xf32>,
    %c0_70 = arith.constant 0 : index
    %c0_71 = arith.constant 0 : index
    %276 = vector.load %arg7[%c0_70, %c0_71] : memref<2x128xf32, #tpu.memory_space<vmem>>, vector<2x128xf32>
    tpu.vector_store %arg7[%c0_70, %c0_71], %268 {strides = array<i32>} : memref<2x128xf32, #tpu.memory_space<vmem>>, vector<2x128xf32>,
    return
  }
  func.func @transform_0(%arg0: i32) -> (i32, i32, i32) {
    %c0_i32 = arith.constant 0 : i32
    %c0_i32_0 = arith.constant 0 : i32
    %c0_i32_1 = arith.constant 0 : i32
    return %c0_i32, %arg0, %c0_i32_0 : i32, i32, i32
  }
  func.func @transform_1(%arg0: i32) -> (i32, i32) {
    %c0_i32 = arith.constant 0 : i32
    %c0_i32_0 = arith.constant 0 : i32
    return %arg0, %c0_i32 : i32, i32
  }
  func.func @transform_2(%arg0: i32) -> (i32, i32) {
    %c0_i32 = arith.constant 0 : i32
    %c0_i32_0 = arith.constant 0 : i32
    return %arg0, %c0_i32 : i32, i32
  }
  func.func @transform_3(%arg0: i32) -> (i32, i32) {
    %c0_i32 = arith.constant 0 : i32
    %c0_i32_0 = arith.constant 0 : i32
    %c0_i32_1 = arith.constant 0 : i32
    return %c0_i32, %c0_i32_0 : i32, i32
  }
  func.func @transform_4(%arg0: i32) -> (i32, i32, i32) {
    %c0_i32 = arith.constant 0 : i32
    %c0_i32_0 = arith.constant 0 : i32
    %c0_i32_1 = arith.constant 0 : i32
    return %c0_i32, %arg0, %c0_i32_0 : i32, i32, i32
  }
  func.func @transform_5(%arg0: i32) -> (i32, i32) {
    %c0_i32 = arith.constant 0 : i32
    %c0_i32_0 = arith.constant 0 : i32
    return %arg0, %c0_i32 : i32, i32
  }
  func.func @transform_6(%arg0: i32) -> (i32, i32) {
    %c0_i32 = arith.constant 0 : i32
    %c0_i32_0 = arith.constant 0 : i32
    return %arg0, %c0_i32 : i32, i32
  }
}

module attributes {stable_mosaic.version = 11 : i64} {
  func.func @_attn_cross_kernel(%arg0: i32, %arg1: memref<1x16x128xf32, #tpu.memory_space<vmem>>, %arg2: memref<1x24x128xf32, #tpu.memory_space<vmem>>, %arg3: memref<384x128xf32, #tpu.memory_space<vmem>>, %arg4: memref<1x128xf32, #tpu.memory_space<vmem>>, %arg5: memref<384x128xf32, #tpu.memory_space<vmem>>, %arg6: memref<1x128xf32, #tpu.memory_space<vmem>>, %arg7: memref<1x16x128xf32, #tpu.memory_space<vmem>>, %arg8: memref<1x24x128xf32, #tpu.memory_space<vmem>>) attributes {dimension_semantics = [#tpu.dimension_semantics<parallel>], iteration_bounds = array<i64: 2>, scalar_prefetch = 0 : i64, scratch_operands = 0 : i64, tpu.core_type = #tpu.core_type<tc>, window_params = [{transform_indices = @transform_0, window_bounds = array<i64: 1, 16, 128>}, {transform_indices = @transform_1, window_bounds = array<i64: 1, 24, 128>}, {pipeline_mode = #tpu.pipeline_mode<synchronous>, transform_indices = @transform_2, window_bounds = array<i64: 384, 128>}, {pipeline_mode = #tpu.pipeline_mode<synchronous>, transform_indices = @transform_3, window_bounds = array<i64: 1, 128>}, {pipeline_mode = #tpu.pipeline_mode<synchronous>, transform_indices = @transform_4, window_bounds = array<i64: 384, 128>}, {pipeline_mode = #tpu.pipeline_mode<synchronous>, transform_indices = @transform_5, window_bounds = array<i64: 1, 128>}, {transform_indices = @transform_6, window_bounds = array<i64: 1, 16, 128>}, {transform_indices = @transform_7, window_bounds = array<i64: 1, 24, 128>}]} {
    %c0 = arith.constant 0 : index
    %c0_0 = arith.constant 0 : index
    %c0_1 = arith.constant 0 : index
    %0 = vector.load %arg1[%c0, %c0_0, %c0_1] : memref<1x16x128xf32, #tpu.memory_space<vmem>>, vector<1x16x128xf32>
    %1 = vector.shape_cast %0 : vector<1x16x128xf32> to vector<16x128xf32>
    %c0_2 = arith.constant 0 : index
    %c0_3 = arith.constant 0 : index
    %c0_4 = arith.constant 0 : index
    %2 = vector.load %arg2[%c0_2, %c0_3, %c0_4] : memref<1x24x128xf32, #tpu.memory_space<vmem>>, vector<1x24x128xf32>
    %3 = vector.shape_cast %2 : vector<1x24x128xf32> to vector<24x128xf32>
    %cst = arith.constant dense<0.000000e+00> : vector<16x24xf32>
    %4 = tpu.matmul %1, %3, %cst {dimension_numbers = #tpu.dot_dimension_numbers<[1], [1], [0], [0], [0, 0, 1, 0], [], []>} : vector<16x128xf32>, vector<24x128xf32>, vector<16x24xf32> -> vector<16x24xf32>
    %cst_5 = arith.constant dense<0xFF800000> : vector<16xf32>
    %5 = vector.multi_reduction <maximumf>, %4, %cst_5 [1] : vector<16x24xf32> to vector<16xf32>
    %6 = vector.shape_cast %5 : vector<16xf32> to vector<16x1xf32>
    %7 = vector.broadcast %6 : vector<16x1xf32> to vector<16x24xf32>
    %8 = arith.subf %4, %7 : vector<16x24xf32>
    %9 = math.exp %8 : vector<16x24xf32>
    %cst_6 = arith.constant dense<0.000000e+00> : vector<16xf32>
    %10 = vector.multi_reduction <add>, %9, %cst_6 [1] : vector<16x24xf32> to vector<16xf32>
    %11 = vector.shape_cast %10 : vector<16xf32> to vector<16x1xf32>
    %12 = vector.broadcast %11 : vector<16x1xf32> to vector<16x24xf32>
    %13 = arith.divf %9, %12 : vector<16x24xf32>
    %cst_7 = arith.constant dense<0xFF800000> : vector<24xf32>
    %14 = vector.multi_reduction <maximumf>, %4, %cst_7 [0] : vector<16x24xf32> to vector<24xf32>
    %15 = vector.shape_cast %14 : vector<24xf32> to vector<1x24xf32>
    %16 = vector.broadcast %15 : vector<1x24xf32> to vector<16x24xf32>
    %17 = arith.subf %4, %16 : vector<16x24xf32>
    %18 = math.exp %17 : vector<16x24xf32>
    %cst_8 = arith.constant dense<0.000000e+00> : vector<24xf32>
    %19 = vector.multi_reduction <add>, %18, %cst_8 [0] : vector<16x24xf32> to vector<24xf32>
    %20 = vector.shape_cast %19 : vector<24xf32> to vector<1x24xf32>
    %21 = vector.broadcast %20 : vector<1x24xf32> to vector<16x24xf32>
    %22 = arith.divf %18, %21 : vector<16x24xf32>
    %cst_9 = arith.constant dense<0.000000e+00> : vector<16x128xf32>
    %23 = tpu.matmul %13, %3, %cst_9 {dimension_numbers = #tpu.dot_dimension_numbers<[1], [0], [0], [1], [0, 0, 1, 1], [], []>} : vector<16x24xf32>, vector<24x128xf32>, vector<16x128xf32> -> vector<16x128xf32>
    %cst_10 = arith.constant dense<0.000000e+00> : vector<24x128xf32>
    %24 = tpu.matmul %22, %1, %cst_10 {dimension_numbers = #tpu.dot_dimension_numbers<[0], [0], [1], [1], [0, 1, 1, 1], [], []>} : vector<16x24xf32>, vector<16x128xf32>, vector<24x128xf32> -> vector<24x128xf32>
    %25 = arith.mulf %1, %23 : vector<16x128xf32>
    %26 = tpu.concatenate %1, %23, %25 in 1 : vector<16x128xf32>, vector<16x128xf32>, vector<16x128xf32> -> vector<16x384xf32>
    %c0_11 = arith.constant 0 : index
    %c0_12 = arith.constant 0 : index
    %27 = vector.load %arg3[%c0_11, %c0_12] : memref<384x128xf32, #tpu.memory_space<vmem>>, vector<384x128xf32>
    %cst_13 = arith.constant dense<0.000000e+00> : vector<16x128xf32>
    %28 = tpu.matmul %26, %27, %cst_13 {dimension_numbers = #tpu.dot_dimension_numbers<[1], [0], [0], [1], [0, 0, 1, 1], [], []>} : vector<16x384xf32>, vector<384x128xf32>, vector<16x128xf32> -> vector<16x128xf32>
    %c0_14 = arith.constant 0 : index
    %c0_15 = arith.constant 0 : index
    %29 = vector.load %arg4[%c0_14, %c0_15] : memref<1x128xf32, #tpu.memory_space<vmem>>, vector<1x128xf32>
    %30 = vector.broadcast %29 : vector<1x128xf32> to vector<16x128xf32>
    %31 = arith.addf %28, %30 : vector<16x128xf32>
    %32 = arith.mulf %3, %24 : vector<24x128xf32>
    %33 = tpu.concatenate %3, %24, %32 in 1 : vector<24x128xf32>, vector<24x128xf32>, vector<24x128xf32> -> vector<24x384xf32>
    %c0_16 = arith.constant 0 : index
    %c0_17 = arith.constant 0 : index
    %34 = vector.load %arg5[%c0_16, %c0_17] : memref<384x128xf32, #tpu.memory_space<vmem>>, vector<384x128xf32>
    %cst_18 = arith.constant dense<0.000000e+00> : vector<24x128xf32>
    %35 = tpu.matmul %33, %34, %cst_18 {dimension_numbers = #tpu.dot_dimension_numbers<[1], [0], [0], [1], [0, 0, 1, 1], [], []>} : vector<24x384xf32>, vector<384x128xf32>, vector<24x128xf32> -> vector<24x128xf32>
    %c0_19 = arith.constant 0 : index
    %c0_20 = arith.constant 0 : index
    %36 = vector.load %arg6[%c0_19, %c0_20] : memref<1x128xf32, #tpu.memory_space<vmem>>, vector<1x128xf32>
    %37 = vector.broadcast %36 : vector<1x128xf32> to vector<24x128xf32>
    %38 = arith.addf %35, %37 : vector<24x128xf32>
    %c0_21 = arith.constant 0 : index
    %c0_22 = arith.constant 0 : index
    %c0_23 = arith.constant 0 : index
    %39 = vector.load %arg7[%c0_21, %c0_22, %c0_23] : memref<1x16x128xf32, #tpu.memory_space<vmem>>, vector<1x16x128xf32>
    %40 = vector.shape_cast %39 : vector<1x16x128xf32> to vector<16x128xf32>
    %41 = vector.shape_cast %31 : vector<16x128xf32> to vector<1x16x128xf32>
    tpu.vector_store %arg7[%c0_21, %c0_22, %c0_23], %41 {strides = array<i32>} : memref<1x16x128xf32, #tpu.memory_space<vmem>>, vector<1x16x128xf32>,
    %c0_24 = arith.constant 0 : index
    %c0_25 = arith.constant 0 : index
    %c0_26 = arith.constant 0 : index
    %42 = vector.load %arg8[%c0_24, %c0_25, %c0_26] : memref<1x24x128xf32, #tpu.memory_space<vmem>>, vector<1x24x128xf32>
    %43 = vector.shape_cast %42 : vector<1x24x128xf32> to vector<24x128xf32>
    %44 = vector.shape_cast %38 : vector<24x128xf32> to vector<1x24x128xf32>
    tpu.vector_store %arg8[%c0_24, %c0_25, %c0_26], %44 {strides = array<i32>} : memref<1x24x128xf32, #tpu.memory_space<vmem>>, vector<1x24x128xf32>,
    return
  }
  func.func @transform_0(%arg0: i32) -> (i32, i32, i32) {
    %c0_i32 = arith.constant 0 : i32
    %c0_i32_0 = arith.constant 0 : i32
    %c0_i32_1 = arith.constant 0 : i32
    return %arg0, %c0_i32, %c0_i32_0 : i32, i32, i32
  }
  func.func @transform_1(%arg0: i32) -> (i32, i32, i32) {
    %c0_i32 = arith.constant 0 : i32
    %c0_i32_0 = arith.constant 0 : i32
    %c0_i32_1 = arith.constant 0 : i32
    return %arg0, %c0_i32, %c0_i32_0 : i32, i32, i32
  }
  func.func @transform_2(%arg0: i32) -> (i32, i32) {
    %c0_i32 = arith.constant 0 : i32
    %c0_i32_0 = arith.constant 0 : i32
    %c0_i32_1 = arith.constant 0 : i32
    return %c0_i32, %c0_i32_0 : i32, i32
  }
  func.func @transform_3(%arg0: i32) -> (i32, i32) {
    %c0_i32 = arith.constant 0 : i32
    %c0_i32_0 = arith.constant 0 : i32
    %c0_i32_1 = arith.constant 0 : i32
    return %c0_i32, %c0_i32_0 : i32, i32
  }
  func.func @transform_4(%arg0: i32) -> (i32, i32) {
    %c0_i32 = arith.constant 0 : i32
    %c0_i32_0 = arith.constant 0 : i32
    %c0_i32_1 = arith.constant 0 : i32
    return %c0_i32, %c0_i32_0 : i32, i32
  }
  func.func @transform_5(%arg0: i32) -> (i32, i32) {
    %c0_i32 = arith.constant 0 : i32
    %c0_i32_0 = arith.constant 0 : i32
    %c0_i32_1 = arith.constant 0 : i32
    return %c0_i32, %c0_i32_0 : i32, i32
  }
  func.func @transform_6(%arg0: i32) -> (i32, i32, i32) {
    %c0_i32 = arith.constant 0 : i32
    %c0_i32_0 = arith.constant 0 : i32
    %c0_i32_1 = arith.constant 0 : i32
    return %arg0, %c0_i32, %c0_i32_0 : i32, i32, i32
  }
  func.func @transform_7(%arg0: i32) -> (i32, i32, i32) {
    %c0_i32 = arith.constant 0 : i32
    %c0_i32_0 = arith.constant 0 : i32
    %c0_i32_1 = arith.constant 0 : i32
    return %arg0, %c0_i32, %c0_i32_0 : i32, i32, i32
  }
}

module attributes {stable_mosaic.version = 11 : i64} {
  func.func @_attn_project_kernel(%arg0: i32, %arg1: memref<1x8x128xf32, #tpu.memory_space<vmem>>, %arg2: memref<1x16x128xf32, #tpu.memory_space<vmem>>, %arg3: memref<1x24x128xf32, #tpu.memory_space<vmem>>, %arg4: memref<640x128xf32, #tpu.memory_space<vmem>>, %arg5: memref<1x128xf32, #tpu.memory_space<vmem>>, %arg6: memref<128x256xf32, #tpu.memory_space<vmem>>, %arg7: memref<1x256xf32, #tpu.memory_space<vmem>>, %arg8: memref<1x8x256xf32, #tpu.memory_space<vmem>>) attributes {dimension_semantics = [#tpu.dimension_semantics<parallel>], iteration_bounds = array<i64: 2>, scalar_prefetch = 0 : i64, scratch_operands = 0 : i64, tpu.core_type = #tpu.core_type<tc>, window_params = [{transform_indices = @transform_0, window_bounds = array<i64: 1, 8, 128>}, {transform_indices = @transform_1, window_bounds = array<i64: 1, 16, 128>}, {transform_indices = @transform_2, window_bounds = array<i64: 1, 24, 128>}, {pipeline_mode = #tpu.pipeline_mode<synchronous>, transform_indices = @transform_3, window_bounds = array<i64: 640, 128>}, {pipeline_mode = #tpu.pipeline_mode<synchronous>, transform_indices = @transform_4, window_bounds = array<i64: 1, 128>}, {pipeline_mode = #tpu.pipeline_mode<synchronous>, transform_indices = @transform_5, window_bounds = array<i64: 128, 256>}, {pipeline_mode = #tpu.pipeline_mode<synchronous>, transform_indices = @transform_6, window_bounds = array<i64: 1, 256>}, {transform_indices = @transform_7, window_bounds = array<i64: 1, 8, 256>}]} {
    %c0 = arith.constant 0 : index
    %c0_0 = arith.constant 0 : index
    %c0_1 = arith.constant 0 : index
    %0 = vector.load %arg1[%c0, %c0_0, %c0_1] : memref<1x8x128xf32, #tpu.memory_space<vmem>>, vector<1x8x128xf32>
    %1 = vector.shape_cast %0 : vector<1x8x128xf32> to vector<8x128xf32>
    %c0_2 = arith.constant 0 : index
    %c0_3 = arith.constant 0 : index
    %c0_4 = arith.constant 0 : index
    %2 = vector.load %arg2[%c0_2, %c0_3, %c0_4] : memref<1x16x128xf32, #tpu.memory_space<vmem>>, vector<1x16x128xf32>
    %3 = vector.shape_cast %2 : vector<1x16x128xf32> to vector<16x128xf32>
    %c0_5 = arith.constant 0 : index
    %c0_6 = arith.constant 0 : index
    %c0_7 = arith.constant 0 : index
    %4 = vector.load %arg3[%c0_5, %c0_6, %c0_7] : memref<1x24x128xf32, #tpu.memory_space<vmem>>, vector<1x24x128xf32>
    %5 = vector.shape_cast %4 : vector<1x24x128xf32> to vector<24x128xf32>
    %cst = arith.constant dense<0.000000e+00> : vector<8x16xf32>
    %6 = tpu.matmul %1, %3, %cst {dimension_numbers = #tpu.dot_dimension_numbers<[1], [1], [0], [0], [0, 0, 1, 0], [], []>} : vector<8x128xf32>, vector<16x128xf32>, vector<8x16xf32> -> vector<8x16xf32>
    %cst_8 = arith.constant dense<0xFF800000> : vector<8xf32>
    %7 = vector.multi_reduction <maximumf>, %6, %cst_8 [1] : vector<8x16xf32> to vector<8xf32>
    %8 = vector.shape_cast %7 : vector<8xf32> to vector<8x1xf32>
    %9 = vector.broadcast %8 : vector<8x1xf32> to vector<8x16xf32>
    %10 = arith.subf %6, %9 : vector<8x16xf32>
    %11 = math.exp %10 : vector<8x16xf32>
    %cst_9 = arith.constant dense<0.000000e+00> : vector<8xf32>
    %12 = vector.multi_reduction <add>, %11, %cst_9 [1] : vector<8x16xf32> to vector<8xf32>
    %13 = vector.shape_cast %12 : vector<8xf32> to vector<8x1xf32>
    %14 = vector.broadcast %13 : vector<8x1xf32> to vector<8x16xf32>
    %15 = arith.divf %11, %14 : vector<8x16xf32>
    %cst_10 = arith.constant dense<0.000000e+00> : vector<8x128xf32>
    %16 = tpu.matmul %15, %3, %cst_10 {dimension_numbers = #tpu.dot_dimension_numbers<[1], [0], [0], [1], [0, 0, 1, 1], [], []>} : vector<8x16xf32>, vector<16x128xf32>, vector<8x128xf32> -> vector<8x128xf32>
    %cst_11 = arith.constant dense<0.000000e+00> : vector<8x24xf32>
    %17 = tpu.matmul %1, %5, %cst_11 {dimension_numbers = #tpu.dot_dimension_numbers<[1], [1], [0], [0], [0, 0, 1, 0], [], []>} : vector<8x128xf32>, vector<24x128xf32>, vector<8x24xf32> -> vector<8x24xf32>
    %cst_12 = arith.constant dense<0xFF800000> : vector<8xf32>
    %18 = vector.multi_reduction <maximumf>, %17, %cst_12 [1] : vector<8x24xf32> to vector<8xf32>
    %19 = vector.shape_cast %18 : vector<8xf32> to vector<8x1xf32>
    %20 = vector.broadcast %19 : vector<8x1xf32> to vector<8x24xf32>
    %21 = arith.subf %17, %20 : vector<8x24xf32>
    %22 = math.exp %21 : vector<8x24xf32>
    %cst_13 = arith.constant dense<0.000000e+00> : vector<8xf32>
    %23 = vector.multi_reduction <add>, %22, %cst_13 [1] : vector<8x24xf32> to vector<8xf32>
    %24 = vector.shape_cast %23 : vector<8xf32> to vector<8x1xf32>
    %25 = vector.broadcast %24 : vector<8x1xf32> to vector<8x24xf32>
    %26 = arith.divf %22, %25 : vector<8x24xf32>
    %cst_14 = arith.constant dense<0.000000e+00> : vector<8x128xf32>
    %27 = tpu.matmul %26, %5, %cst_14 {dimension_numbers = #tpu.dot_dimension_numbers<[1], [0], [0], [1], [0, 0, 1, 1], [], []>} : vector<8x24xf32>, vector<24x128xf32>, vector<8x128xf32> -> vector<8x128xf32>
    %28 = arith.mulf %1, %16 : vector<8x128xf32>
    %29 = arith.mulf %1, %27 : vector<8x128xf32>
    %30 = tpu.concatenate %16, %27, %1, %28, %29 in 1 : vector<8x128xf32>, vector<8x128xf32>, vector<8x128xf32>, vector<8x128xf32>, vector<8x128xf32> -> vector<8x640xf32>
    %c0_15 = arith.constant 0 : index
    %c0_16 = arith.constant 0 : index
    %31 = vector.load %arg4[%c0_15, %c0_16] : memref<640x128xf32, #tpu.memory_space<vmem>>, vector<640x128xf32>
    %cst_17 = arith.constant dense<0.000000e+00> : vector<8x128xf32>
    %32 = tpu.matmul %30, %31, %cst_17 {dimension_numbers = #tpu.dot_dimension_numbers<[1], [0], [0], [1], [0, 0, 1, 1], [], []>} : vector<8x640xf32>, vector<640x128xf32>, vector<8x128xf32> -> vector<8x128xf32>
    %c0_18 = arith.constant 0 : index
    %c0_19 = arith.constant 0 : index
    %33 = vector.load %arg5[%c0_18, %c0_19] : memref<1x128xf32, #tpu.memory_space<vmem>>, vector<1x128xf32>
    %34 = vector.broadcast %33 : vector<1x128xf32> to vector<8x128xf32>
    %35 = arith.addf %32, %34 : vector<8x128xf32>
    %c0_20 = arith.constant 0 : index
    %c0_21 = arith.constant 0 : index
    %36 = vector.load %arg6[%c0_20, %c0_21] : memref<128x256xf32, #tpu.memory_space<vmem>>, vector<128x256xf32>
    %cst_22 = arith.constant dense<0.000000e+00> : vector<8x256xf32>
    %37 = tpu.matmul %35, %36, %cst_22 {dimension_numbers = #tpu.dot_dimension_numbers<[1], [0], [0], [1], [0, 0, 1, 1], [], []>} : vector<8x128xf32>, vector<128x256xf32>, vector<8x256xf32> -> vector<8x256xf32>
    %c0_23 = arith.constant 0 : index
    %c0_24 = arith.constant 0 : index
    %38 = vector.load %arg7[%c0_23, %c0_24] : memref<1x256xf32, #tpu.memory_space<vmem>>, vector<1x256xf32>
    %39 = vector.broadcast %38 : vector<1x256xf32> to vector<8x256xf32>
    %40 = arith.addf %37, %39 : vector<8x256xf32>
    %c0_25 = arith.constant 0 : index
    %c0_26 = arith.constant 0 : index
    %c0_27 = arith.constant 0 : index
    %41 = vector.load %arg8[%c0_25, %c0_26, %c0_27] : memref<1x8x256xf32, #tpu.memory_space<vmem>>, vector<1x8x256xf32>
    %42 = vector.shape_cast %41 : vector<1x8x256xf32> to vector<8x256xf32>
    %43 = vector.shape_cast %40 : vector<8x256xf32> to vector<1x8x256xf32>
    tpu.vector_store %arg8[%c0_25, %c0_26, %c0_27], %43 {strides = array<i32>} : memref<1x8x256xf32, #tpu.memory_space<vmem>>, vector<1x8x256xf32>,
    return
  }
  func.func @transform_0(%arg0: i32) -> (i32, i32, i32) {
    %c0_i32 = arith.constant 0 : i32
    %c0_i32_0 = arith.constant 0 : i32
    %c0_i32_1 = arith.constant 0 : i32
    return %arg0, %c0_i32, %c0_i32_0 : i32, i32, i32
  }
  func.func @transform_1(%arg0: i32) -> (i32, i32, i32) {
    %c0_i32 = arith.constant 0 : i32
    %c0_i32_0 = arith.constant 0 : i32
    %c0_i32_1 = arith.constant 0 : i32
    return %arg0, %c0_i32, %c0_i32_0 : i32, i32, i32
  }
  func.func @transform_2(%arg0: i32) -> (i32, i32, i32) {
    %c0_i32 = arith.constant 0 : i32
    %c0_i32_0 = arith.constant 0 : i32
    %c0_i32_1 = arith.constant 0 : i32
    return %arg0, %c0_i32, %c0_i32_0 : i32, i32, i32
  }
  func.func @transform_3(%arg0: i32) -> (i32, i32) {
    %c0_i32 = arith.constant 0 : i32
    %c0_i32_0 = arith.constant 0 : i32
    %c0_i32_1 = arith.constant 0 : i32
    return %c0_i32, %c0_i32_0 : i32, i32
  }
  func.func @transform_4(%arg0: i32) -> (i32, i32) {
    %c0_i32 = arith.constant 0 : i32
    %c0_i32_0 = arith.constant 0 : i32
    %c0_i32_1 = arith.constant 0 : i32
    return %c0_i32, %c0_i32_0 : i32, i32
  }
  func.func @transform_5(%arg0: i32) -> (i32, i32) {
    %c0_i32 = arith.constant 0 : i32
    %c0_i32_0 = arith.constant 0 : i32
    %c0_i32_1 = arith.constant 0 : i32
    return %c0_i32, %c0_i32_0 : i32, i32
  }
  func.func @transform_6(%arg0: i32) -> (i32, i32) {
    %c0_i32 = arith.constant 0 : i32
    %c0_i32_0 = arith.constant 0 : i32
    %c0_i32_1 = arith.constant 0 : i32
    return %c0_i32, %c0_i32_0 : i32, i32
  }
  func.func @transform_7(%arg0: i32) -> (i32, i32, i32) {
    %c0_i32 = arith.constant 0 : i32
    %c0_i32_0 = arith.constant 0 : i32
    %c0_i32_1 = arith.constant 0 : i32
    return %arg0, %c0_i32, %c0_i32_0 : i32, i32, i32
  }
}

</mosaic_0001>

<llo_original>
// kernel: decoder_forward.6
$region0: #{decoder_forward.6}
  #allocation0 [shape = 'u32[]', space=smem, size = 0x4, offset = 0x4, fixed_abs, tag = 'smem constant byte address 0x4 - core index']
  #allocation1 [shape = 'u32[72,128]{1,0:T(1,128)}', space=vmem, size = 0x9000, scoped, tag = 'internal scratch']
  %s0 = inlined_call_operand.vmem [shape: f32[16,64], index: 0, kind: input, shape index: {}]
  %s1 = inlined_call_operand.hbm [shape: f32[64,512], index: 1, kind: input, shape index: {}]
  %s2 = inlined_call_operand.vmem [shape: f32[1,512], index: 2, kind: input, shape index: {}]
  %s3 = inlined_call_operand.vmem [shape: f32[16,512], index: 3, kind: output, shape index: {}]
  %s4 = sld [smem:[#allocation0]]
  $region26: #{decoder_forward.6} parent=0
    _
  %s6 = ssub.s32 1, %s4
  %s7 = scalar_select 0, %s6, %s4
  $region1: #{decoder_forward.6} parent=0
    #allocation2 [shape = 'u8[131072]{0}', space=vmem, size = 0x20000, scoped, tag = 'input window, operand 1, single buffered']
    #allocation3 [shape = 's32[1]{0}', space=sflag, size = 0x4, scoped, tag = 'scoped memory for decoder_forward.6']
    %8 = vsyncpa [#allocation3], 0
    // Predicated region
    $region2: #{decoder_forward.6} parent=1 // pred_check
      _
    $region3: #{decoder_forward.6} parent=1 // pred_check_branch
      %10 = sbr.rel (0) target = $region5
    $region4: #{decoder_forward.6} parent=1 // pred_region
      _
    $region5: #{decoder_forward.6} parent=1 // pred_fallthru
      _
    // Predicated region
    $region6: #{decoder_forward.6} parent=1 // pred_check
      _
    $region7: #{decoder_forward.6} parent=1 // pred_check_branch
      %12 = sbr.rel (0) target = $region9
    $region8: #{decoder_forward.6} parent=1 // pred_region
      %14 = vsyncadd [#allocation3], 0
      %s15 = sshll.u32 %s1, 4
      %s16 = int_to_ptr.hbm [resolvable:$true] %s15
      %s17 = sshll.u32 [#allocation2], 4
      %s18 = int_to_ptr.vmem [resolvable:$true] %s17
      %23 = dma.hbm_to_vmem [thread:$0]  %s16, 4096, %s18, [#allocation3], 512, 512, 32
    $region9: #{decoder_forward.6} parent=1 // pred_fallthru
      _
    // Predicated region
    $region10: #{decoder_forward.6} parent=1 // pred_check
      _
    $region11: #{decoder_forward.6} parent=1 // pred_check_branch
      %25 = sbr.rel (0) target = $region13
    $region12: #{decoder_forward.6} parent=1 // pred_region
      _
    $region13: #{decoder_forward.6} parent=1 // pred_fallthru
      _
    // Predicated region
    $region14: #{decoder_forward.6} parent=1 // pred_check
      _
    $region15: #{decoder_forward.6} parent=1 // pred_check_branch
      %27 = sbr.rel (0) target = $region17
    $region16: #{decoder_forward.6} parent=1 // pred_region
      %29 = dma.done [#allocation3], 4096
    $region17: #{decoder_forward.6} parent=1 // pred_fallthru
      _
    %v30 = vld [vmem:[%s0] sm:$0xff]
    %v31 = vld [vmem:[%s0 + $0x8] sm:$0xff]
    %v32 = vld [vmem:[#allocation2] sm:$0xff]
    %v33 = vld [vmem:[#allocation2 + $0x8] sm:$0xff]
    %v34 = vld [vmem:[#allocation2 + $0x10] sm:$0xff]
    %v35 = vld [vmem:[#allocation2 + $0x18] sm:$0xff]
    %v36 = vld [vmem:[#allocation2 + $0x20] sm:$0xff]
    %v37 = vld [vmem:[#allocation2 + $0x28] sm:$0xff]
    %v38 = vld [vmem:[#allocation2 + $0x30] sm:$0xff]
    %v39 = vld [vmem:[#allocation2 + $0x38] sm:$0xff]
    %v40 = vld [vmem:[#allocation2 + $0x40] sm:$0xff]
    %v41 = vld [vmem:[#allocation2 + $0x48] sm:$0xff]
    %v42 = vld [vmem:[#allocation2 + $0x50] sm:$0xff]
    %v43 = vld [vmem:[#allocation2 + $0x58] sm:$0xff]
    %v44 = vld [vmem:[#allocation2 + $0x60] sm:$0xff]
    %v45 = vld [vmem:[#allocation2 + $0x68] sm:$0xff]
    %v46 = vld [vmem:[#allocation2 + $0x70] sm:$0xff]
    %v47 = vld [vmem:[#allocation2 + $0x78] sm:$0xff]
    %v48 = vld [vmem:[#allocation2 + $0x80] sm:$0xff]
    %v49 = vld [vmem:[#allocation2 + $0x88] sm:$0xff]
    %v50 = vld [vmem:[#allocation2 + $0x90] sm:$0xff]
    %v51 = vld [vmem:[#allocation2 + $0x98] sm:$0xff]
    %v52 = vld [vmem:[#allocation2 + $0xa0] sm:$0xff]
    %v53 = vld [vmem:[#allocation2 + $0xa8] sm:$0xff]
    %v54 = vld [vmem:[#allocation2 + $0xb0] sm:$0xff]
    %v55 = vld [vmem:[#allocation2 + $0xb8] sm:$0xff]
    %v56 = vld [vmem:[#allocation2 + $0xc0] sm:$0xff]
    %v57 = vld [vmem:[#allocation2 + $0xc8] sm:$0xff]
    %v58 = vld [vmem:[#allocation2 + $0xd0] sm:$0xff]
    %v59 = vld [vmem:[#allocation2 + $0xd8] sm:$0xff]
    %v60 = vld [vmem:[#allocation2 + $0xe0] sm:$0xff]
    %v61 = vld [vmem:[#allocation2 + $0xe8] sm:$0xff]
    %v62 = vld [vmem:[#allocation2 + $0xf0] sm:$0xff]
    %v63 = vld [vmem:[#allocation2 + $0xf8] sm:$0xff]
    %v64 = vld [vmem:[%s2] sm:$0xf]
    %v66 = vperm.slane %v64, 0
    %v67 = vperm.slane %v64, 1
    %v68 = vperm.slane %v64, 2
    %v69 = vperm.slane %v64, 3
    %vm74 = vcmask 523264
    %v76 = vsel %vm74, %v30, 0
    %v79 = vsel %vm74, %v31, 0
    %81 = vmatpush.msra.mxu0 0.0
    %82 = vmatpush.msra.mxu0 0.0
    %83 = vmatpush.msra.mxu0 0.0
    %84 = vmatpush.msra.mxu0 0.0
    %85 = vmatpush.msra.mxu0 0.0
    %86 = vmatpush.msra.mxu0 0.0
    %87 = vmatpush.msra.mxu0 0.0
    %88 = vmatpush.msra.mxu0 0.0
    %89 = vmatpush.msra.mxu0 %v60
    %90 = vmatpush.msra.mxu0 %v56
    %91 = vmatpush.msra.mxu0 %v52
    %92 = vmatpush.msra.mxu0 %v48
    %93 = vmatpush.msra.mxu0 %v44
    %94 = vmatpush.msra.mxu0 %v40
    %95 = vmatpush.msra.mxu0 %v36
    %96 = vmatpush.msra.mxu0 %v32
    %97 = vmatmul.f32.gmra.mxu0 %v76
    %v98 = vpop.f32.mrf.mxu0
    %v99 = vadd.f32 %v66, %v98
    %100 = vmatmul.f32.gmra.mxu0 %v79
    %v101 = vpop.f32.mrf.mxu0
    %v102 = vadd.f32 %v66, %v101
    %103 = vdwg.mxu0
    %104 = vmatpush.msra.mxu0 0.0
    %105 = vmatpush.msra.mxu0 0.0
    %106 = vmatpush.msra.mxu0 0.0
    %107 = vmatpush.msra.mxu0 0.0
    %108 = vmatpush.msra.mxu0 0.0
    %109 = vmatpush.msra.mxu0 0.0
    %110 = vmatpush.msra.mxu0 0.0
    %111 = vmatpush.msra.mxu0 0.0
    %112 = vmatpush.msra.mxu0 %v61
    %113 = vmatpush.msra.mxu0 %v57
    %114 = vmatpush.msra.mxu0 %v53
    %115 = vmatpush.msra.mxu0 %v49
    %116 = vmatpush.msra.mxu0 %v45
    %117 = vmatpush.msra.mxu0 %v41
    %118 = vmatpush.msra.mxu0 %v37
    %119 = vmatpush.msra.mxu0 %v33
    %120 = vmatmul.f32.gmra.mxu0 %v76
    %v121 = vpop.f32.mrf.mxu0
    %v122 = vadd.f32 %v67, %v121
    %123 = vmatmul.f32.gmra.mxu0 %v79
    %v124 = vpop.f32.mrf.mxu0
    %v125 = vadd.f32 %v67, %v124
    %126 = vdwg.mxu0
    %127 = vmatpush.msra.mxu0 0.0
    %128 = vmatpush.msra.mxu0 0.0
    %129 = vmatpush.msra.mxu0 0.0
    %130 = vmatpush.msra.mxu0 0.0
    %131 = vmatpush.msra.mxu0 0.0
    %132 = vmatpush.msra.mxu0 0.0
    %133 = vmatpush.msra.mxu0 0.0
    %134 = vmatpush.msra.mxu0 0.0
    %135 = vmatpush.msra.mxu0 %v62
    %136 = vmatpush.msra.mxu0 %v58
    %137 = vmatpush.msra.mxu0 %v54
    %138 = vmatpush.msra.mxu0 %v50
    %139 = vmatpush.msra.mxu0 %v46
    %140 = vmatpush.msra.mxu0 %v42
    %141 = vmatpush.msra.mxu0 %v38
    %142 = vmatpush.msra.mxu0 %v34
    %143 = vmatmul.f32.gmra.mxu0 %v76
    %v144 = vpop.f32.mrf.mxu0
    %v145 = vadd.f32 %v68, %v144
    %146 = vmatmul.f32.gmra.mxu0 %v79
    %v147 = vpop.f32.mrf.mxu0
    %v148 = vadd.f32 %v68, %v147
    %149 = vdwg.mxu0
    %150 = vmatpush.msra.mxu0 0.0
    %151 = vmatpush.msra.mxu0 0.0
    %152 = vmatpush.msra.mxu0 0.0
    %153 = vmatpush.msra.mxu0 0.0
    %154 = vmatpush.msra.mxu0 0.0
    %155 = vmatpush.msra.mxu0 0.0
    %156 = vmatpush.msra.mxu0 0.0
    %157 = vmatpush.msra.mxu0 0.0
    %158 = vmatpush.msra.mxu0 %v63
    %159 = vmatpush.msra.mxu0 %v59
    %160 = vmatpush.msra.mxu0 %v55
    %161 = vmatpush.msra.mxu0 %v51
    %162 = vmatpush.msra.mxu0 %v47
    %163 = vmatpush.msra.mxu0 %v43
    %164 = vmatpush.msra.mxu0 %v39
    %165 = vmatpush.msra.mxu0 %v35
    %166 = vmatmul.f32.gmra.mxu0 %v76
    %v167 = vpop.f32.mrf.mxu0
    %v168 = vadd.f32 %v69, %v167
    %169 = vmatmul.f32.gmra.mxu0 %v79
    %v170 = vpop.f32.mrf.mxu0
    %v171 = vadd.f32 %v69, %v170
    %172 = vdwg.mxu0
    %173 = vst [vmem:[%s3] sm:$0xff] %v99
    %174 = vst [vmem:[%s3 + $0x8] sm:$0xff] %v122
    %175 = vst [vmem:[%s3 + $0x10] sm:$0xff] %v145
    %176 = vst [vmem:[%s3 + $0x18] sm:$0xff] %v168
    %177 = vst [vmem:[%s3 + $0x20] sm:$0xff] %v102
    %178 = vst [vmem:[%s3 + $0x28] sm:$0xff] %v125
    %179 = vst [vmem:[%s3 + $0x30] sm:$0xff] %v148
    %180 = vst [vmem:[%s3 + $0x38] sm:$0xff] %v171
    // Predicated region
    $region18: #{decoder_forward.6} parent=1 // pred_check
      _
    $region19: #{decoder_forward.6} parent=1 // pred_check_branch
      %182 = sbr.rel (0) target = $region21
    $region20: #{decoder_forward.6} parent=1 // pred_region
      _
    $region21: #{decoder_forward.6} parent=1 // pred_fallthru
      _
    // Predicated region
    $region22: #{decoder_forward.6} parent=1 // pred_check
      _
    $region23: #{decoder_forward.6} parent=1 // pred_check_branch
      %184 = sbr.rel (0) target = $region25
    $region24: #{decoder_forward.6} parent=1 // pred_region
      _
    $region25: #{decoder_forward.6} parent=1 // pred_fallthru
      _
    %185 = vsyncpa [#allocation3], 1

// kernel: decoder_forward.5
$region0: #{decoder_forward.5}
  #allocation0 [shape = 'u32[]', space=smem, size = 0x4, offset = 0x4, fixed_abs, tag = 'smem constant byte address 0x4 - core index']
  #allocation1 [shape = 'u32[72,128]{1,0:T(1,128)}', space=vmem, size = 0x9000, scoped, tag = 'internal scratch']
  %s0 = inlined_call_operand.vmem [shape: f32[80,64], index: 0, kind: input, shape index: {}]
  %s1 = inlined_call_operand.vmem [shape: f32[64,128], index: 1, kind: input, shape index: {}]
  %s2 = inlined_call_operand.hbm [shape: f32[1,128], index: 2, kind: input, shape index: {}]
  %s3 = inlined_call_operand.vmem [shape: f32[80,128], index: 3, kind: output, shape index: {}]
  %s4 = sld [smem:[#allocation0]]
  $region26: #{decoder_forward.5} parent=0
    _
  %s6 = ssub.s32 1, %s4
  %s7 = scalar_select 0, %s6, %s4
  $region1: #{decoder_forward.5} parent=0
    #allocation2 [shape = 'u8[512]{0}', space=vmem, size = 0x400, scoped, tag = 'input window, operand 2, single buffered']
    #allocation3 [shape = 's32[1]{0}', space=sflag, size = 0x4, scoped, tag = 'scoped memory for decoder_forward.5']
    %8 = vsyncpa [#allocation3], 0
    // Predicated region
    $region2: #{decoder_forward.5} parent=1 // pred_check
      _
    $region3: #{decoder_forward.5} parent=1 // pred_check_branch
      %10 = sbr.rel (0) target = $region5
    $region4: #{decoder_forward.5} parent=1 // pred_region
      _
    $region5: #{decoder_forward.5} parent=1 // pred_fallthru
      _
    // Predicated region
    $region6: #{decoder_forward.5} parent=1 // pred_check
      _
    $region7: #{decoder_forward.5} parent=1 // pred_check_branch
      %12 = sbr.rel (0) target = $region9
    $region8: #{decoder_forward.5} parent=1 // pred_region
      _
    $region9: #{decoder_forward.5} parent=1 // pred_fallthru
      _
    // Predicated region
    $region10: #{decoder_forward.5} parent=1 // pred_check
      _
    $region11: #{decoder_forward.5} parent=1 // pred_check_branch
      %14 = sbr.rel (0) target = $region13
    $region12: #{decoder_forward.5} parent=1 // pred_region
      %16 = vsyncadd [#allocation3], 0
      %s18 = sshll.u32 %s2, 4
      %s19 = int_to_ptr.hbm [resolvable:$true] %s18
      %s20 = sshll.u32 [#allocation2], 4
      %s21 = int_to_ptr.vmem [resolvable:$true] %s20
      %23 = dma.hbm_to_vmem [thread:$0]  %s19, 16, %s21, [#allocation3]
    $region13: #{decoder_forward.5} parent=1 // pred_fallthru
      _
    // Predicated region
    $region14: #{decoder_forward.5} parent=1 // pred_check
      _
    $region15: #{decoder_forward.5} parent=1 // pred_check_branch
      %25 = sbr.rel (0) target = $region17
    $region16: #{decoder_forward.5} parent=1 // pred_region
      %27 = dma.done [#allocation3], 16
    $region17: #{decoder_forward.5} parent=1 // pred_fallthru
      _
    %v28 = vld [vmem:[%s0] sm:$0xff]
    %v29 = vld [vmem:[%s0 + $0x8] sm:$0xff]
    %v30 = vld [vmem:[%s0 + $0x10] sm:$0xff]
    %v31 = vld [vmem:[%s0 + $0x18] sm:$0xff]
    %v32 = vld [vmem:[%s0 + $0x20] sm:$0xff]
    %v33 = vld [vmem:[%s0 + $0x28] sm:$0xff]
    %v34 = vld [vmem:[%s0 + $0x30] sm:$0xff]
    %v35 = vld [vmem:[%s0 + $0x38] sm:$0xff]
    %v36 = vld [vmem:[%s0 + $0x40] sm:$0xff]
    %v37 = vld [vmem:[%s0 + $0x48] sm:$0xff]
    %v38 = vld [vmem:[%s1] sm:$0xff]
    %v39 = vld [vmem:[%s1 + $0x8] sm:$0xff]
    %v40 = vld [vmem:[%s1 + $0x10] sm:$0xff]
    %v41 = vld [vmem:[%s1 + $0x18] sm:$0xff]
    %v42 = vld [vmem:[%s1 + $0x20] sm:$0xff]
    %v43 = vld [vmem:[%s1 + $0x28] sm:$0xff]
    %v44 = vld [vmem:[%s1 + $0x30] sm:$0xff]
    %v45 = vld [vmem:[%s1 + $0x38] sm:$0xff]
    %v46 = vld [vmem:[#allocation2] sm:$0x1]
    %v48 = vperm.slane %v46, 0
    %vm50 = vcmask 523264
    %v52 = vsel %vm50, %v28, 0
    %v55 = vsel %vm50, %v29, 0
    %v58 = vsel %vm50, %v30, 0
    %v61 = vsel %vm50, %v31, 0
    %v64 = vsel %vm50, %v32, 0
    %v67 = vsel %vm50, %v33, 0
    %v70 = vsel %vm50, %v34, 0
    %v73 = vsel %vm50, %v35, 0
    %v76 = vsel %vm50, %v36, 0
    %v79 = vsel %vm50, %v37, 0
    %81 = vmatpush.msra.mxu0 0.0
    %82 = vmatpush.msra.mxu0 0.0
    %83 = vmatpush.msra.mxu0 0.0
    %84 = vmatpush.msra.mxu0 0.0
    %85 = vmatpush.msra.mxu0 0.0
    %86 = vmatpush.msra.mxu0 0.0
    %87 = vmatpush.msra.mxu0 0.0
    %88 = vmatpush.msra.mxu0 0.0
    %89 = vmatpush.msra.mxu0 %v45
    %90 = vmatpush.msra.mxu0 %v44
    %91 = vmatpush.msra.mxu0 %v43
    %92 = vmatpush.msra.mxu0 %v42
    %93 = vmatpush.msra.mxu0 %v41
    %94 = vmatpush.msra.mxu0 %v40
    %95 = vmatpush.msra.mxu0 %v39
    %96 = vmatpush.msra.mxu0 %v38
    %97 = vmatmul.f32.gmra.mxu0 %v52
    %v98 = vpop.f32.mrf.mxu0
    %v99 = vadd.f32 %v48, %v98
    %100 = vmatmul.f32.gmra.mxu0 %v55
    %v101 = vpop.f32.mrf.mxu0
    %v102 = vadd.f32 %v48, %v101
    %103 = vmatmul.f32.gmra.mxu0 %v58
    %v104 = vpop.f32.mrf.mxu0
    %v105 = vadd.f32 %v48, %v104
    %106 = vmatmul.f32.gmra.mxu0 %v61
    %v107 = vpop.f32.mrf.mxu0
    %v108 = vadd.f32 %v48, %v107
    %109 = vmatmul.f32.gmra.mxu0 %v64
    %v110 = vpop.f32.mrf.mxu0
    %v111 = vadd.f32 %v48, %v110
    %112 = vmatmul.f32.gmra.mxu0 %v67
    %v113 = vpop.f32.mrf.mxu0
    %v114 = vadd.f32 %v48, %v113
    %115 = vmatmul.f32.gmra.mxu0 %v70
    %v116 = vpop.f32.mrf.mxu0
    %v117 = vadd.f32 %v48, %v116
    %118 = vmatmul.f32.gmra.mxu0 %v73
    %v119 = vpop.f32.mrf.mxu0
    %v120 = vadd.f32 %v48, %v119
    %121 = vmatmul.f32.gmra.mxu0 %v76
    %v122 = vpop.f32.mrf.mxu0
    %v123 = vadd.f32 %v48, %v122
    %124 = vmatmul.f32.gmra.mxu0 %v79
    %v125 = vpop.f32.mrf.mxu0
    %v126 = vadd.f32 %v48, %v125
    %127 = vdwg.mxu0
    %v128 = vtanh.pop %v99
    %v129 = vtanh.pop %v102
    %v130 = vtanh.pop %v105
    %v131 = vtanh.pop %v108
    %v132 = vtanh.pop %v111
    %v133 = vtanh.pop %v114
    %v134 = vtanh.pop %v117
    %v135 = vtanh.pop %v120
    %v136 = vtanh.pop %v123
    %v137 = vtanh.pop %v126
    %138 = vst [vmem:[%s3] sm:$0xff] %v128
    %139 = vst [vmem:[%s3 + $0x8] sm:$0xff] %v129
    %140 = vst [vmem:[%s3 + $0x10] sm:$0xff] %v130
    %141 = vst [vmem:[%s3 + $0x18] sm:$0xff] %v131
    %142 = vst [vmem:[%s3 + $0x20] sm:$0xff] %v132
    %143 = vst [vmem:[%s3 + $0x28] sm:$0xff] %v133
    %144 = vst [vmem:[%s3 + $0x30] sm:$0xff] %v134
    %145 = vst [vmem:[%s3 + $0x38] sm:$0xff] %v135
    %146 = vst [vmem:[%s3 + $0x40] sm:$0xff] %v136
    %147 = vst [vmem:[%s3 + $0x48] sm:$0xff] %v137
    // Predicated region
    $region18: #{decoder_forward.5} parent=1 // pred_check
      _
    $region19: #{decoder_forward.5} parent=1 // pred_check_branch
      %149 = sbr.rel (0) target = $region21
    $region20: #{decoder_forward.5} parent=1 // pred_region
      _
    $region21: #{decoder_forward.5} parent=1 // pred_fallthru
      _
    // Predicated region
    $region22: #{decoder_forward.5} parent=1 // pred_check
      _
    $region23: #{decoder_forward.5} parent=1 // pred_check_branch
      %151 = sbr.rel (0) target = $region25
    $region24: #{decoder_forward.5} parent=1 // pred_region
      _
    $region25: #{decoder_forward.5} parent=1 // pred_fallthru
      _
    %152 = vsyncpa [#allocation3], 1

// kernel: decoder_forward.8
$region0: #{decoder_forward.8}
  #allocation0 [shape = 'u32[]', space=smem, size = 0x4, offset = 0x4, fixed_abs, tag = 'smem constant byte address 0x4 - core index']
  #allocation1 [shape = 'u32[72,128]{1,0:T(1,128)}', space=vmem, size = 0x9000, scoped, tag = 'internal scratch']
  %s0 = inlined_call_operand.vmem [shape: f32[2,16,128], index: 0, kind: input, shape index: {}]
  %s1 = inlined_call_operand.vmem [shape: f32[2,24,128], index: 1, kind: input, shape index: {}]
  %s2 = inlined_call_operand.vmem [shape: f32[384,128], index: 2, kind: input, shape index: {}]
  %s3 = inlined_call_operand.vmem [shape: f32[1,128], index: 3, kind: input, shape index: {}]
  %s4 = inlined_call_operand.vmem [shape: f32[384,128], index: 4, kind: input, shape index: {}]
  %s5 = inlined_call_operand.vmem [shape: f32[1,128], index: 5, kind: input, shape index: {}]
  %s6 = inlined_call_operand.vmem [shape: f32[2,16,128], index: 6, kind: output, shape index: {0}]
  %s7 = inlined_call_operand.vmem [shape: f32[2,24,128], index: 7, kind: output, shape index: {1}]
  %8 = xla_tuple %s6, %s7
  %s9 = sld [smem:[#allocation0]]
  $region65: #{decoder_forward.8} parent=0
    _
  %s11 = ssub.s32 1, %s9
  %s12 = scalar_select 0, %s11, %s9
  loop: start=0, step=1, limit=4
  $region2: #{decoder_forward.8} parent=0 // loop_pre_header
    _
  $region3: #{decoder_forward.8} parent=0 // loop_header
    %s14 = sphi 0, %s18
    %p15 = scmp.ge.s32.totalorder %s14, 4
    %s24 = sphi 0, %s26
    %s27 = sphi 0, %s24
    %s28 = sphi 0, %s27
    %s44 = sphi 0, %s28
    %s50 = sphi 0, %s52
    %s53 = sphi 0, %s50
    %s54 = sphi 0, %s53
    %s70 = sphi 0, %s54
    %s74 = sphi 0, %s74
    %s76 = sphi 0, %s74
    %s77 = sphi 0, %s76
    %s91 = sphi 0, %s77
    %s95 = sphi 0, %s95
    %s97 = sphi 0, %s95
    %s98 = sphi 0, %s97
    %s112 = sphi 0, %s98
    %s116 = sphi 0, %s116
    %s118 = sphi 0, %s116
    %s119 = sphi 0, %s118
    %s133 = sphi 0, %s119
    %s137 = sphi 0, %s137
    %s139 = sphi 0, %s137
    %s140 = sphi 0, %s139
    %s154 = sphi 0, %s140
    %s160 = sphi 0, %s162
    %s163 = sphi 0, %s160
    %s164 = sphi 0, %s163
    %s180 = sphi 0, %s164
    %s186 = sphi 0, %s188
    %s189 = sphi 0, %s186
    %s190 = sphi 0, %s189
    %s206 = sphi 0, %s190
  $region4: #{decoder_forward.8} parent=0 // loop_header_branch
    %17 = sbr.rel (%p15) target = $region8
  $region5: #{decoder_forward.8} parent=0 // loop_body
    %s19 = ssub.s32 %s14, 1
    %s20 = ssub.s32 %s14, 2
    %s21 = sadd.s32 %s14, 1
    %s22 = ssub.s32 %s14, %s21
    %p23 = scmp.eq.s32.totalorder %s22, 0
    %s25 = sadd.s32 %s24, 1
    %s26 = scalar_select %p23, %s24, %s25
    %p29 = pneg %p23
    %p30 = scmp.eq.s32.totalorder %s14, 1
    %p31 = por %p29, %p30
    %p32 = scmp.ne.s32.totalorder %s24, %s27
    %p33 = scmp.eq.s32.totalorder %s14, 0
    %p34 = por %p32, %p33
    %p35 = scmp.ne.s32.totalorder %s24, %s27
    %p36 = scmp.eq.s32.totalorder %s19, 1
    %p37 = por %p35, %p36
    %p38 = scmp.ne.s32.totalorder %s27, %s28
    %p39 = scmp.eq.s32.totalorder %s19, 0
    %p40 = por %p38, %p39
    %p41 = scmp.ne.s32.totalorder %s27, %s28
    %p42 = scmp.eq.s32.totalorder %s20, 1
    %p43 = por %p41, %p42
    %p45 = scmp.ne.s32.totalorder %s28, %s44
    %p46 = scmp.eq.s32.totalorder %s20, 0
    %p47 = por %p45, %p46
    %s48 = ssub.s32 %s14, %s21
    %p49 = scmp.eq.s32.totalorder %s48, 0
    %s51 = sadd.s32 %s50, 1
    %s52 = scalar_select %p49, %s50, %s51
    %p55 = pneg %p49
    %p56 = scmp.eq.s32.totalorder %s14, 1
    %p57 = por %p55, %p56
    %p58 = scmp.ne.s32.totalorder %s50, %s53
    %p59 = scmp.eq.s32.totalorder %s14, 0
    %p60 = por %p58, %p59
    %p61 = scmp.ne.s32.totalorder %s50, %s53
    %p62 = scmp.eq.s32.totalorder %s19, 1
    %p63 = por %p61, %p62
    %p64 = scmp.ne.s32.totalorder %s53, %s54
    %p65 = scmp.eq.s32.totalorder %s19, 0
    %p66 = por %p64, %p65
    %p67 = scmp.ne.s32.totalorder %s53, %s54
    %p68 = scmp.eq.s32.totalorder %s20, 1
    %p69 = por %p67, %p68
    %p71 = scmp.ne.s32.totalorder %s54, %s70
    %p72 = scmp.eq.s32.totalorder %s20, 0
    %p73 = por %p71, %p72
    %s75 = sadd.s32 %s74, 1
    %p78 = scmp.eq.s32.totalorder %s14, 1
    %p79 = scmp.ne.s32.totalorder %s74, %s76
    %p80 = scmp.eq.s32.totalorder %s14, 0
    %p81 = por %p79, %p80
    %p82 = scmp.ne.s32.totalorder %s74, %s76
    %p83 = scmp.eq.s32.totalorder %s19, 1
    %p84 = por %p82, %p83
    %p85 = scmp.ne.s32.totalorder %s76, %s77
    %p86 = scmp.eq.s32.totalorder %s19, 0
    %p87 = por %p85, %p86
    %p88 = scmp.ne.s32.totalorder %s76, %s77
    %p89 = scmp.eq.s32.totalorder %s20, 1
    %p90 = por %p88, %p89
    %p92 = scmp.ne.s32.totalorder %s77, %s91
    %p93 = scmp.eq.s32.totalorder %s20, 0
    %p94 = por %p92, %p93
    %s96 = sadd.s32 %s95, 1
    %p99 = scmp.eq.s32.totalorder %s14, 1
    %p100 = scmp.ne.s32.totalorder %s95, %s97
    %p101 = scmp.eq.s32.totalorder %s14, 0
    %p102 = por %p100, %p101
    %p103 = scmp.ne.s32.totalorder %s95, %s97
    %p104 = scmp.eq.s32.totalorder %s19, 1
    %p105 = por %p103, %p104
    %p106 = scmp.ne.s32.totalorder %s97, %s98
    %p107 = scmp.eq.s32.totalorder %s19, 0
    %p108 = por %p106, %p107
    %p109 = scmp.ne.s32.totalorder %s97, %s98
    %p110 = scmp.eq.s32.totalorder %s20, 1
    %p111 = por %p109, %p110
    %p113 = scmp.ne.s32.totalorder %s98, %s112
    %p114 = scmp.eq.s32.totalorder %s20, 0
    %p115 = por %p113, %p114
    %s117 = sadd.s32 %s116, 1
    %p120 = scmp.eq.s32.totalorder %s14, 1
    %p121 = scmp.ne.s32.totalorder %s116, %s118
    %p122 = scmp.eq.s32.totalorder %s14, 0
    %p123 = por %p121, %p122
    %p124 = scmp.ne.s32.totalorder %s116, %s118
    %p125 = scmp.eq.s32.totalorder %s19, 1
    %p126 = por %p124, %p125
    %p127 = scmp.ne.s32.totalorder %s118, %s119
    %p128 = scmp.eq.s32.totalorder %s19, 0
    %p129 = por %p127, %p128
    %p130 = scmp.ne.s32.totalorder %s118, %s119
    %p131 = scmp.eq.s32.totalorder %s20, 1
    %p132 = por %p130, %p131
    %p134 = scmp.ne.s32.totalorder %s119, %s133
    %p135 = scmp.eq.s32.totalorder %s20, 0
    %p136 = por %p134, %p135
    %s138 = sadd.s32 %s137, 1
    %p141 = scmp.eq.s32.totalorder %s14, 1
    %p142 = scmp.ne.s32.totalorder %s137, %s139
    %p143 = scmp.eq.s32.totalorder %s14, 0
    %p144 = por %p142, %p143
    %p145 = scmp.ne.s32.totalorder %s137, %s139
    %p146 = scmp.eq.s32.totalorder %s19, 1
    %p147 = por %p145, %p146
    %p148 = scmp.ne.s32.totalorder %s139, %s140
    %p149 = scmp.eq.s32.totalorder %s19, 0
    %p150 = por %p148, %p149
    %p151 = scmp.ne.s32.totalorder %s139, %s140
    %p152 = scmp.eq.s32.totalorder %s20, 1
    %p153 = por %p151, %p152
    %p155 = scmp.ne.s32.totalorder %s140, %s154
    %p156 = scmp.eq.s32.totalorder %s20, 0
    %p157 = por %p155, %p156
    %s158 = ssub.s32 %s14, %s21
    %p159 = scmp.eq.s32.totalorder %s158, 0
    %s161 = sadd.s32 %s160, 1
    %s162 = scalar_select %p159, %s160, %s161
    %p165 = pneg %p159
    %p166 = scmp.eq.s32.totalorder %s14, 1
    %p167 = por %p165, %p166
    %p168 = scmp.ne.s32.totalorder %s160, %s163
    %p169 = scmp.eq.s32.totalorder %s14, 0
    %p170 = por %p168, %p169
    %p171 = scmp.ne.s32.totalorder %s160, %s163
    %p172 = scmp.eq.s32.totalorder %s19, 1
    %p173 = por %p171, %p172
    %p174 = scmp.ne.s32.totalorder %s163, %s164
    %p175 = scmp.eq.s32.totalorder %s19, 0
    %p176 = por %p174, %p175
    %p177 = scmp.ne.s32.totalorder %s163, %s164
    %p178 = scmp.eq.s32.totalorder %s20, 1
    %p179 = por %p177, %p178
    %p181 = scmp.ne.s32.totalorder %s164, %s180
    %p182 = scmp.eq.s32.totalorder %s20, 0
    %p183 = por %p181, %p182
    %s184 = ssub.s32 %s14, %s21
    %p185 = scmp.eq.s32.totalorder %s184, 0
    %s187 = sadd.s32 %s186, 1
    %s188 = scalar_select %p185, %s186, %s187
    %p191 = pneg %p185
    %p192 = scmp.eq.s32.totalorder %s14, 1
    %p193 = por %p191, %p192
    %p194 = scmp.ne.s32.totalorder %s186, %s189
    %p195 = scmp.eq.s32.totalorder %s14, 0
    %p196 = por %p194, %p195
    %p197 = scmp.ne.s32.totalorder %s186, %s189
    %p198 = scmp.eq.s32.totalorder %s19, 1
    %p199 = por %p197, %p198
    %p200 = scmp.ne.s32.totalorder %s189, %s190
    %p201 = scmp.eq.s32.totalorder %s19, 0
    %p202 = por %p200, %p201
    %p203 = scmp.ne.s32.totalorder %s189, %s190
    %p204 = scmp.eq.s32.totalorder %s20, 1
    %p205 = por %p203, %p204
    %p207 = scmp.ne.s32.totalorder %s190, %s206
    %p208 = scmp.eq.s32.totalorder %s20, 0
    %p209 = por %p207, %p208
    %p210 = scmp.le.s32.totalorder 1, %s14
    %p211 = scmp.lt.s32.totalorder %s14, 3
    %p212 = pnand %p210, %p211
    %p213 = pneg %p212
    // Predicated region
    $region9: #{decoder_forward.8} parent=5 // pred_check
      _
    $region10: #{decoder_forward.8} parent=5 // pred_check_branch
      %215 = sbr.rel (%p212) target = $region12
    $region11: #{decoder_forward.8} parent=5 // pred_region
      %s216 = ssub.s32 %s14, 1
      // Predicated region
      $region13: #{decoder_forward.8} parent=11 // pred_check
        %p217 = pneg %p87
      $region14: #{decoder_forward.8} parent=11 // pred_check_branch
        %219 = sbr.rel (%p217) target = $region16
      $region15: #{decoder_forward.8} parent=11 // pred_region
        _
      $region16: #{decoder_forward.8} parent=11 // pred_fallthru
        _
      // Predicated region
      $region17: #{decoder_forward.8} parent=11 // pred_check
        %p220 = pneg %p108
      $region18: #{decoder_forward.8} parent=11 // pred_check_branch
        %222 = sbr.rel (%p220) target = $region20
      $region19: #{decoder_forward.8} parent=11 // pred_region
        _
      $region20: #{decoder_forward.8} parent=11 // pred_fallthru
        _
      // Predicated region
      $region21: #{decoder_forward.8} parent=11 // pred_check
        %p223 = pneg %p129
      $region22: #{decoder_forward.8} parent=11 // pred_check_branch
        %225 = sbr.rel (%p223) target = $region24
      $region23: #{decoder_forward.8} parent=11 // pred_region
        _
      $region24: #{decoder_forward.8} parent=11 // pred_fallthru
        _
      // Predicated region
      $region25: #{decoder_forward.8} parent=11 // pred_check
        %p226 = pneg %p150
      $region26: #{decoder_forward.8} parent=11 // pred_check_branch
        %228 = sbr.rel (%p226) target = $region28
      $region27: #{decoder_forward.8} parent=11 // pred_region
        _
      $region28: #{decoder_forward.8} parent=11 // pred_fallthru
        _
    $region12: #{decoder_forward.8} parent=5 // pred_fallthru
      _
    %p229 = scmp.lt.s32.totalorder %s14, 2
    // Predicated region
    $region29: #{decoder_forward.8} parent=5 // pred_check
      %p230 = pneg %p229
    $region30: #{decoder_forward.8} parent=5 // pred_check_branch
      %232 = sbr.rel (%p230) target = $region32
    $region31: #{decoder_forward.8} parent=5 // pred_region
      // Predicated region
      $region33: #{decoder_forward.8} parent=31 // pred_check
        %p233 = pneg %p34
      $region34: #{decoder_forward.8} parent=31 // pred_check_branch
        %235 = sbr.rel (%p233) target = $region36
      $region35: #{decoder_forward.8} parent=31 // pred_region
        %p236 = scmp.lt.s32.totalorder %s14, 1
        %s237 = scalar_select %p236, %s14, 1
        %s238 = smul.addr %s237, 2
        %s239 = smul.addr %s238, 8
        %s240 = scalar_lea.vmem %s0, %s239
      $region36: #{decoder_forward.8} parent=31 // pred_fallthru
        _
      // Predicated region
      $region37: #{decoder_forward.8} parent=31 // pred_check
        %p241 = pneg %p60
      $region38: #{decoder_forward.8} parent=31 // pred_check_branch
        %243 = sbr.rel (%p241) target = $region40
      $region39: #{decoder_forward.8} parent=31 // pred_region
        %p244 = scmp.lt.s32.totalorder %s14, 1
        %s245 = scalar_select %p244, %s14, 1
        %s246 = smul.addr %s245, 3
        %s247 = smul.addr %s246, 8
        %s248 = scalar_lea.vmem %s1, %s247
      $region40: #{decoder_forward.8} parent=31 // pred_fallthru
        _
    $region32: #{decoder_forward.8} parent=5 // pred_fallthru
      _
    %p249 = scmp.le.s32.totalorder 1, %s14
    %p250 = scmp.lt.s32.totalorder %s14, 3
    %p251 = pnand %p249, %p250
    %p252 = pneg %p251
    // Predicated region
    $region41: #{decoder_forward.8} parent=5 // pred_check
      _
    $region42: #{decoder_forward.8} parent=5 // pred_check_branch
      %254 = sbr.rel (%p251) target = $region44
    $region43: #{decoder_forward.8} parent=5 // pred_region
      %s255 = ssub.s32 %s14, 1
      %p256 = scmp.lt.s32.totalorder %s19, 1
      %s257 = scalar_select %p256, %s19, 1
      %s258 = smul.addr %s257, 2
      %s259 = smul.addr %s258, 8
      %s260 = scalar_lea.vmem %s0, %s259
      %p261 = pneg %p40
      %p262 = pneg %p37
      %p263 = scmp.lt.s32.totalorder %s19, 1
      %s264 = scalar_select %p263, %s19, 1
      %s265 = smul.addr %s264, 3
      %s266 = smul.addr %s265, 8
      %s267 = scalar_lea.vmem %s1, %s266
      %p268 = pneg %p66
      %p269 = pneg %p63
      %p270 = pneg %p87
      %p271 = pneg %p84
      %p272 = pneg %p108
      %p273 = pneg %p105
      %p274 = pneg %p129
      %p275 = pneg %p126
      %p276 = pneg %p150
      %p277 = pneg %p147
      %p278 = pneg %p176
      %p279 = pneg %p173
      %p280 = scmp.lt.s32.totalorder %s19, 1
      %s281 = scalar_select %p280, %s19, 1
      %s282 = smul.addr %s281, 2
      %s283 = smul.addr %s282, 8
      %s284 = scalar_lea.vmem %s6, %s283
      %p285 = pneg %p202
      %p286 = pneg %p199
      %p287 = scmp.lt.s32.totalorder %s19, 1
      %s288 = scalar_select %p287, %s19, 1
      %s289 = smul.addr %s288, 3
      %s290 = smul.addr %s289, 8
      %s291 = scalar_lea.vmem %s7, %s290
      %p292 = scmp.lt.s32.totalorder %s19, 1
      %s293 = scalar_select %p292, %s19, 1
      %s294 = smul.addr %s293, 2
      %s295 = smul.addr %s294, 8
      %s296 = scalar_lea.vmem %s0, %s295
      %p297 = scmp.lt.s32.totalorder %s19, 1
      %s298 = scalar_select %p297, %s19, 1
      %s299 = smul.addr %s298, 3
      %s300 = smul.addr %s299, 8
      %s301 = scalar_lea.vmem %s1, %s300
      %p302 = scmp.lt.s32.totalorder %s19, 1
      %s303 = scalar_select %p302, %s19, 1
      %s304 = smul.addr %s303, 2
      %s305 = smul.addr %s304, 8
      %s306 = scalar_lea.vmem %s6, %s305
      %p307 = scmp.lt.s32.totalorder %s19, 1
      %s308 = scalar_select %p307, %s19, 1
      %s309 = smul.addr %s308, 3
      %s310 = smul.addr %s309, 8
      %s311 = scalar_lea.vmem %s7, %s310
      %v312 = vld [vmem:[%s296] sm:$0xff]
      %v313 = vld [vmem:[%s296 + $0x8] sm:$0xff]
      %v314 = vld [vmem:[%s301] sm:$0xff]
      %v315 = vld [vmem:[%s301 + $0x8] sm:$0xff]
      %v316 = vld [vmem:[%s301 + $0x10] sm:$0xff]
      %317 = vmatpush.xpose.msra.mxu0 0.0
      %318 = vmatpush.xpose.msra.mxu0 0.0
      %319 = vmatpush.xpose.msra.mxu0 0.0
      %320 = vmatpush.xpose.msra.mxu0 0.0
      %321 = vmatpush.xpose.msra.mxu0 0.0
      %322 = vmatpush.xpose.msra.mxu0 0.0
      %323 = vmatpush.xpose.msra.mxu0 0.0
      %324 = vmatpush.xpose.msra.mxu0 0.0
      %325 = vmatpush.xpose.msra.mxu0 0.0
      %326 = vmatpush.xpose.msra.mxu0 0.0
      %327 = vmatpush.xpose.msra.mxu0 0.0
      %328 = vmatpush.xpose.msra.mxu0 0.0
      %329 = vmatpush.xpose.msra.mxu0 0.0
      %330 = vmatpush.xpose.msra.mxu0 %v316
      %331 = vmatpush.xpose.msra.mxu0 %v315
      %332 = vmatpush.xpose.msra.mxu0 %v314
      %333 = vmatmul.f32.gmra.mxu0 %v312
      %v334 = vpop.f32.mrf.mxu0
      %v335 = vadd.f32 0.0, %v334
      %336 = vmatmul.f32.gmra.mxu0 %v313
      %v337 = vpop.f32.mrf.mxu0
      %v338 = vadd.f32 0.0, %v337
      %339 = vdwg.mxu0
      %vm340 = vcmask 195584
      %v341 = vsel %vm340, %v335, -inf
      %342 = vmax.xlane.f32.xlu0 %v341
      %v343 = vpop.xlane.xlu0 %342
      %v344 = vsel %vm340, %v338, -inf
      %345 = vmax.xlane.f32.xlu0 %v344
      %v346 = vpop.xlane.xlu0 %345
      %v347 = vsub.f32 %v335, %v343
      %v348 = vsub.f32 %v338, %v346
      %v349 = vmul.f32 %v347, 1.442695
      %v350 = vpow.pop %v349
      %v351 = vmul.f32 %v348, 1.442695
      %v352 = vpow.pop %v351
      %v353 = vsel %vm340, %v350, 0.0
      %354 = vadd.xlane.f32.xlu0 %v353
      %v355 = vpop.xlane.xlu0 %354
      %v356 = vsel %vm340, %v352, 0.0
      %357 = vadd.xlane.f32.xlu0 %v356
      %v358 = vpop.xlane.xlu0 %357
      %v359 = vrcp.pop %v355
      %v360 = vmul.f32 %v355, %v359
      %v361 = vsub.f32 1.0, %v360
      %v362 = vmul.f32 %v359, %v361
      %v363 = vadd.f32 %v359, %v362
      %vm364 = vweird.f32 %v355
      %vm365 = vweird.f32 %v359
      %vm366 = vmor %vm364, %vm365
      %v367 = vsel %vm366, %v359, %v363
      %v368 = vand.u32 2147483647, %v355
      %vm369 = vcmp.eq.f32.partialorder %v368, 8.507059e+37
      %v370 = vand.u32 %v355, 2147483648
      %v371 = vor.u32 1.1754944e-38, %v370
      %v372 = vsel %vm369, %v371, %v367
      %v373 = vmul.f32 %v350, %v372
      %v374 = vrcp.pop %v358
      %v375 = vmul.f32 %v358, %v374
      %v376 = vsub.f32 1.0, %v375
      %v377 = vmul.f32 %v374, %v376
      %v378 = vadd.f32 %v374, %v377
      %vm379 = vweird.f32 %v358
      %vm380 = vweird.f32 %v374
      %vm381 = vmor %vm379, %vm380
      %v382 = vsel %vm381, %v374, %v378
      %v383 = vand.u32 2147483647, %v358
      %vm384 = vcmp.eq.f32.partialorder %v383, 8.507059e+37
      %v385 = vand.u32 %v358, 2147483648
      %v386 = vor.u32 1.1754944e-38, %v385
      %v387 = vsel %vm384, %v386, %v382
      %v388 = vmul.f32 %v352, %v387
      %v389 = vmax.f32 %v341, %v344
      %v390 = vrot.slane %v389, 4
      %v391 = vmax.f32 %v389, %v390
      %v392 = vrot.slane %v391, 2
      %v393 = vmax.f32 %v391, %v392
      %v394 = vrot.slane %v393, 1
      %v395 = vmax.f32 %v393, %v394
      %v396 = vsub.f32 %v335, %v395
      %v397 = vsub.f32 %v338, %v395
      %v398 = vmul.f32 %v396, 1.442695
      %v399 = vpow.pop %v398
      %v400 = vmul.f32 %v397, 1.442695
      %v401 = vpow.pop %v400
      %v402 = vsel %vm340, %v399, 0.0
      %v403 = vsel %vm340, %v401, 0.0
      %v404 = vadd.f32 %v402, %v403
      %v405 = vrot.slane %v404, 4
      %v406 = vadd.f32 %v404, %v405
      %v407 = vrot.slane %v406, 2
      %v408 = vadd.f32 %v406, %v407
      %v409 = vrot.slane %v408, 1
      %v410 = vadd.f32 %v408, %v409
      %v411 = vrcp.pop %v410
      %v412 = vmul.f32 %v410, %v411
      %v413 = vsub.f32 1.0, %v412
      %v414 = vmul.f32 %v411, %v413
      %v415 = vadd.f32 %v411, %v414
      %vm416 = vweird.f32 %v410
      %vm417 = vweird.f32 %v411
      %vm418 = vmor %vm416, %vm417
      %v419 = vsel %vm418, %v411, %v415
      %v420 = vand.u32 2147483647, %v410
      %vm421 = vcmp.eq.f32.partialorder %v420, 8.507059e+37
      %v422 = vand.u32 %v410, 2147483648
      %v423 = vor.u32 1.1754944e-38, %v422
      %v424 = vsel %vm421, %v423, %v419
      %v425 = vmul.f32 %v399, %v424
      %v426 = vmul.f32 %v401, %v424
      %v428 = vsel %vm340, %v373, 0
      %v431 = vsel %vm340, %v388, 0
      %433 = vmatpush.msra.mxu0 0.0
      %434 = vmatpush.msra.mxu0 0.0
      %435 = vmatpush.msra.mxu0 0.0
      %436 = vmatpush.msra.mxu0 0.0
      %437 = vmatpush.msra.mxu0 0.0
      %438 = vmatpush.msra.mxu0 0.0
      %439 = vmatpush.msra.mxu0 0.0
      %440 = vmatpush.msra.mxu0 0.0
      %441 = vmatpush.msra.mxu0 0.0
      %442 = vmatpush.msra.mxu0 0.0
      %443 = vmatpush.msra.mxu0 0.0
      %444 = vmatpush.msra.mxu0 0.0
      %445 = vmatpush.msra.mxu0 0.0
      %446 = vmatpush.msra.mxu0 %v316
      %447 = vmatpush.msra.mxu0 %v315
      %448 = vmatpush.msra.mxu0 %v314
      %449 = vmatmul.f32.gmra.mxu0 %v428
      %v450 = vpop.f32.mrf.mxu0
      %v451 = vadd.f32 0.0, %v450
      %452 = vmatmul.f32.gmra.mxu0 %v431
      %v453 = vpop.f32.mrf.mxu0
      %v454 = vadd.f32 0.0, %v453
      %455 = vdwg.mxu0
      %456 = vxpose.xlu0.b32.start [1/16] %v425, 128
      %457 = vxpose.xlu0.b32.cont [2/16] %v426, 128
      %458 = vxpose.xlu0.b32.cont [3/16] 0.0, 128
      %459 = vxpose.xlu0.b32.cont [4/16] 0.0, 128
      %460 = vxpose.xlu0.b32.cont [5/16] 0.0, 128
      %461 = vxpose.xlu0.b32.cont [6/16] 0.0, 128
      %462 = vxpose.xlu0.b32.cont [7/16] 0.0, 128
      %463 = vxpose.xlu0.b32.cont [8/16] 0.0, 128
      %464 = vxpose.xlu0.b32.cont [9/16] 0.0, 128
      %465 = vxpose.xlu0.b32.cont [10/16] 0.0, 128
      %466 = vxpose.xlu0.b32.cont [11/16] 0.0, 128
      %467 = vxpose.xlu0.b32.cont [12/16] 0.0, 128
      %468 = vxpose.xlu0.b32.cont [13/16] 0.0, 128
      %469 = vxpose.xlu0.b32.cont [14/16] 0.0, 128
      %470 = vxpose.xlu0.b32.cont [15/16] 0.0, 128
      %471 = vxpose.xlu0.b32.end [16/16] 0.0, 128
      %v472 = vpop.trf.xlu0
      %v473 = vpop.trf.xlu0
      %v474 = vpop.trf.xlu0
      %v475 = vpop.trf.xlu0
      %v476 = vpop.trf.xlu0
      %v477 = vpop.trf.xlu0
      %v478 = vpop.trf.xlu0
      %v479 = vpop.trf.xlu0
      %v480 = vpop.trf.xlu0
      %v481 = vpop.trf.xlu0
      %v482 = vpop.trf.xlu0
      %v483 = vpop.trf.xlu0
      %v484 = vpop.trf.xlu0
      %v485 = vpop.trf.xlu0
      %v486 = vpop.trf.xlu0
      %v487 = vpop.trf.xlu0
      %vm488 = vcmask 130048
      %v490 = vsel %vm488, %v472, 0
      %v493 = vsel %vm488, %v473, 0
      %v496 = vsel %vm488, %v474, 0
      %498 = vmatpush.msra.mxu0 0.0
      %499 = vmatpush.msra.mxu0 0.0
      %500 = vmatpush.msra.mxu0 0.0
      %501 = vmatpush.msra.mxu0 0.0
      %502 = vmatpush.msra.mxu0 0.0
      %503 = vmatpush.msra.mxu0 0.0
      %504 = vmatpush.msra.mxu0 0.0
      %505 = vmatpush.msra.mxu0 0.0
      %506 = vmatpush.msra.mxu0 0.0
      %507 = vmatpush.msra.mxu0 0.0
      %508 = vmatpush.msra.mxu0 0.0
      %509 = vmatpush.msra.mxu0 0.0
      %510 = vmatpush.msra.mxu0 0.0
      %511 = vmatpush.msra.mxu0 0.0
      %512 = vmatpush.msra.mxu0 %v313
      %513 = vmatpush.msra.mxu0 %v312
      %514 = vmatmul.f32.gmra.mxu0 %v490
      %v515 = vpop.f32.mrf.mxu0
      %v516 = vadd.f32 0.0, %v515
      %517 = vmatmul.f32.gmra.mxu0 %v493
      %v518 = vpop.f32.mrf.mxu0
      %v519 = vadd.f32 0.0, %v518
      %520 = vmatmul.f32.gmra.mxu0 %v496
      %v521 = vpop.f32.mrf.mxu0
      %v522 = vadd.f32 0.0, %v521
      %523 = vdwg.mxu0
      %v524 = vmul.f32 %v312, %v451
      %v525 = vmul.f32 %v313, %v454
      %v526 = vld [vmem:[%s2] sm:$0xff]
      %v527 = vld [vmem:[%s2 + $0x8] sm:$0xff]
      %v528 = vld [vmem:[%s2 + $0x10] sm:$0xff]
      %v529 = vld [vmem:[%s2 + $0x18] sm:$0xff]
      %v530 = vld [vmem:[%s2 + $0x20] sm:$0xff]
      %v531 = vld [vmem:[%s2 + $0x28] sm:$0xff]
      %v532 = vld [vmem:[%s2 + $0x30] sm:$0xff]
      %v533 = vld [vmem:[%s2 + $0x38] sm:$0xff]
      %v534 = vld [vmem:[%s2 + $0x40] sm:$0xff]
      %v535 = vld [vmem:[%s2 + $0x48] sm:$0xff]
      %v536 = vld [vmem:[%s2 + $0x50] sm:$0xff]
      %v537 = vld [vmem:[%s2 + $0x58] sm:$0xff]
      %v538 = vld [vmem:[%s2 + $0x60] sm:$0xff]
      %v539 = vld [vmem:[%s2 + $0x68] sm:$0xff]
      %v540 = vld [vmem:[%s2 + $0x70] sm:$0xff]
      %v541 = vld [vmem:[%s2 + $0x78] sm:$0xff]
      %v542 = vld [vmem:[%s2 + $0x80] sm:$0xff]
      %v543 = vld [vmem:[%s2 + $0x88] sm:$0xff]
      %v544 = vld [vmem:[%s2 + $0x90] sm:$0xff]
      %v545 = vld [vmem:[%s2 + $0x98] sm:$0xff]
      %v546 = vld [vmem:[%s2 + $0xa0] sm:$0xff]
      %v547 = vld [vmem:[%s2 + $0xa8] sm:$0xff]
      %v548 = vld [vmem:[%s2 + $0xb0] sm:$0xff]
      %v549 = vld [vmem:[%s2 + $0xb8] sm:$0xff]
      %v550 = vld [vmem:[%s2 + $0xc0] sm:$0xff]
      %v551 = vld [vmem:[%s2 + $0xc8] sm:$0xff]
      %v552 = vld [vmem:[%s2 + $0xd0] sm:$0xff]
      %v553 = vld [vmem:[%s2 + $0xd8] sm:$0xff]
      %v554 = vld [vmem:[%s2 + $0xe0] sm:$0xff]
      %v555 = vld [vmem:[%s2 + $0xe8] sm:$0xff]
      %v556 = vld [vmem:[%s2 + $0xf0] sm:$0xff]
      %v557 = vld [vmem:[%s2 + $0xf8] sm:$0xff]
      %v558 = vld [vmem:[%s2 + $0x100] sm:$0xff]
      %v559 = vld [vmem:[%s2 + $0x108] sm:$0xff]
      %v560 = vld [vmem:[%s2 + $0x110] sm:$0xff]
      %v561 = vld [vmem:[%s2 + $0x118] sm:$0xff]
      %v562 = vld [vmem:[%s2 + $0x120] sm:$0xff]
      %v563 = vld [vmem:[%s2 + $0x128] sm:$0xff]
      %v564 = vld [vmem:[%s2 + $0x130] sm:$0xff]
      %v565 = vld [vmem:[%s2 + $0x138] sm:$0xff]
      %v566 = vld [vmem:[%s2 + $0x140] sm:$0xff]
      %v567 = vld [vmem:[%s2 + $0x148] sm:$0xff]
      %v568 = vld [vmem:[%s2 + $0x150] sm:$0xff]
      %v569 = vld [vmem:[%s2 + $0x158] sm:$0xff]
      %v570 = vld [vmem:[%s2 + $0x160] sm:$0xff]
      %v571 = vld [vmem:[%s2 + $0x168] sm:$0xff]
      %v572 = vld [vmem:[%s2 + $0x170] sm:$0xff]
      %v573 = vld [vmem:[%s2 + $0x178] sm:$0xff]
      %v574 = vld [vmem:[%s3] sm:$0x1]
      %v576 = vperm.slane %v574, 0
      %578 = vmatpush.msra.mxu0 %v541
      %579 = vmatpush.msra.mxu0 %v540
      %580 = vmatpush.msra.mxu0 %v539
      %581 = vmatpush.msra.mxu0 %v538
      %582 = vmatpush.msra.mxu0 %v537
      %583 = vmatpush.msra.mxu0 %v536
      %584 = vmatpush.msra.mxu0 %v535
      %585 = vmatpush.msra.mxu0 %v534
      %586 = vmatpush.msra.mxu0 %v533
      %587 = vmatpush.msra.mxu0 %v532
      %588 = vmatpush.msra.mxu0 %v531
      %589 = vmatpush.msra.mxu0 %v530
      %590 = vmatpush.msra.mxu0 %v529
      %591 = vmatpush.msra.mxu0 %v528
      %592 = vmatpush.msra.mxu0 %v527
      %593 = vmatpush.msra.mxu0 %v526
      %594 = vmatmul.f32.gmra.mxu0 %v312
      %v595 = vpop.f32.mrf.mxu0
      %v596 = vadd.f32 %v576, %v595
      %597 = vmatmul.f32.gmra.mxu0 %v313
      %v598 = vpop.f32.mrf.mxu0
      %v599 = vadd.f32 %v576, %v598
      %600 = vdwg.mxu0
      %601 = vmatpush.msra.mxu0 %v557
      %602 = vmatpush.msra.mxu0 %v556
      %603 = vmatpush.msra.mxu0 %v555
      %604 = vmatpush.msra.mxu0 %v554
      %605 = vmatpush.msra.mxu0 %v553
      %606 = vmatpush.msra.mxu0 %v552
      %607 = vmatpush.msra.mxu0 %v551
      %608 = vmatpush.msra.mxu0 %v550
      %609 = vmatpush.msra.mxu0 %v549
      %610 = vmatpush.msra.mxu0 %v548
      %611 = vmatpush.msra.mxu0 %v547
      %612 = vmatpush.msra.mxu0 %v546
      %613 = vmatpush.msra.mxu0 %v545
      %614 = vmatpush.msra.mxu0 %v544
      %615 = vmatpush.msra.mxu0 %v543
      %616 = vmatpush.msra.mxu0 %v542
      %617 = vmatmul.f32.gmra.mxu0 %v451
      %v618 = vpop.f32.mrf.mxu0
      %v619 = vadd.f32 %v596, %v618
      %620 = vmatmul.f32.gmra.mxu0 %v454
      %v621 = vpop.f32.mrf.mxu0
      %v622 = vadd.f32 %v599, %v621
      %623 = vdwg.mxu0
      %624 = vmatpush.msra.mxu0 %v573
      %625 = vmatpush.msra.mxu0 %v572
      %626 = vmatpush.msra.mxu0 %v571
      %627 = vmatpush.msra.mxu0 %v570
      %628 = vmatpush.msra.mxu0 %v569
      %629 = vmatpush.msra.mxu0 %v568
      %630 = vmatpush.msra.mxu0 %v567
      %631 = vmatpush.msra.mxu0 %v566
      %632 = vmatpush.msra.mxu0 %v565
      %633 = vmatpush.msra.mxu0 %v564
      %634 = vmatpush.msra.mxu0 %v563
      %635 = vmatpush.msra.mxu0 %v562
      %636 = vmatpush.msra.mxu0 %v561
      %637 = vmatpush.msra.mxu0 %v560
      %638 = vmatpush.msra.mxu0 %v559
      %639 = vmatpush.msra.mxu0 %v558
      %640 = vmatmul.f32.gmra.mxu0 %v524
      %v641 = vpop.f32.mrf.mxu0
      %v642 = vadd.f32 %v619, %v641
      %643 = vmatmul.f32.gmra.mxu0 %v525
      %v644 = vpop.f32.mrf.mxu0
      %v645 = vadd.f32 %v622, %v644
      %646 = vdwg.mxu0
      %v647 = vmul.f32 %v314, %v516
      %v648 = vmul.f32 %v315, %v519
      %v649 = vmul.f32 %v316, %v522
      %v650 = vld [vmem:[%s4] sm:$0xff]
      %v651 = vld [vmem:[%s4 + $0x8] sm:$0xff]
      %v652 = vld [vmem:[%s4 + $0x10] sm:$0xff]
      %v653 = vld [vmem:[%s4 + $0x18] sm:$0xff]
      %v654 = vld [vmem:[%s4 + $0x20] sm:$0xff]
      %v655 = vld [vmem:[%s4 + $0x28] sm:$0xff]
      %v656 = vld [vmem:[%s4 + $0x30] sm:$0xff]
      %v657 = vld [vmem:[%s4 + $0x38] sm:$0xff]
      %v658 = vld [vmem:[%s4 + $0x40] sm:$0xff]
      %v659 = vld [vmem:[%s4 + $0x48] sm:$0xff]
      %v660 = vld [vmem:[%s4 + $0x50] sm:$0xff]
      %v661 = vld [vmem:[%s4 + $0x58] sm:$0xff]
      %v662 = vld [vmem:[%s4 + $0x60] sm:$0xff]
      %v663 = vld [vmem:[%s4 + $0x68] sm:$0xff]
      %v664 = vld [vmem:[%s4 + $0x70] sm:$0xff]
      %v665 = vld [vmem:[%s4 + $0x78] sm:$0xff]
      %v666 = vld [vmem:[%s4 + $0x80] sm:$0xff]
      %v667 = vld [vmem:[%s4 + $0x88] sm:$0xff]
      %v668 = vld [vmem:[%s4 + $0x90] sm:$0xff]
      %v669 = vld [vmem:[%s4 + $0x98] sm:$0xff]
      %v670 = vld [vmem:[%s4 + $0xa0] sm:$0xff]
      %v671 = vld [vmem:[%s4 + $0xa8] sm:$0xff]
      %v672 = vld [vmem:[%s4 + $0xb0] sm:$0xff]
      %v673 = vld [vmem:[%s4 + $0xb8] sm:$0xff]
      %v674 = vld [vmem:[%s4 + $0xc0] sm:$0xff]
      %v675 = vld [vmem:[%s4 + $0xc8] sm:$0xff]
      %v676 = vld [vmem:[%s4 + $0xd0] sm:$0xff]
      %v677 = vld [vmem:[%s4 + $0xd8] sm:$0xff]
      %v678 = vld [vmem:[%s4 + $0xe0] sm:$0xff]
      %v679 = vld [vmem:[%s4 + $0xe8] sm:$0xff]
      %v680 = vld [vmem:[%s4 + $0xf0] sm:$0xff]
      %v681 = vld [vmem:[%s4 + $0xf8] sm:$0xff]
      %v682 = vld [vmem:[%s4 + $0x100] sm:$0xff]
      %v683 = vld [vmem:[%s4 + $0x108] sm:$0xff]
      %v684 = vld [vmem:[%s4 + $0x110] sm:$0xff]
      %v685 = vld [vmem:[%s4 + $0x118] sm:$0xff]
      %v686 = vld [vmem:[%s4 + $0x120] sm:$0xff]
      %v687 = vld [vmem:[%s4 + $0x128] sm:$0xff]
      %v688 = vld [vmem:[%s4 + $0x130] sm:$0xff]
      %v689 = vld [vmem:[%s4 + $0x138] sm:$0xff]
      %v690 = vld [vmem:[%s4 + $0x140] sm:$0xff]
      %v691 = vld [vmem:[%s4 + $0x148] sm:$0xff]
      %v692 = vld [vmem:[%s4 + $0x150] sm:$0xff]
      %v693 = vld [vmem:[%s4 + $0x158] sm:$0xff]
      %v694 = vld [vmem:[%s4 + $0x160] sm:$0xff]
      %v695 = vld [vmem:[%s4 + $0x168] sm:$0xff]
      %v696 = vld [vmem:[%s4 + $0x170] sm:$0xff]
      %v697 = vld [vmem:[%s4 + $0x178] sm:$0xff]
      %v698 = vld [vmem:[%s5] sm:$0x1]
      %v700 = vperm.slane %v698, 0
      %702 = vmatpush.msra.mxu0 %v665
      %703 = vmatpush.msra.mxu0 %v664
      %704 = vmatpush.msra.mxu0 %v663
      %705 = vmatpush.msra.mxu0 %v662
      %706 = vmatpush.msra.mxu0 %v661
      %707 = vmatpush.msra.mxu0 %v660
      %708 = vmatpush.msra.mxu0 %v659
      %709 = vmatpush.msra.mxu0 %v658
      %710 = vmatpush.msra.mxu0 %v657
      %711 = vmatpush.msra.mxu0 %v656
      %712 = vmatpush.msra.mxu0 %v655
      %713 = vmatpush.msra.mxu0 %v654
      %714 = vmatpush.msra.mxu0 %v653
      %715 = vmatpush.msra.mxu0 %v652
      %716 = vmatpush.msra.mxu0 %v651
      %717 = vmatpush.msra.mxu0 %v650
      %718 = vmatmul.f32.gmra.mxu0 %v314
      %v719 = vpop.f32.mrf.mxu0
      %v720 = vadd.f32 %v700, %v719
      %721 = vmatmul.f32.gmra.mxu0 %v315
      %v722 = vpop.f32.mrf.mxu0
      %v723 = vadd.f32 %v700, %v722
      %724 = vmatmul.f32.gmra.mxu0 %v316
      %v725 = vpop.f32.mrf.mxu0
      %v726 = vadd.f32 %v700, %v725
      %727 = vdwg.mxu0
      %728 = vmatpush.msra.mxu0 %v681
      %729 = vmatpush.msra.mxu0 %v680
      %730 = vmatpush.msra.mxu0 %v679
      %731 = vmatpush.msra.mxu0 %v678
      %732 = vmatpush.msra.mxu0 %v677
      %733 = vmatpush.msra.mxu0 %v676
      %734 = vmatpush.msra.mxu0 %v675
      %735 = vmatpush.msra.mxu0 %v674
      %736 = vmatpush.msra.mxu0 %v673
      %737 = vmatpush.msra.mxu0 %v672
      %738 = vmatpush.msra.mxu0 %v671
      %739 = vmatpush.msra.mxu0 %v670
      %740 = vmatpush.msra.mxu0 %v669
      %741 = vmatpush.msra.mxu0 %v668
      %742 = vmatpush.msra.mxu0 %v667
      %743 = vmatpush.msra.mxu0 %v666
      %744 = vmatmul.f32.gmra.mxu0 %v516
      %v745 = vpop.f32.mrf.mxu0
      %v746 = vadd.f32 %v720, %v745
      %747 = vmatmul.f32.gmra.mxu0 %v519
      %v748 = vpop.f32.mrf.mxu0
      %v749 = vadd.f32 %v723, %v748
      %750 = vmatmul.f32.gmra.mxu0 %v522
      %v751 = vpop.f32.mrf.mxu0
      %v752 = vadd.f32 %v726, %v751
      %753 = vdwg.mxu0
      %754 = vmatpush.msra.mxu0 %v697
      %755 = vmatpush.msra.mxu0 %v696
      %756 = vmatpush.msra.mxu0 %v695
      %757 = vmatpush.msra.mxu0 %v694
      %758 = vmatpush.msra.mxu0 %v693
      %759 = vmatpush.msra.mxu0 %v692
      %760 = vmatpush.msra.mxu0 %v691
      %761 = vmatpush.msra.mxu0 %v690
      %762 = vmatpush.msra.mxu0 %v689
      %763 = vmatpush.msra.mxu0 %v688
      %764 = vmatpush.msra.mxu0 %v687
      %765 = vmatpush.msra.mxu0 %v686
      %766 = vmatpush.msra.mxu0 %v685
      %767 = vmatpush.msra.mxu0 %v684
      %768 = vmatpush.msra.mxu0 %v683
      %769 = vmatpush.msra.mxu0 %v682
      %770 = vmatmul.f32.gmra.mxu0 %v647
      %v771 = vpop.f32.mrf.mxu0
      %v772 = vadd.f32 %v746, %v771
      %773 = vmatmul.f32.gmra.mxu0 %v648
      %v774 = vpop.f32.mrf.mxu0
      %v775 = vadd.f32 %v749, %v774
      %776 = vmatmul.f32.gmra.mxu0 %v649
      %v777 = vpop.f32.mrf.mxu0
      %v778 = vadd.f32 %v752, %v777
      %779 = vdwg.mxu0
      %780 = vst [vmem:[%s306] sm:$0xff] %v642
      %781 = vst [vmem:[%s306 + $0x8] sm:$0xff] %v645
      %782 = vst [vmem:[%s311] sm:$0xff] %v772
      %783 = vst [vmem:[%s311 + $0x8] sm:$0xff] %v775
      %784 = vst [vmem:[%s311 + $0x10] sm:$0xff] %v778
      %p785 = scmp.lt.s32.totalorder %s19, 1
      %s786 = scalar_select %p785, %s19, 1
      %s787 = smul.addr %s786, 2
      %s788 = smul.addr %s787, 8
      %s789 = scalar_lea.vmem %s6, %s788
      %p790 = scmp.lt.s32.totalorder %s19, 1
      %s791 = scalar_select %p790, %s19, 1
      %s792 = smul.addr %s791, 3
      %s793 = smul.addr %s792, 8
      %s794 = scalar_lea.vmem %s7, %s793
      // Predicated region
      $region45: #{decoder_forward.8} parent=43 // pred_check
        %p795 = pneg %p173
      $region46: #{decoder_forward.8} parent=43 // pred_check_branch
        %797 = sbr.rel (%p795) target = $region48
      $region47: #{decoder_forward.8} parent=43 // pred_region
        _
      $region48: #{decoder_forward.8} parent=43 // pred_fallthru
        _
      // Predicated region
      $region49: #{decoder_forward.8} parent=43 // pred_check
        %p798 = pneg %p199
      $region50: #{decoder_forward.8} parent=43 // pred_check_branch
        %800 = sbr.rel (%p798) target = $region52
      $region51: #{decoder_forward.8} parent=43 // pred_region
        _
      $region52: #{decoder_forward.8} parent=43 // pred_fallthru
        _
    $region44: #{decoder_forward.8} parent=5 // pred_fallthru
      _
    %p801 = scmp.le.s32.totalorder 2, %s14
    // Predicated region
    $region53: #{decoder_forward.8} parent=5 // pred_check
      %p802 = pneg %p801
    $region54: #{decoder_forward.8} parent=5 // pred_check_branch
      %804 = sbr.rel (%p802) target = $region56
    $region55: #{decoder_forward.8} parent=5 // pred_region
      %s805 = ssub.s32 %s14, 2
      // Predicated region
      $region57: #{decoder_forward.8} parent=55 // pred_check
        %p806 = pneg %p179
      $region58: #{decoder_forward.8} parent=55 // pred_check_branch
        %808 = sbr.rel (%p806) target = $region60
      $region59: #{decoder_forward.8} parent=55 // pred_region
        %p809 = scmp.lt.s32.totalorder %s20, 1
        %s810 = scalar_select %p809, %s20, 1
        %s811 = smul.addr %s810, 2
        %s812 = smul.addr %s811, 8
        %s813 = scalar_lea.vmem %s6, %s812
      $region60: #{decoder_forward.8} parent=55 // pred_fallthru
        _
      // Predicated region
      $region61: #{decoder_forward.8} parent=55 // pred_check
        %p814 = pneg %p205
      $region62: #{decoder_forward.8} parent=55 // pred_check_branch
        %816 = sbr.rel (%p814) target = $region64
      $region63: #{decoder_forward.8} parent=55 // pred_region
        %p817 = scmp.lt.s32.totalorder %s20, 1
        %s818 = scalar_select %p817, %s20, 1
        %s819 = smul.addr %s818, 3
        %s820 = smul.addr %s819, 8
        %s821 = scalar_lea.vmem %s7, %s820
      $region64: #{decoder_forward.8} parent=55 // pred_fallthru
        _
    $region56: #{decoder_forward.8} parent=5 // pred_fallthru
      _
  $region6: #{decoder_forward.8} parent=0 // loop_footer
    %s18 = sadd.s32 1, %s14
  $region7: #{decoder_forward.8} parent=0 // loop_footer_branch
    %13 = sbr.rel target = $region3
  $region8: #{decoder_forward.8} parent=0 // loop_exit
    _

// kernel: decoder_forward.7
$region0: #{decoder_forward.7}
  #allocation0 [shape = 'u32[]', space=smem, size = 0x4, offset = 0x4, fixed_abs, tag = 'smem constant byte address 0x4 - core index']
  #allocation1 [shape = 'u32[72,128]{1,0:T(1,128)}', space=vmem, size = 0x9000, scoped, tag = 'internal scratch']
  %s0 = inlined_call_operand.vmem [shape: f32[8,2,512], index: 0, kind: input, shape index: {}]
  %s1 = inlined_call_operand.vmem [shape: f32[2,128], index: 1, kind: input, shape index: {}]
  %s2 = inlined_call_operand.hbm [shape: f32[2,128], index: 2, kind: input, shape index: {}]
  %s3 = inlined_call_operand.hbm [shape: f32[128,512], index: 3, kind: input, shape index: {}]
  %s4 = inlined_call_operand.vmem [shape: f32[8,2,128], index: 4, kind: output, shape index: {0}]
  %s5 = inlined_call_operand.hbm [shape: f32[2,128], index: 5, kind: output, shape index: {1}]
  %s6 = inlined_call_operand.hbm [shape: f32[2,128], index: 6, kind: output, shape index: {2}]
  %7 = xla_tuple %s4, %s5, %s6
  %s8 = sld [smem:[#allocation0]]
  $region50: #{decoder_forward.7} parent=0
    _
  %s10 = ssub.s32 1, %s8
  %s11 = scalar_select 0, %s10, %s8
  $region1: #{decoder_forward.7} parent=0
    #allocation2 [shape = 'u8[1024]{0}', space=vmem, size = 0x400, scoped, tag = 'input window, operand 2, single buffered']
    #allocation3 [shape = 's32[1]{0}', space=sflag, size = 0x4, scoped, tag = 'scoped memory for decoder_forward.7']
    #allocation4 [shape = 's32[1]{0}', space=sflag, size = 0x4, scoped, tag = 'scoped memory for decoder_forward.7']
    #allocation5 [shape = 'u8[262144]{0}', space=vmem, size = 0x40000, scoped, tag = 'input window, operand 3, single buffered']
    #allocation6 [shape = 's32[1]{0}', space=sflag, size = 0x4, scoped, tag = 'scoped memory for decoder_forward.7']
    #allocation7 [shape = 'u8[1024]{0}', space=vmem, size = 0x400, scoped, tag = 'output window, operand 1, single buffered']
    #allocation8 [shape = 'u8[1024]{0}', space=vmem, size = 0x400, scoped, tag = 'output window, operand 2, single buffered']
    #allocation9 [shape = 's32[1]{0}', space=sflag, size = 0x4, scoped, tag = 'scoped memory for decoder_forward.7']
    %12 = vsyncpa [#allocation3], 0
    %13 = vsyncpa [#allocation6], 0
    %14 = vsyncpa [#allocation4], 0
    %15 = vsyncpa [#allocation9], 0
    // Predicated region
    $region2: #{decoder_forward.7} parent=1 // pred_check
      _
    $region3: #{decoder_forward.7} parent=1 // pred_check_branch
      %17 = sbr.rel (0) target = $region5
    $region4: #{decoder_forward.7} parent=1 // pred_region
      _
    $region5: #{decoder_forward.7} parent=1 // pred_fallthru
      _
    // Predicated region
    $region6: #{decoder_forward.7} parent=1 // pred_check
      _
    $region7: #{decoder_forward.7} parent=1 // pred_check_branch
      %19 = sbr.rel (0) target = $region9
    $region8: #{decoder_forward.7} parent=1 // pred_region
      _
    $region9: #{decoder_forward.7} parent=1 // pred_fallthru
      _
    // Predicated region
    $region10: #{decoder_forward.7} parent=1 // pred_check
      _
    $region11: #{decoder_forward.7} parent=1 // pred_check_branch
      %21 = sbr.rel (0) target = $region13
    $region12: #{decoder_forward.7} parent=1 // pred_region
      %23 = vsyncadd [#allocation3], 0
      %s25 = sshll.u32 %s2, 4
      %s26 = int_to_ptr.hbm [resolvable:$true] %s25
      %s27 = sshll.u32 [#allocation2], 4
      %s28 = int_to_ptr.vmem [resolvable:$true] %s27
      %30 = dma.hbm_to_vmem [thread:$0]  %s26, 32, %s28, [#allocation3]
    $region13: #{decoder_forward.7} parent=1 // pred_fallthru
      _
    // Predicated region
    $region14: #{decoder_forward.7} parent=1 // pred_check
      _
    $region15: #{decoder_forward.7} parent=1 // pred_check_branch
      %32 = sbr.rel (0) target = $region17
    $region16: #{decoder_forward.7} parent=1 // pred_region
      %34 = vsyncadd [#allocation6], 0
      %s35 = sshll.u32 %s3, 4
      %s36 = int_to_ptr.hbm [resolvable:$true] %s35
      %s37 = sshll.u32 [#allocation5], 4
      %s38 = int_to_ptr.vmem [resolvable:$true] %s37
      %43 = dma.hbm_to_vmem [thread:$0]  %s36, 8192, %s38, [#allocation6], 512, 512, 32
    $region17: #{decoder_forward.7} parent=1 // pred_fallthru
      _
    // Predicated region
    $region18: #{decoder_forward.7} parent=1 // pred_check
      _
    $region19: #{decoder_forward.7} parent=1 // pred_check_branch
      %45 = sbr.rel (0) target = $region21
    $region20: #{decoder_forward.7} parent=1 // pred_region
      %47 = dma.done [#allocation3], 32
    $region21: #{decoder_forward.7} parent=1 // pred_fallthru
      _
    // Predicated region
    $region22: #{decoder_forward.7} parent=1 // pred_check
      _
    $region23: #{decoder_forward.7} parent=1 // pred_check_branch
      %49 = sbr.rel (0) target = $region25
    $region24: #{decoder_forward.7} parent=1 // pred_region
      %51 = dma.done [#allocation6], 8192
    $region25: #{decoder_forward.7} parent=1 // pred_fallthru
      _
    %v52 = vld [vmem:[#allocation5] sm:$0xff]
    %v53 = vld [vmem:[#allocation5 + $0x8] sm:$0xff]
    %v54 = vld [vmem:[#allocation5 + $0x10] sm:$0xff]
    %v55 = vld [vmem:[#allocation5 + $0x18] sm:$0xff]
    %v56 = vld [vmem:[#allocation5 + $0x20] sm:$0xff]
    %v57 = vld [vmem:[#allocation5 + $0x28] sm:$0xff]
    %v58 = vld [vmem:[#allocation5 + $0x30] sm:$0xff]
    %v59 = vld [vmem:[#allocation5 + $0x38] sm:$0xff]
    %v60 = vld [vmem:[#allocation5 + $0x40] sm:$0xff]
    %v61 = vld [vmem:[#allocation5 + $0x48] sm:$0xff]
    %v62 = vld [vmem:[#allocation5 + $0x50] sm:$0xff]
    %v63 = vld [vmem:[#allocation5 + $0x58] sm:$0xff]
    %v64 = vld [vmem:[#allocation5 + $0x60] sm:$0xff]
    %v65 = vld [vmem:[#allocation5 + $0x68] sm:$0xff]
    %v66 = vld [vmem:[#allocation5 + $0x70] sm:$0xff]
    %v67 = vld [vmem:[#allocation5 + $0x78] sm:$0xff]
    %v68 = vld [vmem:[#allocation5 + $0x80] sm:$0xff]
    %v69 = vld [vmem:[#allocation5 + $0x88] sm:$0xff]
    %v70 = vld [vmem:[#allocation5 + $0x90] sm:$0xff]
    %v71 = vld [vmem:[#allocation5 + $0x98] sm:$0xff]
    %v72 = vld [vmem:[#allocation5 + $0xa0] sm:$0xff]
    %v73 = vld [vmem:[#allocation5 + $0xa8] sm:$0xff]
    %v74 = vld [vmem:[#allocation5 + $0xb0] sm:$0xff]
    %v75 = vld [vmem:[#allocation5 + $0xb8] sm:$0xff]
    %v76 = vld [vmem:[#allocation5 + $0xc0] sm:$0xff]
    %v77 = vld [vmem:[#allocation5 + $0xc8] sm:$0xff]
    %v78 = vld [vmem:[#allocation5 + $0xd0] sm:$0xff]
    %v79 = vld [vmem:[#allocation5 + $0xd8] sm:$0xff]
    %v80 = vld [vmem:[#allocation5 + $0xe0] sm:$0xff]
    %v81 = vld [vmem:[#allocation5 + $0xe8] sm:$0xff]
    %v82 = vld [vmem:[#allocation5 + $0xf0] sm:$0xff]
    %v83 = vld [vmem:[#allocation5 + $0xf8] sm:$0xff]
    %v84 = vld [vmem:[#allocation5 + $0x100] sm:$0xff]
    %v85 = vld [vmem:[#allocation5 + $0x108] sm:$0xff]
    %v86 = vld [vmem:[#allocation5 + $0x110] sm:$0xff]
    %v87 = vld [vmem:[#allocation5 + $0x118] sm:$0xff]
    %v88 = vld [vmem:[#allocation5 + $0x120] sm:$0xff]
    %v89 = vld [vmem:[#allocation5 + $0x128] sm:$0xff]
    %v90 = vld [vmem:[#allocation5 + $0x130] sm:$0xff]
    %v91 = vld [vmem:[#allocation5 + $0x138] sm:$0xff]
    %v92 = vld [vmem:[#allocation5 + $0x140] sm:$0xff]
    %v93 = vld [vmem:[#allocation5 + $0x148] sm:$0xff]
    %v94 = vld [vmem:[#allocation5 + $0x150] sm:$0xff]
    %v95 = vld [vmem:[#allocation5 + $0x158] sm:$0xff]
    %v96 = vld [vmem:[#allocation5 + $0x160] sm:$0xff]
    %v97 = vld [vmem:[#allocation5 + $0x168] sm:$0xff]
    %v98 = vld [vmem:[#allocation5 + $0x170] sm:$0xff]
    %v99 = vld [vmem:[#allocation5 + $0x178] sm:$0xff]
    %v100 = vld [vmem:[#allocation5 + $0x180] sm:$0xff]
    %v101 = vld [vmem:[#allocation5 + $0x188] sm:$0xff]
    %v102 = vld [vmem:[#allocation5 + $0x190] sm:$0xff]
    %v103 = vld [vmem:[#allocation5 + $0x198] sm:$0xff]
    %v104 = vld [vmem:[#allocation5 + $0x1a0] sm:$0xff]
    %v105 = vld [vmem:[#allocation5 + $0x1a8] sm:$0xff]
    %v106 = vld [vmem:[#allocation5 + $0x1b0] sm:$0xff]
    %v107 = vld [vmem:[#allocation5 + $0x1b8] sm:$0xff]
    %v108 = vld [vmem:[#allocation5 + $0x1c0] sm:$0xff]
    %v109 = vld [vmem:[#allocation5 + $0x1c8] sm:$0xff]
    %v110 = vld [vmem:[#allocation5 + $0x1d0] sm:$0xff]
    %v111 = vld [vmem:[#allocation5 + $0x1d8] sm:$0xff]
    %v112 = vld [vmem:[#allocation5 + $0x1e0] sm:$0xff]
    %v113 = vld [vmem:[#allocation5 + $0x1e8] sm:$0xff]
    %v114 = vld [vmem:[#allocation5 + $0x1f0] sm:$0xff]
    %v115 = vld [vmem:[#allocation5 + $0x1f8] sm:$0xff]
    %v116 = vld [vmem:[%s1] sm:$0x3]
    %v117 = vld [vmem:[#allocation2] sm:$0x3]
    %v118 = vld [vmem:[%s0] sm:$0xff]
    %119 = vmatpush.msra.mxu0 %v112
    %120 = vmatpush.msra.mxu0 %v108
    %121 = vmatpush.msra.mxu0 %v104
    %122 = vmatpush.msra.mxu0 %v100
    %123 = vmatpush.msra.mxu0 %v96
    %124 = vmatpush.msra.mxu0 %v92
    %125 = vmatpush.msra.mxu0 %v88
    %126 = vmatpush.msra.mxu0 %v84
    %127 = vmatpush.msra.mxu0 %v80
    %128 = vmatpush.msra.mxu0 %v76
    %129 = vmatpush.msra.mxu0 %v72
    %130 = vmatpush.msra.mxu0 %v68
    %131 = vmatpush.msra.mxu0 %v64
    %132 = vmatpush.msra.mxu0 %v60
    %133 = vmatpush.msra.mxu0 %v56
    %134 = vmatpush.msra.mxu0 %v52
    %135 = vmatmul.f32.gmra.mxu0 %v116
    %v136 = vpop.f32.mrf.mxu0
    %v137 = vadd.f32 0.0, %v136
    %138 = vdwg.mxu0
    %139 = vmatpush.msra.mxu0 %v113
    %140 = vmatpush.msra.mxu0 %v109
    %141 = vmatpush.msra.mxu0 %v105
    %142 = vmatpush.msra.mxu0 %v101
    %143 = vmatpush.msra.mxu0 %v97
    %144 = vmatpush.msra.mxu0 %v93
    %145 = vmatpush.msra.mxu0 %v89
    %146 = vmatpush.msra.mxu0 %v85
    %147 = vmatpush.msra.mxu0 %v81
    %148 = vmatpush.msra.mxu0 %v77
    %149 = vmatpush.msra.mxu0 %v73
    %150 = vmatpush.msra.mxu0 %v69
    %151 = vmatpush.msra.mxu0 %v65
    %152 = vmatpush.msra.mxu0 %v61
    %153 = vmatpush.msra.mxu0 %v57
    %154 = vmatpush.msra.mxu0 %v53
    %155 = vmatmul.f32.gmra.mxu0 %v116
    %v156 = vpop.f32.mrf.mxu0
    %v157 = vadd.f32 0.0, %v156
    %158 = vdwg.mxu0
    %159 = vmatpush.msra.mxu0 %v114
    %160 = vmatpush.msra.mxu0 %v110
    %161 = vmatpush.msra.mxu0 %v106
    %162 = vmatpush.msra.mxu0 %v102
    %163 = vmatpush.msra.mxu0 %v98
    %164 = vmatpush.msra.mxu0 %v94
    %165 = vmatpush.msra.mxu0 %v90
    %166 = vmatpush.msra.mxu0 %v86
    %167 = vmatpush.msra.mxu0 %v82
    %168 = vmatpush.msra.mxu0 %v78
    %169 = vmatpush.msra.mxu0 %v74
    %170 = vmatpush.msra.mxu0 %v70
    %171 = vmatpush.msra.mxu0 %v66
    %172 = vmatpush.msra.mxu0 %v62
    %173 = vmatpush.msra.mxu0 %v58
    %174 = vmatpush.msra.mxu0 %v54
    %175 = vmatmul.f32.gmra.mxu0 %v116
    %v176 = vpop.f32.mrf.mxu0
    %v177 = vadd.f32 0.0, %v176
    %178 = vdwg.mxu0
    %179 = vmatpush.msra.mxu0 %v115
    %180 = vmatpush.msra.mxu0 %v111
    %181 = vmatpush.msra.mxu0 %v107
    %182 = vmatpush.msra.mxu0 %v103
    %183 = vmatpush.msra.mxu0 %v99
    %184 = vmatpush.msra.mxu0 %v95
    %185 = vmatpush.msra.mxu0 %v91
    %186 = vmatpush.msra.mxu0 %v87
    %187 = vmatpush.msra.mxu0 %v83
    %188 = vmatpush.msra.mxu0 %v79
    %189 = vmatpush.msra.mxu0 %v75
    %190 = vmatpush.msra.mxu0 %v71
    %191 = vmatpush.msra.mxu0 %v67
    %192 = vmatpush.msra.mxu0 %v63
    %193 = vmatpush.msra.mxu0 %v59
    %194 = vmatpush.msra.mxu0 %v55
    %195 = vmatmul.f32.gmra.mxu0 %v116
    %v196 = vpop.f32.mrf.mxu0
    %v197 = vadd.f32 0.0, %v196
    %198 = vdwg.mxu0
    %v203 = vrot.slane %v157, 6
    %v204 = vrot.slane %v177, 4
    %v205 = vrot.slane %v197, 2
    %vm206 = vcmask 1041408
    %v207 = vsel %vm206, %v137, %v203
    %vm208 = vcmask 1045508
    %v209 = vsel %vm208, %v204, %v205
    %vm210 = vcmask 1043456
    %v211 = vsel %vm210, %v207, %v209
    %v213 = vadd.f32 %v118, %v211
    %v214 = vxor.u32 %v213, 2147483648
    %v215 = vmul.f32 %v214, 1.442695
    %v216 = vpow.pop %v215
    %v217 = vadd.f32 %v216, 1.0
    %v218 = vrcp.pop %v217
    %v219 = vmul.f32 %v217, %v218
    %v220 = vsub.f32 1.0, %v219
    %v221 = vmul.f32 %v218, %v220
    %v222 = vadd.f32 %v218, %v221
    %vm223 = vweird.f32 %v217
    %vm224 = vweird.f32 %v218
    %vm225 = vmor %vm223, %vm224
    %v226 = vsel %vm225, %v218, %v222
    %v227 = vand.u32 2147483647, %v217
    %vm228 = vcmp.eq.f32.partialorder %v227, 8.507059e+37
    %v229 = vand.u32 %v217, 2147483648
    %v230 = vor.u32 1.1754944e-38, %v229
    %v231 = vsel %vm228, %v230, %v226
    %v232 = vmul.f32 1.0, %v231
    %v234 = vrot.slane %v213, 2
    %v236 = vxor.u32 %v234, 2147483648
    %v237 = vmul.f32 %v236, 1.442695
    %v238 = vpow.pop %v237
    %v239 = vadd.f32 %v238, 1.0
    %v240 = vrcp.pop %v239
    %v241 = vmul.f32 %v239, %v240
    %v242 = vsub.f32 1.0, %v241
    %v243 = vmul.f32 %v240, %v242
    %v244 = vadd.f32 %v240, %v243
    %vm245 = vweird.f32 %v239
    %vm246 = vweird.f32 %v240
    %vm247 = vmor %vm245, %vm246
    %v248 = vsel %vm247, %v240, %v244
    %v249 = vand.u32 2147483647, %v239
    %vm250 = vcmp.eq.f32.partialorder %v249, 8.507059e+37
    %v251 = vand.u32 %v239, 2147483648
    %v252 = vor.u32 1.1754944e-38, %v251
    %v253 = vsel %vm250, %v252, %v248
    %v254 = vmul.f32 1.0, %v253
    %v255 = vrot.slane %v213, 4
    %v257 = vtanh.pop %v255
    %v258 = vrot.slane %v213, 6
    %v260 = vxor.u32 %v258, 2147483648
    %v261 = vmul.f32 %v260, 1.442695
    %v262 = vpow.pop %v261
    %v263 = vadd.f32 %v262, 1.0
    %v264 = vrcp.pop %v263
    %v265 = vmul.f32 %v263, %v264
    %v266 = vsub.f32 1.0, %v265
    %v267 = vmul.f32 %v264, %v266
    %v268 = vadd.f32 %v264, %v267
    %vm269 = vweird.f32 %v263
    %vm270 = vweird.f32 %v264
    %vm271 = vmor %vm269, %vm270
    %v272 = vsel %vm271, %v264, %v268
    %v273 = vand.u32 2147483647, %v263
    %vm274 = vcmp.eq.f32.partialorder %v273, 8.507059e+37
    %v275 = vand.u32 %v263, 2147483648
    %v276 = vor.u32 1.1754944e-38, %v275
    %v277 = vsel %vm274, %v276, %v272
    %v278 = vmul.f32 1.0, %v277
    %v279 = vmul.f32 %v254, %v117
    %v280 = vmul.f32 %v232, %v257
    %v281 = vadd.f32 %v279, %v280
    %v282 = vtanh.pop %v281
    %v283 = vmul.f32 %v278, %v282
    %284 = vst [vmem:[%s4] sm:$0x3] %v283
    %s285 = scalar_lea.vmem %s0, 8
    %v286 = vld [vmem:[%s285] sm:$0xff]
    %287 = vmatpush.msra.mxu0 %v112
    %288 = vmatpush.msra.mxu0 %v108
    %289 = vmatpush.msra.mxu0 %v104
    %290 = vmatpush.msra.mxu0 %v100
    %291 = vmatpush.msra.mxu0 %v96
    %292 = vmatpush.msra.mxu0 %v92
    %293 = vmatpush.msra.mxu0 %v88
    %294 = vmatpush.msra.mxu0 %v84
    %295 = vmatpush.msra.mxu0 %v80
    %296 = vmatpush.msra.mxu0 %v76
    %297 = vmatpush.msra.mxu0 %v72
    %298 = vmatpush.msra.mxu0 %v68
    %299 = vmatpush.msra.mxu0 %v64
    %300 = vmatpush.msra.mxu0 %v60
    %301 = vmatpush.msra.mxu0 %v56
    %302 = vmatpush.msra.mxu0 %v52
    %303 = vmatmul.f32.gmra.mxu0 %v283
    %v304 = vpop.f32.mrf.mxu0
    %v305 = vadd.f32 0.0, %v304
    %306 = vdwg.mxu0
    %307 = vmatpush.msra.mxu0 %v113
    %308 = vmatpush.msra.mxu0 %v109
    %309 = vmatpush.msra.mxu0 %v105
    %310 = vmatpush.msra.mxu0 %v101
    %311 = vmatpush.msra.mxu0 %v97
    %312 = vmatpush.msra.mxu0 %v93
    %313 = vmatpush.msra.mxu0 %v89
    %314 = vmatpush.msra.mxu0 %v85
    %315 = vmatpush.msra.mxu0 %v81
    %316 = vmatpush.msra.mxu0 %v77
    %317 = vmatpush.msra.mxu0 %v73
    %318 = vmatpush.msra.mxu0 %v69
    %319 = vmatpush.msra.mxu0 %v65
    %320 = vmatpush.msra.mxu0 %v61
    %321 = vmatpush.msra.mxu0 %v57
    %322 = vmatpush.msra.mxu0 %v53
    %323 = vmatmul.f32.gmra.mxu0 %v283
    %v324 = vpop.f32.mrf.mxu0
    %v325 = vadd.f32 0.0, %v324
    %326 = vdwg.mxu0
    %327 = vmatpush.msra.mxu0 %v114
    %328 = vmatpush.msra.mxu0 %v110
    %329 = vmatpush.msra.mxu0 %v106
    %330 = vmatpush.msra.mxu0 %v102
    %331 = vmatpush.msra.mxu0 %v98
    %332 = vmatpush.msra.mxu0 %v94
    %333 = vmatpush.msra.mxu0 %v90
    %334 = vmatpush.msra.mxu0 %v86
    %335 = vmatpush.msra.mxu0 %v82
    %336 = vmatpush.msra.mxu0 %v78
    %337 = vmatpush.msra.mxu0 %v74
    %338 = vmatpush.msra.mxu0 %v70
    %339 = vmatpush.msra.mxu0 %v66
    %340 = vmatpush.msra.mxu0 %v62
    %341 = vmatpush.msra.mxu0 %v58
    %342 = vmatpush.msra.mxu0 %v54
    %343 = vmatmul.f32.gmra.mxu0 %v283
    %v344 = vpop.f32.mrf.mxu0
    %v345 = vadd.f32 0.0, %v344
    %346 = vdwg.mxu0
    %347 = vmatpush.msra.mxu0 %v115
    %348 = vmatpush.msra.mxu0 %v111
    %349 = vmatpush.msra.mxu0 %v107
    %350 = vmatpush.msra.mxu0 %v103
    %351 = vmatpush.msra.mxu0 %v99
    %352 = vmatpush.msra.mxu0 %v95
    %353 = vmatpush.msra.mxu0 %v91
    %354 = vmatpush.msra.mxu0 %v87
    %355 = vmatpush.msra.mxu0 %v83
    %356 = vmatpush.msra.mxu0 %v79
    %357 = vmatpush.msra.mxu0 %v75
    %358 = vmatpush.msra.mxu0 %v71
    %359 = vmatpush.msra.mxu0 %v67
    %360 = vmatpush.msra.mxu0 %v63
    %361 = vmatpush.msra.mxu0 %v59
    %362 = vmatpush.msra.mxu0 %v55
    %363 = vmatmul.f32.gmra.mxu0 %v283
    %v364 = vpop.f32.mrf.mxu0
    %v365 = vadd.f32 0.0, %v364
    %366 = vdwg.mxu0
    %v371 = vrot.slane %v325, 6
    %v372 = vrot.slane %v345, 4
    %v373 = vrot.slane %v365, 2
    %v374 = vsel %vm206, %v305, %v371
    %v375 = vsel %vm208, %v372, %v373
    %v376 = vsel %vm210, %v374, %v375
    %v378 = vadd.f32 %v286, %v376
    %v379 = vxor.u32 %v378, 2147483648
    %v380 = vmul.f32 %v379, 1.442695
    %v381 = vpow.pop %v380
    %v382 = vadd.f32 %v381, 1.0
    %v383 = vrcp.pop %v382
    %v384 = vmul.f32 %v382, %v383
    %v385 = vsub.f32 1.0, %v384
    %v386 = vmul.f32 %v383, %v385
    %v387 = vadd.f32 %v383, %v386
    %vm388 = vweird.f32 %v382
    %vm389 = vweird.f32 %v383
    %vm390 = vmor %vm388, %vm389
    %v391 = vsel %vm390, %v383, %v387
    %v392 = vand.u32 2147483647, %v382
    %vm393 = vcmp.eq.f32.partialorder %v392, 8.507059e+37
    %v394 = vand.u32 %v382, 2147483648
    %v395 = vor.u32 1.1754944e-38, %v394
    %v396 = vsel %vm393, %v395, %v391
    %v397 = vmul.f32 1.0, %v396
    %v399 = vrot.slane %v378, 2
    %v401 = vxor.u32 %v399, 2147483648
    %v402 = vmul.f32 %v401, 1.442695
    %v403 = vpow.pop %v402
    %v404 = vadd.f32 %v403, 1.0
    %v405 = vrcp.pop %v404
    %v406 = vmul.f32 %v404, %v405
    %v407 = vsub.f32 1.0, %v406
    %v408 = vmul.f32 %v405, %v407
    %v409 = vadd.f32 %v405, %v408
    %vm410 = vweird.f32 %v404
    %vm411 = vweird.f32 %v405
    %vm412 = vmor %vm410, %vm411
    %v413 = vsel %vm412, %v405, %v409
    %v414 = vand.u32 2147483647, %v404
    %vm415 = vcmp.eq.f32.partialorder %v414, 8.507059e+37
    %v416 = vand.u32 %v404, 2147483648
    %v417 = vor.u32 1.1754944e-38, %v416
    %v418 = vsel %vm415, %v417, %v413
    %v419 = vmul.f32 1.0, %v418
    %v420 = vrot.slane %v378, 4
    %v422 = vtanh.pop %v420
    %v423 = vrot.slane %v378, 6
    %v425 = vxor.u32 %v423, 2147483648
    %v426 = vmul.f32 %v425, 1.442695
    %v427 = vpow.pop %v426
    %v428 = vadd.f32 %v427, 1.0
    %v429 = vrcp.pop %v428
    %v430 = vmul.f32 %v428, %v429
    %v431 = vsub.f32 1.0, %v430
    %v432 = vmul.f32 %v429, %v431
    %v433 = vadd.f32 %v429, %v432
    %vm434 = vweird.f32 %v428
    %vm435 = vweird.f32 %v429
    %vm436 = vmor %vm434, %vm435
    %v437 = vsel %vm436, %v429, %v433
    %v438 = vand.u32 2147483647, %v428
    %vm439 = vcmp.eq.f32.partialorder %v438, 8.507059e+37
    %v440 = vand.u32 %v428, 2147483648
    %v441 = vor.u32 1.1754944e-38, %v440
    %v442 = vsel %vm439, %v441, %v437
    %v443 = vmul.f32 1.0, %v442
    %v444 = vmul.f32 %v419, %v281
    %v445 = vmul.f32 %v397, %v422
    %v446 = vadd.f32 %v444, %v445
    %v447 = vtanh.pop %v446
    %v448 = vmul.f32 %v443, %v447
    %s449 = scalar_lea.vmem %s4, 2
    %450 = vst [vmem:[%s449] sm:$0x3] %v448
    %s451 = scalar_lea.vmem %s0, 16
    %v452 = vld [vmem:[%s451] sm:$0xff]
    %453 = vmatpush.msra.mxu0 %v112
    %454 = vmatpush.msra.mxu0 %v108
    %455 = vmatpush.msra.mxu0 %v104
    %456 = vmatpush.msra.mxu0 %v100
    %457 = vmatpush.msra.mxu0 %v96
    %458 = vmatpush.msra.mxu0 %v92
    %459 = vmatpush.msra.mxu0 %v88
    %460 = vmatpush.msra.mxu0 %v84
    %461 = vmatpush.msra.mxu0 %v80
    %462 = vmatpush.msra.mxu0 %v76
    %463 = vmatpush.msra.mxu0 %v72
    %464 = vmatpush.msra.mxu0 %v68
    %465 = vmatpush.msra.mxu0 %v64
    %466 = vmatpush.msra.mxu0 %v60
    %467 = vmatpush.msra.mxu0 %v56
    %468 = vmatpush.msra.mxu0 %v52
    %469 = vmatmul.f32.gmra.mxu0 %v448
    %v470 = vpop.f32.mrf.mxu0
    %v471 = vadd.f32 0.0, %v470
    %472 = vdwg.mxu0
    %473 = vmatpush.msra.mxu0 %v113
    %474 = vmatpush.msra.mxu0 %v109
    %475 = vmatpush.msra.mxu0 %v105
    %476 = vmatpush.msra.mxu0 %v101
    %477 = vmatpush.msra.mxu0 %v97
    %478 = vmatpush.msra.mxu0 %v93
    %479 = vmatpush.msra.mxu0 %v89
    %480 = vmatpush.msra.mxu0 %v85
    %481 = vmatpush.msra.mxu0 %v81
    %482 = vmatpush.msra.mxu0 %v77
    %483 = vmatpush.msra.mxu0 %v73
    %484 = vmatpush.msra.mxu0 %v69
    %485 = vmatpush.msra.mxu0 %v65
    %486 = vmatpush.msra.mxu0 %v61
    %487 = vmatpush.msra.mxu0 %v57
    %488 = vmatpush.msra.mxu0 %v53
    %489 = vmatmul.f32.gmra.mxu0 %v448
    %v490 = vpop.f32.mrf.mxu0
    %v491 = vadd.f32 0.0, %v490
    %492 = vdwg.mxu0
    %493 = vmatpush.msra.mxu0 %v114
    %494 = vmatpush.msra.mxu0 %v110
    %495 = vmatpush.msra.mxu0 %v106
    %496 = vmatpush.msra.mxu0 %v102
    %497 = vmatpush.msra.mxu0 %v98
    %498 = vmatpush.msra.mxu0 %v94
    %499 = vmatpush.msra.mxu0 %v90
    %500 = vmatpush.msra.mxu0 %v86
    %501 = vmatpush.msra.mxu0 %v82
    %502 = vmatpush.msra.mxu0 %v78
    %503 = vmatpush.msra.mxu0 %v74
    %504 = vmatpush.msra.mxu0 %v70
    %505 = vmatpush.msra.mxu0 %v66
    %506 = vmatpush.msra.mxu0 %v62
    %507 = vmatpush.msra.mxu0 %v58
    %508 = vmatpush.msra.mxu0 %v54
    %509 = vmatmul.f32.gmra.mxu0 %v448
    %v510 = vpop.f32.mrf.mxu0
    %v511 = vadd.f32 0.0, %v510
    %512 = vdwg.mxu0
    %513 = vmatpush.msra.mxu0 %v115
    %514 = vmatpush.msra.mxu0 %v111
    %515 = vmatpush.msra.mxu0 %v107
    %516 = vmatpush.msra.mxu0 %v103
    %517 = vmatpush.msra.mxu0 %v99
    %518 = vmatpush.msra.mxu0 %v95
    %519 = vmatpush.msra.mxu0 %v91
    %520 = vmatpush.msra.mxu0 %v87
    %521 = vmatpush.msra.mxu0 %v83
    %522 = vmatpush.msra.mxu0 %v79
    %523 = vmatpush.msra.mxu0 %v75
    %524 = vmatpush.msra.mxu0 %v71
    %525 = vmatpush.msra.mxu0 %v67
    %526 = vmatpush.msra.mxu0 %v63
    %527 = vmatpush.msra.mxu0 %v59
    %528 = vmatpush.msra.mxu0 %v55
    %529 = vmatmul.f32.gmra.mxu0 %v448
    %v530 = vpop.f32.mrf.mxu0
    %v531 = vadd.f32 0.0, %v530
    %532 = vdwg.mxu0
    %v537 = vrot.slane %v491, 6
    %v538 = vrot.slane %v511, 4
    %v539 = vrot.slane %v531, 2
    %v540 = vsel %vm206, %v471, %v537
    %v541 = vsel %vm208, %v538, %v539
    %v542 = vsel %vm210, %v540, %v541
    %v544 = vadd.f32 %v452, %v542
    %v545 = vxor.u32 %v544, 2147483648
    %v546 = vmul.f32 %v545, 1.442695
    %v547 = vpow.pop %v546
    %v548 = vadd.f32 %v547, 1.0
    %v549 = vrcp.pop %v548
    %v550 = vmul.f32 %v548, %v549
    %v551 = vsub.f32 1.0, %v550
    %v552 = vmul.f32 %v549, %v551
    %v553 = vadd.f32 %v549, %v552
    %vm554 = vweird.f32 %v548
    %vm555 = vweird.f32 %v549
    %vm556 = vmor %vm554, %vm555
    %v557 = vsel %vm556, %v549, %v553
    %v558 = vand.u32 2147483647, %v548
    %vm559 = vcmp.eq.f32.partialorder %v558, 8.507059e+37
    %v560 = vand.u32 %v548, 2147483648
    %v561 = vor.u32 1.1754944e-38, %v560
    %v562 = vsel %vm559, %v561, %v557
    %v563 = vmul.f32 1.0, %v562
    %v565 = vrot.slane %v544, 2
    %v567 = vxor.u32 %v565, 2147483648
    %v568 = vmul.f32 %v567, 1.442695
    %v569 = vpow.pop %v568
    %v570 = vadd.f32 %v569, 1.0
    %v571 = vrcp.pop %v570
    %v572 = vmul.f32 %v570, %v571
    %v573 = vsub.f32 1.0, %v572
    %v574 = vmul.f32 %v571, %v573
    %v575 = vadd.f32 %v571, %v574
    %vm576 = vweird.f32 %v570
    %vm577 = vweird.f32 %v571
    %vm578 = vmor %vm576, %vm577
    %v579 = vsel %vm578, %v571, %v575
    %v580 = vand.u32 2147483647, %v570
    %vm581 = vcmp.eq.f32.partialorder %v580, 8.507059e+37
    %v582 = vand.u32 %v570, 2147483648
    %v583 = vor.u32 1.1754944e-38, %v582
    %v584 = vsel %vm581, %v583, %v579
    %v585 = vmul.f32 1.0, %v584
    %v586 = vrot.slane %v544, 4
    %v588 = vtanh.pop %v586
    %v589 = vrot.slane %v544, 6
    %v591 = vxor.u32 %v589, 2147483648
    %v592 = vmul.f32 %v591, 1.442695
    %v593 = vpow.pop %v592
    %v594 = vadd.f32 %v593, 1.0
    %v595 = vrcp.pop %v594
    %v596 = vmul.f32 %v594, %v595
    %v597 = vsub.f32 1.0, %v596
    %v598 = vmul.f32 %v595, %v597
    %v599 = vadd.f32 %v595, %v598
    %vm600 = vweird.f32 %v594
    %vm601 = vweird.f32 %v595
    %vm602 = vmor %vm600, %vm601
    %v603 = vsel %vm602, %v595, %v599
    %v604 = vand.u32 2147483647, %v594
    %vm605 = vcmp.eq.f32.partialorder %v604, 8.507059e+37
    %v606 = vand.u32 %v594, 2147483648
    %v607 = vor.u32 1.1754944e-38, %v606
    %v608 = vsel %vm605, %v607, %v603
    %v609 = vmul.f32 1.0, %v608
    %v610 = vmul.f32 %v585, %v446
    %v611 = vmul.f32 %v563, %v588
    %v612 = vadd.f32 %v610, %v611
    %v613 = vtanh.pop %v612
    %v614 = vmul.f32 %v609, %v613
    %s615 = scalar_lea.vmem %s4, 4
    %616 = vst [vmem:[%s615] sm:$0x3] %v614
    %s617 = scalar_lea.vmem %s0, 24
    %v618 = vld [vmem:[%s617] sm:$0xff]
    %619 = vmatpush.msra.mxu0 %v112
    %620 = vmatpush.msra.mxu0 %v108
    %621 = vmatpush.msra.mxu0 %v104
    %622 = vmatpush.msra.mxu0 %v100
    %623 = vmatpush.msra.mxu0 %v96
    %624 = vmatpush.msra.mxu0 %v92
    %625 = vmatpush.msra.mxu0 %v88
    %626 = vmatpush.msra.mxu0 %v84
    %627 = vmatpush.msra.mxu0 %v80
    %628 = vmatpush.msra.mxu0 %v76
    %629 = vmatpush.msra.mxu0 %v72
    %630 = vmatpush.msra.mxu0 %v68
    %631 = vmatpush.msra.mxu0 %v64
    %632 = vmatpush.msra.mxu0 %v60
    %633 = vmatpush.msra.mxu0 %v56
    %634 = vmatpush.msra.mxu0 %v52
    %635 = vmatmul.f32.gmra.mxu0 %v614
    %v636 = vpop.f32.mrf.mxu0
    %v637 = vadd.f32 0.0, %v636
    %638 = vdwg.mxu0
    %639 = vmatpush.msra.mxu0 %v113
    %640 = vmatpush.msra.mxu0 %v109
    %641 = vmatpush.msra.mxu0 %v105
    %642 = vmatpush.msra.mxu0 %v101
    %643 = vmatpush.msra.mxu0 %v97
    %644 = vmatpush.msra.mxu0 %v93
    %645 = vmatpush.msra.mxu0 %v89
    %646 = vmatpush.msra.mxu0 %v85
    %647 = vmatpush.msra.mxu0 %v81
    %648 = vmatpush.msra.mxu0 %v77
    %649 = vmatpush.msra.mxu0 %v73
    %650 = vmatpush.msra.mxu0 %v69
    %651 = vmatpush.msra.mxu0 %v65
    %652 = vmatpush.msra.mxu0 %v61
    %653 = vmatpush.msra.mxu0 %v57
    %654 = vmatpush.msra.mxu0 %v53
    %655 = vmatmul.f32.gmra.mxu0 %v614
    %v656 = vpop.f32.mrf.mxu0
    %v657 = vadd.f32 0.0, %v656
    %658 = vdwg.mxu0
    %659 = vmatpush.msra.mxu0 %v114
    %660 = vmatpush.msra.mxu0 %v110
    %661 = vmatpush.msra.mxu0 %v106
    %662 = vmatpush.msra.mxu0 %v102
    %663 = vmatpush.msra.mxu0 %v98
    %664 = vmatpush.msra.mxu0 %v94
    %665 = vmatpush.msra.mxu0 %v90
    %666 = vmatpush.msra.mxu0 %v86
    %667 = vmatpush.msra.mxu0 %v82
    %668 = vmatpush.msra.mxu0 %v78
    %669 = vmatpush.msra.mxu0 %v74
    %670 = vmatpush.msra.mxu0 %v70
    %671 = vmatpush.msra.mxu0 %v66
    %672 = vmatpush.msra.mxu0 %v62
    %673 = vmatpush.msra.mxu0 %v58
    %674 = vmatpush.msra.mxu0 %v54
    %675 = vmatmul.f32.gmra.mxu0 %v614
    %v676 = vpop.f32.mrf.mxu0
    %v677 = vadd.f32 0.0, %v676
    %678 = vdwg.mxu0
    %679 = vmatpush.msra.mxu0 %v115
    %680 = vmatpush.msra.mxu0 %v111
    %681 = vmatpush.msra.mxu0 %v107
    %682 = vmatpush.msra.mxu0 %v103
    %683 = vmatpush.msra.mxu0 %v99
    %684 = vmatpush.msra.mxu0 %v95
    %685 = vmatpush.msra.mxu0 %v91
    %686 = vmatpush.msra.mxu0 %v87
    %687 = vmatpush.msra.mxu0 %v83
    %688 = vmatpush.msra.mxu0 %v79
    %689 = vmatpush.msra.mxu0 %v75
    %690 = vmatpush.msra.mxu0 %v71
    %691 = vmatpush.msra.mxu0 %v67
    %692 = vmatpush.msra.mxu0 %v63
    %693 = vmatpush.msra.mxu0 %v59
    %694 = vmatpush.msra.mxu0 %v55
    %695 = vmatmul.f32.gmra.mxu0 %v614
    %v696 = vpop.f32.mrf.mxu0
    %v697 = vadd.f32 0.0, %v696
    %698 = vdwg.mxu0
    %v703 = vrot.slane %v657, 6
    %v704 = vrot.slane %v677, 4
    %v705 = vrot.slane %v697, 2
    %v706 = vsel %vm206, %v637, %v703
    %v707 = vsel %vm208, %v704, %v705
    %v708 = vsel %vm210, %v706, %v707
    %v710 = vadd.f32 %v618, %v708
    %v711 = vxor.u32 %v710, 2147483648
    %v712 = vmul.f32 %v711, 1.442695
    %v713 = vpow.pop %v712
    %v714 = vadd.f32 %v713, 1.0
    %v715 = vrcp.pop %v714
    %v716 = vmul.f32 %v714, %v715
    %v717 = vsub.f32 1.0, %v716
    %v718 = vmul.f32 %v715, %v717
    %v719 = vadd.f32 %v715, %v718
    %vm720 = vweird.f32 %v714
    %vm721 = vweird.f32 %v715
    %vm722 = vmor %vm720, %vm721
    %v723 = vsel %vm722, %v715, %v719
    %v724 = vand.u32 2147483647, %v714
    %vm725 = vcmp.eq.f32.partialorder %v724, 8.507059e+37
    %v726 = vand.u32 %v714, 2147483648
    %v727 = vor.u32 1.1754944e-38, %v726
    %v728 = vsel %vm725, %v727, %v723
    %v729 = vmul.f32 1.0, %v728
    %v731 = vrot.slane %v710, 2
    %v733 = vxor.u32 %v731, 2147483648
    %v734 = vmul.f32 %v733, 1.442695
    %v735 = vpow.pop %v734
    %v736 = vadd.f32 %v735, 1.0
    %v737 = vrcp.pop %v736
    %v738 = vmul.f32 %v736, %v737
    %v739 = vsub.f32 1.0, %v738
    %v740 = vmul.f32 %v737, %v739
    %v741 = vadd.f32 %v737, %v740
    %vm742 = vweird.f32 %v736
    %vm743 = vweird.f32 %v737
    %vm744 = vmor %vm742, %vm743
    %v745 = vsel %vm744, %v737, %v741
    %v746 = vand.u32 2147483647, %v736
    %vm747 = vcmp.eq.f32.partialorder %v746, 8.507059e+37
    %v748 = vand.u32 %v736, 2147483648
    %v749 = vor.u32 1.1754944e-38, %v748
    %v750 = vsel %vm747, %v749, %v745
    %v751 = vmul.f32 1.0, %v750
    %v752 = vrot.slane %v710, 4
    %v754 = vtanh.pop %v752
    %v755 = vrot.slane %v710, 6
    %v757 = vxor.u32 %v755, 2147483648
    %v758 = vmul.f32 %v757, 1.442695
    %v759 = vpow.pop %v758
    %v760 = vadd.f32 %v759, 1.0
    %v761 = vrcp.pop %v760
    %v762 = vmul.f32 %v760, %v761
    %v763 = vsub.f32 1.0, %v762
    %v764 = vmul.f32 %v761, %v763
    %v765 = vadd.f32 %v761, %v764
    %vm766 = vweird.f32 %v760
    %vm767 = vweird.f32 %v761
    %vm768 = vmor %vm766, %vm767
    %v769 = vsel %vm768, %v761, %v765
    %v770 = vand.u32 2147483647, %v760
    %vm771 = vcmp.eq.f32.partialorder %v770, 8.507059e+37
    %v772 = vand.u32 %v760, 2147483648
    %v773 = vor.u32 1.1754944e-38, %v772
    %v774 = vsel %vm771, %v773, %v769
    %v775 = vmul.f32 1.0, %v774
    %v776 = vmul.f32 %v751, %v612
    %v777 = vmul.f32 %v729, %v754
    %v778 = vadd.f32 %v776, %v777
    %v779 = vtanh.pop %v778
    %v780 = vmul.f32 %v775, %v779
    %s781 = scalar_lea.vmem %s4, 6
    %782 = vst [vmem:[%s781] sm:$0x3] %v780
    %s783 = scalar_lea.vmem %s0, 32
    %v784 = vld [vmem:[%s783] sm:$0xff]
    %785 = vmatpush.msra.mxu0 %v112
    %786 = vmatpush.msra.mxu0 %v108
    %787 = vmatpush.msra.mxu0 %v104
    %788 = vmatpush.msra.mxu0 %v100
    %789 = vmatpush.msra.mxu0 %v96
    %790 = vmatpush.msra.mxu0 %v92
    %791 = vmatpush.msra.mxu0 %v88
    %792 = vmatpush.msra.mxu0 %v84
    %793 = vmatpush.msra.mxu0 %v80
    %794 = vmatpush.msra.mxu0 %v76
    %795 = vmatpush.msra.mxu0 %v72
    %796 = vmatpush.msra.mxu0 %v68
    %797 = vmatpush.msra.mxu0 %v64
    %798 = vmatpush.msra.mxu0 %v60
    %799 = vmatpush.msra.mxu0 %v56
    %800 = vmatpush.msra.mxu0 %v52
    %801 = vmatmul.f32.gmra.mxu0 %v780
    %v802 = vpop.f32.mrf.mxu0
    %v803 = vadd.f32 0.0, %v802
    %804 = vdwg.mxu0
    %805 = vmatpush.msra.mxu0 %v113
    %806 = vmatpush.msra.mxu0 %v109
    %807 = vmatpush.msra.mxu0 %v105
    %808 = vmatpush.msra.mxu0 %v101
    %809 = vmatpush.msra.mxu0 %v97
    %810 = vmatpush.msra.mxu0 %v93
    %811 = vmatpush.msra.mxu0 %v89
    %812 = vmatpush.msra.mxu0 %v85
    %813 = vmatpush.msra.mxu0 %v81
    %814 = vmatpush.msra.mxu0 %v77
    %815 = vmatpush.msra.mxu0 %v73
    %816 = vmatpush.msra.mxu0 %v69
    %817 = vmatpush.msra.mxu0 %v65
    %818 = vmatpush.msra.mxu0 %v61
    %819 = vmatpush.msra.mxu0 %v57
    %820 = vmatpush.msra.mxu0 %v53
    %821 = vmatmul.f32.gmra.mxu0 %v780
    %v822 = vpop.f32.mrf.mxu0
    %v823 = vadd.f32 0.0, %v822
    %824 = vdwg.mxu0
    %825 = vmatpush.msra.mxu0 %v114
    %826 = vmatpush.msra.mxu0 %v110
    %827 = vmatpush.msra.mxu0 %v106
    %828 = vmatpush.msra.mxu0 %v102
    %829 = vmatpush.msra.mxu0 %v98
    %830 = vmatpush.msra.mxu0 %v94
    %831 = vmatpush.msra.mxu0 %v90
    %832 = vmatpush.msra.mxu0 %v86
    %833 = vmatpush.msra.mxu0 %v82
    %834 = vmatpush.msra.mxu0 %v78
    %835 = vmatpush.msra.mxu0 %v74
    %836 = vmatpush.msra.mxu0 %v70
    %837 = vmatpush.msra.mxu0 %v66
    %838 = vmatpush.msra.mxu0 %v62
    %839 = vmatpush.msra.mxu0 %v58
    %840 = vmatpush.msra.mxu0 %v54
    %841 = vmatmul.f32.gmra.mxu0 %v780
    %v842 = vpop.f32.mrf.mxu0
    %v843 = vadd.f32 0.0, %v842
    %844 = vdwg.mxu0
    %845 = vmatpush.msra.mxu0 %v115
    %846 = vmatpush.msra.mxu0 %v111
    %847 = vmatpush.msra.mxu0 %v107
    %848 = vmatpush.msra.mxu0 %v103
    %849 = vmatpush.msra.mxu0 %v99
    %850 = vmatpush.msra.mxu0 %v95
    %851 = vmatpush.msra.mxu0 %v91
    %852 = vmatpush.msra.mxu0 %v87
    %853 = vmatpush.msra.mxu0 %v83
    %854 = vmatpush.msra.mxu0 %v79
    %855 = vmatpush.msra.mxu0 %v75
    %856 = vmatpush.msra.mxu0 %v71
    %857 = vmatpush.msra.mxu0 %v67
    %858 = vmatpush.msra.mxu0 %v63
    %859 = vmatpush.msra.mxu0 %v59
    %860 = vmatpush.msra.mxu0 %v55
    %861 = vmatmul.f32.gmra.mxu0 %v780
    %v862 = vpop.f32.mrf.mxu0
    %v863 = vadd.f32 0.0, %v862
    %864 = vdwg.mxu0
    %v869 = vrot.slane %v823, 6
    %v870 = vrot.slane %v843, 4
    %v871 = vrot.slane %v863, 2
    %v872 = vsel %vm206, %v803, %v869
    %v873 = vsel %vm208, %v870, %v871
    %v874 = vsel %vm210, %v872, %v873
    %v876 = vadd.f32 %v784, %v874
    %v877 = vxor.u32 %v876, 2147483648
    %v878 = vmul.f32 %v877, 1.442695
    %v879 = vpow.pop %v878
    %v880 = vadd.f32 %v879, 1.0
    %v881 = vrcp.pop %v880
    %v882 = vmul.f32 %v880, %v881
    %v883 = vsub.f32 1.0, %v882
    %v884 = vmul.f32 %v881, %v883
    %v885 = vadd.f32 %v881, %v884
    %vm886 = vweird.f32 %v880
    %vm887 = vweird.f32 %v881
    %vm888 = vmor %vm886, %vm887
    %v889 = vsel %vm888, %v881, %v885
    %v890 = vand.u32 2147483647, %v880
    %vm891 = vcmp.eq.f32.partialorder %v890, 8.507059e+37
    %v892 = vand.u32 %v880, 2147483648
    %v893 = vor.u32 1.1754944e-38, %v892
    %v894 = vsel %vm891, %v893, %v889
    %v895 = vmul.f32 1.0, %v894
    %v897 = vrot.slane %v876, 2
    %v899 = vxor.u32 %v897, 2147483648
    %v900 = vmul.f32 %v899, 1.442695
    %v901 = vpow.pop %v900
    %v902 = vadd.f32 %v901, 1.0
    %v903 = vrcp.pop %v902
    %v904 = vmul.f32 %v902, %v903
    %v905 = vsub.f32 1.0, %v904
    %v906 = vmul.f32 %v903, %v905
    %v907 = vadd.f32 %v903, %v906
    %vm908 = vweird.f32 %v902
    %vm909 = vweird.f32 %v903
    %vm910 = vmor %vm908, %vm909
    %v911 = vsel %vm910, %v903, %v907
    %v912 = vand.u32 2147483647, %v902
    %vm913 = vcmp.eq.f32.partialorder %v912, 8.507059e+37
    %v914 = vand.u32 %v902, 2147483648
    %v915 = vor.u32 1.1754944e-38, %v914
    %v916 = vsel %vm913, %v915, %v911
    %v917 = vmul.f32 1.0, %v916
    %v918 = vrot.slane %v876, 4
    %v920 = vtanh.pop %v918
    %v921 = vrot.slane %v876, 6
    %v923 = vxor.u32 %v921, 2147483648
    %v924 = vmul.f32 %v923, 1.442695
    %v925 = vpow.pop %v924
    %v926 = vadd.f32 %v925, 1.0
    %v927 = vrcp.pop %v926
    %v928 = vmul.f32 %v926, %v927
    %v929 = vsub.f32 1.0, %v928
    %v930 = vmul.f32 %v927, %v929
    %v931 = vadd.f32 %v927, %v930
    %vm932 = vweird.f32 %v926
    %vm933 = vweird.f32 %v927
    %vm934 = vmor %vm932, %vm933
    %v935 = vsel %vm934, %v927, %v931
    %v936 = vand.u32 2147483647, %v926
    %vm937 = vcmp.eq.f32.partialorder %v936, 8.507059e+37
    %v938 = vand.u32 %v926, 2147483648
    %v939 = vor.u32 1.1754944e-38, %v938
    %v940 = vsel %vm937, %v939, %v935
    %v941 = vmul.f32 1.0, %v940
    %v942 = vmul.f32 %v917, %v778
    %v943 = vmul.f32 %v895, %v920
    %v944 = vadd.f32 %v942, %v943
    %v945 = vtanh.pop %v944
    %v946 = vmul.f32 %v941, %v945
    %s947 = scalar_lea.vmem %s4, 8
    %948 = vst [vmem:[%s947] sm:$0x3] %v946
    %s949 = scalar_lea.vmem %s0, 40
    %v950 = vld [vmem:[%s949] sm:$0xff]
    %951 = vmatpush.msra.mxu0 %v112
    %952 = vmatpush.msra.mxu0 %v108
    %953 = vmatpush.msra.mxu0 %v104
    %954 = vmatpush.msra.mxu0 %v100
    %955 = vmatpush.msra.mxu0 %v96
    %956 = vmatpush.msra.mxu0 %v92
    %957 = vmatpush.msra.mxu0 %v88
    %958 = vmatpush.msra.mxu0 %v84
    %959 = vmatpush.msra.mxu0 %v80
    %960 = vmatpush.msra.mxu0 %v76
    %961 = vmatpush.msra.mxu0 %v72
    %962 = vmatpush.msra.mxu0 %v68
    %963 = vmatpush.msra.mxu0 %v64
    %964 = vmatpush.msra.mxu0 %v60
    %965 = vmatpush.msra.mxu0 %v56
    %966 = vmatpush.msra.mxu0 %v52
    %967 = vmatmul.f32.gmra.mxu0 %v946
    %v968 = vpop.f32.mrf.mxu0
    %v969 = vadd.f32 0.0, %v968
    %970 = vdwg.mxu0
    %971 = vmatpush.msra.mxu0 %v113
    %972 = vmatpush.msra.mxu0 %v109
    %973 = vmatpush.msra.mxu0 %v105
    %974 = vmatpush.msra.mxu0 %v101
    %975 = vmatpush.msra.mxu0 %v97
    %976 = vmatpush.msra.mxu0 %v93
    %977 = vmatpush.msra.mxu0 %v89
    %978 = vmatpush.msra.mxu0 %v85
    %979 = vmatpush.msra.mxu0 %v81
    %980 = vmatpush.msra.mxu0 %v77
    %981 = vmatpush.msra.mxu0 %v73
    %982 = vmatpush.msra.mxu0 %v69
    %983 = vmatpush.msra.mxu0 %v65
    %984 = vmatpush.msra.mxu0 %v61
    %985 = vmatpush.msra.mxu0 %v57
    %986 = vmatpush.msra.mxu0 %v53
    %987 = vmatmul.f32.gmra.mxu0 %v946
    %v988 = vpop.f32.mrf.mxu0
    %v989 = vadd.f32 0.0, %v988
    %990 = vdwg.mxu0
    %991 = vmatpush.msra.mxu0 %v114
    %992 = vmatpush.msra.mxu0 %v110
    %993 = vmatpush.msra.mxu0 %v106
    %994 = vmatpush.msra.mxu0 %v102
    %995 = vmatpush.msra.mxu0 %v98
    %996 = vmatpush.msra.mxu0 %v94
    %997 = vmatpush.msra.mxu0 %v90
    %998 = vmatpush.msra.mxu0 %v86
    %999 = vmatpush.msra.mxu0 %v82
    %1000 = vmatpush.msra.mxu0 %v78
    %1001 = vmatpush.msra.mxu0 %v74
    %1002 = vmatpush.msra.mxu0 %v70
    %1003 = vmatpush.msra.mxu0 %v66
    %1004 = vmatpush.msra.mxu0 %v62
    %1005 = vmatpush.msra.mxu0 %v58
    %1006 = vmatpush.msra.mxu0 %v54
    %1007 = vmatmul.f32.gmra.mxu0 %v946
    %v1008 = vpop.f32.mrf.mxu0
    %v1009 = vadd.f32 0.0, %v1008
    %1010 = vdwg.mxu0
    %1011 = vmatpush.msra.mxu0 %v115
    %1012 = vmatpush.msra.mxu0 %v111
    %1013 = vmatpush.msra.mxu0 %v107
    %1014 = vmatpush.msra.mxu0 %v103
    %1015 = vmatpush.msra.mxu0 %v99
    %1016 = vmatpush.msra.mxu0 %v95
    %1017 = vmatpush.msra.mxu0 %v91
    %1018 = vmatpush.msra.mxu0 %v87
    %1019 = vmatpush.msra.mxu0 %v83
    %1020 = vmatpush.msra.mxu0 %v79
    %1021 = vmatpush.msra.mxu0 %v75
    %1022 = vmatpush.msra.mxu0 %v71
    %1023 = vmatpush.msra.mxu0 %v67
    %1024 = vmatpush.msra.mxu0 %v63
    %1025 = vmatpush.msra.mxu0 %v59
    %1026 = vmatpush.msra.mxu0 %v55
    %1027 = vmatmul.f32.gmra.mxu0 %v946
    %v1028 = vpop.f32.mrf.mxu0
    %v1029 = vadd.f32 0.0, %v1028
    %1030 = vdwg.mxu0
    %v1035 = vrot.slane %v989, 6
    %v1036 = vrot.slane %v1009, 4
    %v1037 = vrot.slane %v1029, 2
    %v1038 = vsel %vm206, %v969, %v1035
    %v1039 = vsel %vm208, %v1036, %v1037
    %v1040 = vsel %vm210, %v1038, %v1039
    %v1042 = vadd.f32 %v950, %v1040
    %v1043 = vxor.u32 %v1042, 2147483648
    %v1044 = vmul.f32 %v1043, 1.442695
    %v1045 = vpow.pop %v1044
    %v1046 = vadd.f32 %v1045, 1.0
    %v1047 = vrcp.pop %v1046
    %v1048 = vmul.f32 %v1046, %v1047
    %v1049 = vsub.f32 1.0, %v1048
    %v1050 = vmul.f32 %v1047, %v1049
    %v1051 = vadd.f32 %v1047, %v1050
    %vm1052 = vweird.f32 %v1046
    %vm1053 = vweird.f32 %v1047
    %vm1054 = vmor %vm1052, %vm1053
    %v1055 = vsel %vm1054, %v1047, %v1051
    %v1056 = vand.u32 2147483647, %v1046
    %vm1057 = vcmp.eq.f32.partialorder %v1056, 8.507059e+37
    %v1058 = vand.u32 %v1046, 2147483648
    %v1059 = vor.u32 1.1754944e-38, %v1058
    %v1060 = vsel %vm1057, %v1059, %v1055
    %v1061 = vmul.f32 1.0, %v1060
    %v1063 = vrot.slane %v1042, 2
    %v1065 = vxor.u32 %v1063, 2147483648
    %v1066 = vmul.f32 %v1065, 1.442695
    %v1067 = vpow.pop %v1066
    %v1068 = vadd.f32 %v1067, 1.0
    %v1069 = vrcp.pop %v1068
    %v1070 = vmul.f32 %v1068, %v1069
    %v1071 = vsub.f32 1.0, %v1070
    %v1072 = vmul.f32 %v1069, %v1071
    %v1073 = vadd.f32 %v1069, %v1072
    %vm1074 = vweird.f32 %v1068
    %vm1075 = vweird.f32 %v1069
    %vm1076 = vmor %vm1074, %vm1075
    %v1077 = vsel %vm1076, %v1069, %v1073
    %v1078 = vand.u32 2147483647, %v1068
    %vm1079 = vcmp.eq.f32.partialorder %v1078, 8.507059e+37
    %v1080 = vand.u32 %v1068, 2147483648
    %v1081 = vor.u32 1.1754944e-38, %v1080
    %v1082 = vsel %vm1079, %v1081, %v1077
    %v1083 = vmul.f32 1.0, %v1082
    %v1084 = vrot.slane %v1042, 4
    %v1086 = vtanh.pop %v1084
    %v1087 = vrot.slane %v1042, 6
    %v1089 = vxor.u32 %v1087, 2147483648
    %v1090 = vmul.f32 %v1089, 1.442695
    %v1091 = vpow.pop %v1090
    %v1092 = vadd.f32 %v1091, 1.0
    %v1093 = vrcp.pop %v1092
    %v1094 = vmul.f32 %v1092, %v1093
    %v1095 = vsub.f32 1.0, %v1094
    %v1096 = vmul.f32 %v1093, %v1095
    %v1097 = vadd.f32 %v1093, %v1096
    %vm1098 = vweird.f32 %v1092
    %vm1099 = vweird.f32 %v1093
    %vm1100 = vmor %vm1098, %vm1099
    %v1101 = vsel %vm1100, %v1093, %v1097
    %v1102 = vand.u32 2147483647, %v1092
    %vm1103 = vcmp.eq.f32.partialorder %v1102, 8.507059e+37
    %v1104 = vand.u32 %v1092, 2147483648
    %v1105 = vor.u32 1.1754944e-38, %v1104
    %v1106 = vsel %vm1103, %v1105, %v1101
    %v1107 = vmul.f32 1.0, %v1106
    %v1108 = vmul.f32 %v1083, %v944
    %v1109 = vmul.f32 %v1061, %v1086
    %v1110 = vadd.f32 %v1108, %v1109
    %v1111 = vtanh.pop %v1110
    %v1112 = vmul.f32 %v1107, %v1111
    %s1113 = scalar_lea.vmem %s4, 10
    %1114 = vst [vmem:[%s1113] sm:$0x3] %v1112
    %s1115 = scalar_lea.vmem %s0, 48
    %v1116 = vld [vmem:[%s1115] sm:$0xff]
    %1117 = vmatpush.msra.mxu0 %v112
    %1118 = vmatpush.msra.mxu0 %v108
    %1119 = vmatpush.msra.mxu0 %v104
    %1120 = vmatpush.msra.mxu0 %v100
    %1121 = vmatpush.msra.mxu0 %v96
    %1122 = vmatpush.msra.mxu0 %v92
    %1123 = vmatpush.msra.mxu0 %v88
    %1124 = vmatpush.msra.mxu0 %v84
    %1125 = vmatpush.msra.mxu0 %v80
    %1126 = vmatpush.msra.mxu0 %v76
    %1127 = vmatpush.msra.mxu0 %v72
    %1128 = vmatpush.msra.mxu0 %v68
    %1129 = vmatpush.msra.mxu0 %v64
    %1130 = vmatpush.msra.mxu0 %v60
    %1131 = vmatpush.msra.mxu0 %v56
    %1132 = vmatpush.msra.mxu0 %v52
    %1133 = vmatmul.f32.gmra.mxu0 %v1112
    %v1134 = vpop.f32.mrf.mxu0
    %v1135 = vadd.f32 0.0, %v1134
    %1136 = vdwg.mxu0
    %1137 = vmatpush.msra.mxu0 %v113
    %1138 = vmatpush.msra.mxu0 %v109
    %1139 = vmatpush.msra.mxu0 %v105
    %1140 = vmatpush.msra.mxu0 %v101
    %1141 = vmatpush.msra.mxu0 %v97
    %1142 = vmatpush.msra.mxu0 %v93
    %1143 = vmatpush.msra.mxu0 %v89
    %1144 = vmatpush.msra.mxu0 %v85
    %1145 = vmatpush.msra.mxu0 %v81
    %1146 = vmatpush.msra.mxu0 %v77
    %1147 = vmatpush.msra.mxu0 %v73
    %1148 = vmatpush.msra.mxu0 %v69
    %1149 = vmatpush.msra.mxu0 %v65
    %1150 = vmatpush.msra.mxu0 %v61
    %1151 = vmatpush.msra.mxu0 %v57
    %1152 = vmatpush.msra.mxu0 %v53
    %1153 = vmatmul.f32.gmra.mxu0 %v1112
    %v1154 = vpop.f32.mrf.mxu0
    %v1155 = vadd.f32 0.0, %v1154
    %1156 = vdwg.mxu0
    %1157 = vmatpush.msra.mxu0 %v114
    %1158 = vmatpush.msra.mxu0 %v110
    %1159 = vmatpush.msra.mxu0 %v106
    %1160 = vmatpush.msra.mxu0 %v102
    %1161 = vmatpush.msra.mxu0 %v98
    %1162 = vmatpush.msra.mxu0 %v94
    %1163 = vmatpush.msra.mxu0 %v90
    %1164 = vmatpush.msra.mxu0 %v86
    %1165 = vmatpush.msra.mxu0 %v82
    %1166 = vmatpush.msra.mxu0 %v78
    %1167 = vmatpush.msra.mxu0 %v74
    %1168 = vmatpush.msra.mxu0 %v70
    %1169 = vmatpush.msra.mxu0 %v66
    %1170 = vmatpush.msra.mxu0 %v62
    %1171 = vmatpush.msra.mxu0 %v58
    %1172 = vmatpush.msra.mxu0 %v54
    %1173 = vmatmul.f32.gmra.mxu0 %v1112
    %v1174 = vpop.f32.mrf.mxu0
    %v1175 = vadd.f32 0.0, %v1174
    %1176 = vdwg.mxu0
    %1177 = vmatpush.msra.mxu0 %v115
    %1178 = vmatpush.msra.mxu0 %v111
    %1179 = vmatpush.msra.mxu0 %v107
    %1180 = vmatpush.msra.mxu0 %v103
    %1181 = vmatpush.msra.mxu0 %v99
    %1182 = vmatpush.msra.mxu0 %v95
    %1183 = vmatpush.msra.mxu0 %v91
    %1184 = vmatpush.msra.mxu0 %v87
    %1185 = vmatpush.msra.mxu0 %v83
    %1186 = vmatpush.msra.mxu0 %v79
    %1187 = vmatpush.msra.mxu0 %v75
    %1188 = vmatpush.msra.mxu0 %v71
    %1189 = vmatpush.msra.mxu0 %v67
    %1190 = vmatpush.msra.mxu0 %v63
    %1191 = vmatpush.msra.mxu0 %v59
    %1192 = vmatpush.msra.mxu0 %v55
    %1193 = vmatmul.f32.gmra.mxu0 %v1112
    %v1194 = vpop.f32.mrf.mxu0
    %v1195 = vadd.f32 0.0, %v1194
    %1196 = vdwg.mxu0
    %v1201 = vrot.slane %v1155, 6
    %v1202 = vrot.slane %v1175, 4
    %v1203 = vrot.slane %v1195, 2
    %v1204 = vsel %vm206, %v1135, %v1201
    %v1205 = vsel %vm208, %v1202, %v1203
    %v1206 = vsel %vm210, %v1204, %v1205
    %v1208 = vadd.f32 %v1116, %v1206
    %v1209 = vxor.u32 %v1208, 2147483648
    %v1210 = vmul.f32 %v1209, 1.442695
    %v1211 = vpow.pop %v1210
    %v1212 = vadd.f32 %v1211, 1.0
    %v1213 = vrcp.pop %v1212
    %v1214 = vmul.f32 %v1212, %v1213
    %v1215 = vsub.f32 1.0, %v1214
    %v1216 = vmul.f32 %v1213, %v1215
    %v1217 = vadd.f32 %v1213, %v1216
    %vm1218 = vweird.f32 %v1212
    %vm1219 = vweird.f32 %v1213
    %vm1220 = vmor %vm1218, %vm1219
    %v1221 = vsel %vm1220, %v1213, %v1217
    %v1222 = vand.u32 2147483647, %v1212
    %vm1223 = vcmp.eq.f32.partialorder %v1222, 8.507059e+37
    %v1224 = vand.u32 %v1212, 2147483648
    %v1225 = vor.u32 1.1754944e-38, %v1224
    %v1226 = vsel %vm1223, %v1225, %v1221
    %v1227 = vmul.f32 1.0, %v1226
    %v1229 = vrot.slane %v1208, 2
    %v1231 = vxor.u32 %v1229, 2147483648
    %v1232 = vmul.f32 %v1231, 1.442695
    %v1233 = vpow.pop %v1232
    %v1234 = vadd.f32 %v1233, 1.0
    %v1235 = vrcp.pop %v1234
    %v1236 = vmul.f32 %v1234, %v1235
    %v1237 = vsub.f32 1.0, %v1236
    %v1238 = vmul.f32 %v1235, %v1237
    %v1239 = vadd.f32 %v1235, %v1238
    %vm1240 = vweird.f32 %v1234
    %vm1241 = vweird.f32 %v1235
    %vm1242 = vmor %vm1240, %vm1241
    %v1243 = vsel %vm1242, %v1235, %v1239
    %v1244 = vand.u32 2147483647, %v1234
    %vm1245 = vcmp.eq.f32.partialorder %v1244, 8.507059e+37
    %v1246 = vand.u32 %v1234, 2147483648
    %v1247 = vor.u32 1.1754944e-38, %v1246
    %v1248 = vsel %vm1245, %v1247, %v1243
    %v1249 = vmul.f32 1.0, %v1248
    %v1250 = vrot.slane %v1208, 4
    %v1252 = vtanh.pop %v1250
    %v1253 = vrot.slane %v1208, 6
    %v1255 = vxor.u32 %v1253, 2147483648
    %v1256 = vmul.f32 %v1255, 1.442695
    %v1257 = vpow.pop %v1256
    %v1258 = vadd.f32 %v1257, 1.0
    %v1259 = vrcp.pop %v1258
    %v1260 = vmul.f32 %v1258, %v1259
    %v1261 = vsub.f32 1.0, %v1260
    %v1262 = vmul.f32 %v1259, %v1261
    %v1263 = vadd.f32 %v1259, %v1262
    %vm1264 = vweird.f32 %v1258
    %vm1265 = vweird.f32 %v1259
    %vm1266 = vmor %vm1264, %vm1265
    %v1267 = vsel %vm1266, %v1259, %v1263
    %v1268 = vand.u32 2147483647, %v1258
    %vm1269 = vcmp.eq.f32.partialorder %v1268, 8.507059e+37
    %v1270 = vand.u32 %v1258, 2147483648
    %v1271 = vor.u32 1.1754944e-38, %v1270
    %v1272 = vsel %vm1269, %v1271, %v1267
    %v1273 = vmul.f32 1.0, %v1272
    %v1274 = vmul.f32 %v1249, %v1110
    %v1275 = vmul.f32 %v1227, %v1252
    %v1276 = vadd.f32 %v1274, %v1275
    %v1277 = vtanh.pop %v1276
    %v1278 = vmul.f32 %v1273, %v1277
    %s1279 = scalar_lea.vmem %s4, 12
    %1280 = vst [vmem:[%s1279] sm:$0x3] %v1278
    %s1281 = scalar_lea.vmem %s0, 56
    %v1282 = vld [vmem:[%s1281] sm:$0xff]
    %1283 = vmatpush.msra.mxu0 %v112
    %1284 = vmatpush.msra.mxu0 %v108
    %1285 = vmatpush.msra.mxu0 %v104
    %1286 = vmatpush.msra.mxu0 %v100
    %1287 = vmatpush.msra.mxu0 %v96
    %1288 = vmatpush.msra.mxu0 %v92
    %1289 = vmatpush.msra.mxu0 %v88
    %1290 = vmatpush.msra.mxu0 %v84
    %1291 = vmatpush.msra.mxu0 %v80
    %1292 = vmatpush.msra.mxu0 %v76
    %1293 = vmatpush.msra.mxu0 %v72
    %1294 = vmatpush.msra.mxu0 %v68
    %1295 = vmatpush.msra.mxu0 %v64
    %1296 = vmatpush.msra.mxu0 %v60
    %1297 = vmatpush.msra.mxu0 %v56
    %1298 = vmatpush.msra.mxu0 %v52
    %1299 = vmatmul.f32.gmra.mxu0 %v1278
    %v1300 = vpop.f32.mrf.mxu0
    %v1301 = vadd.f32 0.0, %v1300
    %1302 = vdwg.mxu0
    %1303 = vmatpush.msra.mxu0 %v113
    %1304 = vmatpush.msra.mxu0 %v109
    %1305 = vmatpush.msra.mxu0 %v105
    %1306 = vmatpush.msra.mxu0 %v101
    %1307 = vmatpush.msra.mxu0 %v97
    %1308 = vmatpush.msra.mxu0 %v93
    %1309 = vmatpush.msra.mxu0 %v89
    %1310 = vmatpush.msra.mxu0 %v85
    %1311 = vmatpush.msra.mxu0 %v81
    %1312 = vmatpush.msra.mxu0 %v77
    %1313 = vmatpush.msra.mxu0 %v73
    %1314 = vmatpush.msra.mxu0 %v69
    %1315 = vmatpush.msra.mxu0 %v65
    %1316 = vmatpush.msra.mxu0 %v61
    %1317 = vmatpush.msra.mxu0 %v57
    %1318 = vmatpush.msra.mxu0 %v53
    %1319 = vmatmul.f32.gmra.mxu0 %v1278
    %v1320 = vpop.f32.mrf.mxu0
    %v1321 = vadd.f32 0.0, %v1320
    %1322 = vdwg.mxu0
    %1323 = vmatpush.msra.mxu0 %v114
    %1324 = vmatpush.msra.mxu0 %v110
    %1325 = vmatpush.msra.mxu0 %v106
    %1326 = vmatpush.msra.mxu0 %v102
    %1327 = vmatpush.msra.mxu0 %v98
    %1328 = vmatpush.msra.mxu0 %v94
    %1329 = vmatpush.msra.mxu0 %v90
    %1330 = vmatpush.msra.mxu0 %v86
    %1331 = vmatpush.msra.mxu0 %v82
    %1332 = vmatpush.msra.mxu0 %v78
    %1333 = vmatpush.msra.mxu0 %v74
    %1334 = vmatpush.msra.mxu0 %v70
    %1335 = vmatpush.msra.mxu0 %v66
    %1336 = vmatpush.msra.mxu0 %v62
    %1337 = vmatpush.msra.mxu0 %v58
    %1338 = vmatpush.msra.mxu0 %v54
    %1339 = vmatmul.f32.gmra.mxu0 %v1278
    %v1340 = vpop.f32.mrf.mxu0
    %v1341 = vadd.f32 0.0, %v1340
    %1342 = vdwg.mxu0
    %1343 = vmatpush.msra.mxu0 %v115
    %1344 = vmatpush.msra.mxu0 %v111
    %1345 = vmatpush.msra.mxu0 %v107
    %1346 = vmatpush.msra.mxu0 %v103
    %1347 = vmatpush.msra.mxu0 %v99
    %1348 = vmatpush.msra.mxu0 %v95
    %1349 = vmatpush.msra.mxu0 %v91
    %1350 = vmatpush.msra.mxu0 %v87
    %1351 = vmatpush.msra.mxu0 %v83
    %1352 = vmatpush.msra.mxu0 %v79
    %1353 = vmatpush.msra.mxu0 %v75
    %1354 = vmatpush.msra.mxu0 %v71
    %1355 = vmatpush.msra.mxu0 %v67
    %1356 = vmatpush.msra.mxu0 %v63
    %1357 = vmatpush.msra.mxu0 %v59
    %1358 = vmatpush.msra.mxu0 %v55
    %1359 = vmatmul.f32.gmra.mxu0 %v1278
    %v1360 = vpop.f32.mrf.mxu0
    %v1361 = vadd.f32 0.0, %v1360
    %1362 = vdwg.mxu0
    %v1367 = vrot.slane %v1321, 6
    %v1368 = vrot.slane %v1341, 4
    %v1369 = vrot.slane %v1361, 2
    %v1370 = vsel %vm206, %v1301, %v1367
    %v1371 = vsel %vm208, %v1368, %v1369
    %v1372 = vsel %vm210, %v1370, %v1371
    %v1374 = vadd.f32 %v1282, %v1372
    %v1375 = vxor.u32 %v1374, 2147483648
    %v1376 = vmul.f32 %v1375, 1.442695
    %v1377 = vpow.pop %v1376
    %v1378 = vadd.f32 %v1377, 1.0
    %v1379 = vrcp.pop %v1378
    %v1380 = vmul.f32 %v1378, %v1379
    %v1381 = vsub.f32 1.0, %v1380
    %v1382 = vmul.f32 %v1379, %v1381
    %v1383 = vadd.f32 %v1379, %v1382
    %vm1384 = vweird.f32 %v1378
    %vm1385 = vweird.f32 %v1379
    %vm1386 = vmor %vm1384, %vm1385
    %v1387 = vsel %vm1386, %v1379, %v1383
    %v1388 = vand.u32 2147483647, %v1378
    %vm1389 = vcmp.eq.f32.partialorder %v1388, 8.507059e+37
    %v1390 = vand.u32 %v1378, 2147483648
    %v1391 = vor.u32 1.1754944e-38, %v1390
    %v1392 = vsel %vm1389, %v1391, %v1387
    %v1393 = vmul.f32 1.0, %v1392
    %v1395 = vrot.slane %v1374, 2
    %v1397 = vxor.u32 %v1395, 2147483648
    %v1398 = vmul.f32 %v1397, 1.442695
    %v1399 = vpow.pop %v1398
    %v1400 = vadd.f32 %v1399, 1.0
    %v1401 = vrcp.pop %v1400
    %v1402 = vmul.f32 %v1400, %v1401
    %v1403 = vsub.f32 1.0, %v1402
    %v1404 = vmul.f32 %v1401, %v1403
    %v1405 = vadd.f32 %v1401, %v1404
    %vm1406 = vweird.f32 %v1400
    %vm1407 = vweird.f32 %v1401
    %vm1408 = vmor %vm1406, %vm1407
    %v1409 = vsel %vm1408, %v1401, %v1405
    %v1410 = vand.u32 2147483647, %v1400
    %vm1411 = vcmp.eq.f32.partialorder %v1410, 8.507059e+37
    %v1412 = vand.u32 %v1400, 2147483648
    %v1413 = vor.u32 1.1754944e-38, %v1412
    %v1414 = vsel %vm1411, %v1413, %v1409
    %v1415 = vmul.f32 1.0, %v1414
    %v1416 = vrot.slane %v1374, 4
    %v1418 = vtanh.pop %v1416
    %v1419 = vrot.slane %v1374, 6
    %v1421 = vxor.u32 %v1419, 2147483648
    %v1422 = vmul.f32 %v1421, 1.442695
    %v1423 = vpow.pop %v1422
    %v1424 = vadd.f32 %v1423, 1.0
    %v1425 = vrcp.pop %v1424
    %v1426 = vmul.f32 %v1424, %v1425
    %v1427 = vsub.f32 1.0, %v1426
    %v1428 = vmul.f32 %v1425, %v1427
    %v1429 = vadd.f32 %v1425, %v1428
    %vm1430 = vweird.f32 %v1424
    %vm1431 = vweird.f32 %v1425
    %vm1432 = vmor %vm1430, %vm1431
    %v1433 = vsel %vm1432, %v1425, %v1429
    %v1434 = vand.u32 2147483647, %v1424
    %vm1435 = vcmp.eq.f32.partialorder %v1434, 8.507059e+37
    %v1436 = vand.u32 %v1424, 2147483648
    %v1437 = vor.u32 1.1754944e-38, %v1436
    %v1438 = vsel %vm1435, %v1437, %v1433
    %v1439 = vmul.f32 1.0, %v1438
    %v1440 = vmul.f32 %v1415, %v1276
    %v1441 = vmul.f32 %v1393, %v1418
    %v1442 = vadd.f32 %v1440, %v1441
    %v1443 = vtanh.pop %v1442
    %v1444 = vmul.f32 %v1439, %v1443
    %s1445 = scalar_lea.vmem %s4, 14
    %1446 = vst [vmem:[%s1445] sm:$0x3] %v1444
    %1447 = vst [vmem:[#allocation7] sm:$0x3] %v1444
    %1448 = vst [vmem:[#allocation8] sm:$0x3] %v1442
    // Predicated region
    $region26: #{decoder_forward.7} parent=1 // pred_check
      _
    $region27: #{decoder_forward.7} parent=1 // pred_check_branch
      %1450 = sbr.rel (0) target = $region29
    $region28: #{decoder_forward.7} parent=1 // pred_region
      _
    $region29: #{decoder_forward.7} parent=1 // pred_fallthru
      _
    // Predicated region
    $region30: #{decoder_forward.7} parent=1 // pred_check
      _
    $region31: #{decoder_forward.7} parent=1 // pred_check_branch
      %1452 = sbr.rel (0) target = $region33
    $region32: #{decoder_forward.7} parent=1 // pred_region
      %1454 = vsyncadd [#allocation4], 0
      %s1456 = sshll.u32 [#allocation7], 4
      %s1457 = int_to_ptr.vmem [resolvable:$true] %s1456
      %s1458 = sshll.u32 %s5, 4
      %s1459 = int_to_ptr.hbm [resolvable:$true] %s1458
      %1461 = dma.vmem_to_hbm [thread:$0]  %s1457, 32, %s1459, [#allocation4]
    $region33: #{decoder_forward.7} parent=1 // pred_fallthru
      _
    // Predicated region
    $region34: #{decoder_forward.7} parent=1 // pred_check
      _
    $region35: #{decoder_forward.7} parent=1 // pred_check_branch
      %1463 = sbr.rel (0) target = $region37
    $region36: #{decoder_forward.7} parent=1 // pred_region
      %1465 = vsyncadd [#allocation9], 0
      %s1467 = sshll.u32 [#allocation8], 4
      %s1468 = int_to_ptr.vmem [resolvable:$true] %s1467
      %s1469 = sshll.u32 %s6, 4
      %s1470 = int_to_ptr.hbm [resolvable:$true] %s1469
      %1472 = dma.vmem_to_hbm [thread:$0]  %s1468, 32, %s1470, [#allocation9]
    $region37: #{decoder_forward.7} parent=1 // pred_fallthru
      _
    // Predicated region
    $region38: #{decoder_forward.7} parent=1 // pred_check
      _
    $region39: #{decoder_forward.7} parent=1 // pred_check_branch
      %1474 = sbr.rel (0) target = $region41
    $region40: #{decoder_forward.7} parent=1 // pred_region
      _
    $region41: #{decoder_forward.7} parent=1 // pred_fallthru
      _
    // Predicated region
    $region42: #{decoder_forward.7} parent=1 // pred_check
      _
    $region43: #{decoder_forward.7} parent=1 // pred_check_branch
      %1476 = sbr.rel (0) target = $region45
    $region44: #{decoder_forward.7} parent=1 // pred_region
      %1478 = dma.done [#allocation4], 32
    $region45: #{decoder_forward.7} parent=1 // pred_fallthru
      _
    // Predicated region
    $region46: #{decoder_forward.7} parent=1 // pred_check
      _
    $region47: #{decoder_forward.7} parent=1 // pred_check_branch
      %1480 = sbr.rel (0) target = $region49
    $region48: #{decoder_forward.7} parent=1 // pred_region
      %1482 = dma.done [#allocation9], 32
    $region49: #{decoder_forward.7} parent=1 // pred_fallthru
      _
    %1483 = vsyncpa [#allocation3], 1
    %1484 = vsyncpa [#allocation6], 1
    %1485 = vsyncpa [#allocation4], 1
    %1486 = vsyncpa [#allocation9], 1

// kernel: decoder_forward.9
$region0: #{decoder_forward.9}
  #allocation0 [shape = 'u32[]', space=smem, size = 0x4, offset = 0x4, fixed_abs, tag = 'smem constant byte address 0x4 - core index']
  #allocation1 [shape = 'u32[72,128]{1,0:T(1,128)}', space=vmem, size = 0x9000, scoped, tag = 'internal scratch']
  %s0 = inlined_call_operand.vmem [shape: f32[2,8,128], index: 0, kind: input, shape index: {}]
  %s1 = inlined_call_operand.vmem [shape: f32[2,16,128], index: 1, kind: input, shape index: {}]
  %s2 = inlined_call_operand.vmem [shape: f32[2,24,128], index: 2, kind: input, shape index: {}]
  %s3 = inlined_call_operand.vmem [shape: f32[640,128], index: 3, kind: input, shape index: {}]
  %s4 = inlined_call_operand.vmem [shape: f32[1,128], index: 4, kind: input, shape index: {}]
  %s5 = inlined_call_operand.vmem [shape: f32[128,256], index: 5, kind: input, shape index: {}]
  %s6 = inlined_call_operand.vmem [shape: f32[1,256], index: 6, kind: input, shape index: {}]
  %s7 = inlined_call_operand.hbm [shape: f32[2,8,256], index: 7, kind: output, shape index: {}]
  %s8 = sld [smem:[#allocation0]]
  $region61: #{decoder_forward.9} parent=0
    _
  %s10 = ssub.s32 1, %s8
  %s11 = scalar_select 0, %s10, %s8
  $region1: #{decoder_forward.9} parent=0
    #allocation2 [shape = 'u8[16384]{0}', space=vmem, size = 0x4000, scoped, tag = 'output window, operand 0']
    #allocation3 [shape = 's32[2]{0}', space=sflag, size = 0x8, scoped, tag = 'scoped memory for decoder_forward.9']
    %12 = vsyncpa [#allocation3], 0
    %s13 = scalar_lea.sflag [#allocation3], 1
    %14 = vsyncpa %s13, 0
    loop: start=0, step=1, limit=4
    $region2: #{decoder_forward.9} parent=1 // loop_pre_header
      _
    $region3: #{decoder_forward.9} parent=1 // loop_header
      %s16 = sphi 0, %s20
      %p17 = scmp.ge.s32.totalorder %s16, 4
      %s26 = sphi 0, %s28
      %s29 = sphi 0, %s26
      %s30 = sphi 0, %s29
      %s46 = sphi 0, %s30
      %s52 = sphi 0, %s54
      %s55 = sphi 0, %s52
      %s56 = sphi 0, %s55
      %s72 = sphi 0, %s56
      %s78 = sphi 0, %s80
      %s81 = sphi 0, %s78
      %s82 = sphi 0, %s81
      %s98 = sphi 0, %s82
      %s102 = sphi 0, %s102
      %s104 = sphi 0, %s102
      %s105 = sphi 0, %s104
      %s119 = sphi 0, %s105
      %s123 = sphi 0, %s123
      %s125 = sphi 0, %s123
      %s126 = sphi 0, %s125
      %s140 = sphi 0, %s126
      %s144 = sphi 0, %s144
      %s146 = sphi 0, %s144
      %s147 = sphi 0, %s146
      %s161 = sphi 0, %s147
      %s165 = sphi 0, %s165
      %s167 = sphi 0, %s165
      %s168 = sphi 0, %s167
      %s182 = sphi 0, %s168
      %s188 = sphi 0, %s190
      %s191 = sphi 0, %s188
      %s192 = sphi 0, %s191
      %s208 = sphi 0, %s192
    $region4: #{decoder_forward.9} parent=1 // loop_header_branch
      %19 = sbr.rel (%p17) target = $region8
    $region5: #{decoder_forward.9} parent=1 // loop_body
      %s21 = ssub.s32 %s16, 1
      %s22 = ssub.s32 %s16, 2
      %s23 = sadd.s32 %s16, 1
      %s24 = ssub.s32 %s16, %s23
      %p25 = scmp.eq.s32.totalorder %s24, 0
      %s27 = sadd.s32 %s26, 1
      %s28 = scalar_select %p25, %s26, %s27
      %p31 = pneg %p25
      %p32 = scmp.eq.s32.totalorder %s16, 1
      %p33 = por %p31, %p32
      %p34 = scmp.ne.s32.totalorder %s26, %s29
      %p35 = scmp.eq.s32.totalorder %s16, 0
      %p36 = por %p34, %p35
      %p37 = scmp.ne.s32.totalorder %s26, %s29
      %p38 = scmp.eq.s32.totalorder %s21, 1
      %p39 = por %p37, %p38
      %p40 = scmp.ne.s32.totalorder %s29, %s30
      %p41 = scmp.eq.s32.totalorder %s21, 0
      %p42 = por %p40, %p41
      %p43 = scmp.ne.s32.totalorder %s29, %s30
      %p44 = scmp.eq.s32.totalorder %s22, 1
      %p45 = por %p43, %p44
      %p47 = scmp.ne.s32.totalorder %s30, %s46
      %p48 = scmp.eq.s32.totalorder %s22, 0
      %p49 = por %p47, %p48
      %s50 = ssub.s32 %s16, %s23
      %p51 = scmp.eq.s32.totalorder %s50, 0
      %s53 = sadd.s32 %s52, 1
      %s54 = scalar_select %p51, %s52, %s53
      %p57 = pneg %p51
      %p58 = scmp.eq.s32.totalorder %s16, 1
      %p59 = por %p57, %p58
      %p60 = scmp.ne.s32.totalorder %s52, %s55
      %p61 = scmp.eq.s32.totalorder %s16, 0
      %p62 = por %p60, %p61
      %p63 = scmp.ne.s32.totalorder %s52, %s55
      %p64 = scmp.eq.s32.totalorder %s21, 1
      %p65 = por %p63, %p64
      %p66 = scmp.ne.s32.totalorder %s55, %s56
      %p67 = scmp.eq.s32.totalorder %s21, 0
      %p68 = por %p66, %p67
      %p69 = scmp.ne.s32.totalorder %s55, %s56
      %p70 = scmp.eq.s32.totalorder %s22, 1
      %p71 = por %p69, %p70
      %p73 = scmp.ne.s32.totalorder %s56, %s72
      %p74 = scmp.eq.s32.totalorder %s22, 0
      %p75 = por %p73, %p74
      %s76 = ssub.s32 %s16, %s23
      %p77 = scmp.eq.s32.totalorder %s76, 0
      %s79 = sadd.s32 %s78, 1
      %s80 = scalar_select %p77, %s78, %s79
      %p83 = pneg %p77
      %p84 = scmp.eq.s32.totalorder %s16, 1
      %p85 = por %p83, %p84
      %p86 = scmp.ne.s32.totalorder %s78, %s81
      %p87 = scmp.eq.s32.totalorder %s16, 0
      %p88 = por %p86, %p87
      %p89 = scmp.ne.s32.totalorder %s78, %s81
      %p90 = scmp.eq.s32.totalorder %s21, 1
      %p91 = por %p89, %p90
      %p92 = scmp.ne.s32.totalorder %s81, %s82
      %p93 = scmp.eq.s32.totalorder %s21, 0
      %p94 = por %p92, %p93
      %p95 = scmp.ne.s32.totalorder %s81, %s82
      %p96 = scmp.eq.s32.totalorder %s22, 1
      %p97 = por %p95, %p96
      %p99 = scmp.ne.s32.totalorder %s82, %s98
      %p100 = scmp.eq.s32.totalorder %s22, 0
      %p101 = por %p99, %p100
      %s103 = sadd.s32 %s102, 1
      %p106 = scmp.eq.s32.totalorder %s16, 1
      %p107 = scmp.ne.s32.totalorder %s102, %s104
      %p108 = scmp.eq.s32.totalorder %s16, 0
      %p109 = por %p107, %p108
      %p110 = scmp.ne.s32.totalorder %s102, %s104
      %p111 = scmp.eq.s32.totalorder %s21, 1
      %p112 = por %p110, %p111
      %p113 = scmp.ne.s32.totalorder %s104, %s105
      %p114 = scmp.eq.s32.totalorder %s21, 0
      %p115 = por %p113, %p114
      %p116 = scmp.ne.s32.totalorder %s104, %s105
      %p117 = scmp.eq.s32.totalorder %s22, 1
      %p118 = por %p116, %p117
      %p120 = scmp.ne.s32.totalorder %s105, %s119
      %p121 = scmp.eq.s32.totalorder %s22, 0
      %p122 = por %p120, %p121
      %s124 = sadd.s32 %s123, 1
      %p127 = scmp.eq.s32.totalorder %s16, 1
      %p128 = scmp.ne.s32.totalorder %s123, %s125
      %p129 = scmp.eq.s32.totalorder %s16, 0
      %p130 = por %p128, %p129
      %p131 = scmp.ne.s32.totalorder %s123, %s125
      %p132 = scmp.eq.s32.totalorder %s21, 1
      %p133 = por %p131, %p132
      %p134 = scmp.ne.s32.totalorder %s125, %s126
      %p135 = scmp.eq.s32.totalorder %s21, 0
      %p136 = por %p134, %p135
      %p137 = scmp.ne.s32.totalorder %s125, %s126
      %p138 = scmp.eq.s32.totalorder %s22, 1
      %p139 = por %p137, %p138
      %p141 = scmp.ne.s32.totalorder %s126, %s140
      %p142 = scmp.eq.s32.totalorder %s22, 0
      %p143 = por %p141, %p142
      %s145 = sadd.s32 %s144, 1
      %p148 = scmp.eq.s32.totalorder %s16, 1
      %p149 = scmp.ne.s32.totalorder %s144, %s146
      %p150 = scmp.eq.s32.totalorder %s16, 0
      %p151 = por %p149, %p150
      %p152 = scmp.ne.s32.totalorder %s144, %s146
      %p153 = scmp.eq.s32.totalorder %s21, 1
      %p154 = por %p152, %p153
      %p155 = scmp.ne.s32.totalorder %s146, %s147
      %p156 = scmp.eq.s32.totalorder %s21, 0
      %p157 = por %p155, %p156
      %p158 = scmp.ne.s32.totalorder %s146, %s147
      %p159 = scmp.eq.s32.totalorder %s22, 1
      %p160 = por %p158, %p159
      %p162 = scmp.ne.s32.totalorder %s147, %s161
      %p163 = scmp.eq.s32.totalorder %s22, 0
      %p164 = por %p162, %p163
      %s166 = sadd.s32 %s165, 1
      %p169 = scmp.eq.s32.totalorder %s16, 1
      %p170 = scmp.ne.s32.totalorder %s165, %s167
      %p171 = scmp.eq.s32.totalorder %s16, 0
      %p172 = por %p170, %p171
      %p173 = scmp.ne.s32.totalorder %s165, %s167
      %p174 = scmp.eq.s32.totalorder %s21, 1
      %p175 = por %p173, %p174
      %p176 = scmp.ne.s32.totalorder %s167, %s168
      %p177 = scmp.eq.s32.totalorder %s21, 0
      %p178 = por %p176, %p177
      %p179 = scmp.ne.s32.totalorder %s167, %s168
      %p180 = scmp.eq.s32.totalorder %s22, 1
      %p181 = por %p179, %p180
      %p183 = scmp.ne.s32.totalorder %s168, %s182
      %p184 = scmp.eq.s32.totalorder %s22, 0
      %p185 = por %p183, %p184
      %s186 = ssub.s32 %s16, %s23
      %p187 = scmp.eq.s32.totalorder %s186, 0
      %s189 = sadd.s32 %s188, 1
      %s190 = scalar_select %p187, %s188, %s189
      %p193 = pneg %p187
      %p194 = scmp.eq.s32.totalorder %s16, 1
      %p195 = por %p193, %p194
      %p196 = scmp.ne.s32.totalorder %s188, %s191
      %p197 = scmp.eq.s32.totalorder %s16, 0
      %p198 = por %p196, %p197
      %p199 = scmp.ne.s32.totalorder %s188, %s191
      %p200 = scmp.eq.s32.totalorder %s21, 1
      %p201 = por %p199, %p200
      %p202 = scmp.ne.s32.totalorder %s191, %s192
      %p203 = scmp.eq.s32.totalorder %s21, 0
      %p204 = por %p202, %p203
      %p205 = scmp.ne.s32.totalorder %s191, %s192
      %p206 = scmp.eq.s32.totalorder %s22, 1
      %p207 = por %p205, %p206
      %p209 = scmp.ne.s32.totalorder %s192, %s208
      %p210 = scmp.eq.s32.totalorder %s22, 0
      %p211 = por %p209, %p210
      %p212 = scmp.le.s32.totalorder 1, %s16
      %p213 = scmp.lt.s32.totalorder %s16, 3
      %p214 = pnand %p212, %p213
      %p215 = pneg %p214
      // Predicated region
      $region9: #{decoder_forward.9} parent=5 // pred_check
        _
      $region10: #{decoder_forward.9} parent=5 // pred_check_branch
        %217 = sbr.rel (%p214) target = $region12
      $region11: #{decoder_forward.9} parent=5 // pred_region
        %s218 = ssub.s32 %s16, 1
        // Predicated region
        $region13: #{decoder_forward.9} parent=11 // pred_check
          %p219 = pneg %p115
        $region14: #{decoder_forward.9} parent=11 // pred_check_branch
          %221 = sbr.rel (%p219) target = $region16
        $region15: #{decoder_forward.9} parent=11 // pred_region
          _
        $region16: #{decoder_forward.9} parent=11 // pred_fallthru
          _
        // Predicated region
        $region17: #{decoder_forward.9} parent=11 // pred_check
          %p222 = pneg %p136
        $region18: #{decoder_forward.9} parent=11 // pred_check_branch
          %224 = sbr.rel (%p222) target = $region20
        $region19: #{decoder_forward.9} parent=11 // pred_region
          _
        $region20: #{decoder_forward.9} parent=11 // pred_fallthru
          _
        // Predicated region
        $region21: #{decoder_forward.9} parent=11 // pred_check
          %p225 = pneg %p157
        $region22: #{decoder_forward.9} parent=11 // pred_check_branch
          %227 = sbr.rel (%p225) target = $region24
        $region23: #{decoder_forward.9} parent=11 // pred_region
          _
        $region24: #{decoder_forward.9} parent=11 // pred_fallthru
          _
        // Predicated region
        $region25: #{decoder_forward.9} parent=11 // pred_check
          %p228 = pneg %p178
        $region26: #{decoder_forward.9} parent=11 // pred_check_branch
          %230 = sbr.rel (%p228) target = $region28
        $region27: #{decoder_forward.9} parent=11 // pred_region
          _
        $region28: #{decoder_forward.9} parent=11 // pred_fallthru
          _
      $region12: #{decoder_forward.9} parent=5 // pred_fallthru
        _
      %p231 = scmp.lt.s32.totalorder %s16, 2
      // Predicated region
      $region29: #{decoder_forward.9} parent=5 // pred_check
        %p232 = pneg %p231
      $region30: #{decoder_forward.9} parent=5 // pred_check_branch
        %234 = sbr.rel (%p232) target = $region32
      $region31: #{decoder_forward.9} parent=5 // pred_region
        // Predicated region
        $region33: #{decoder_forward.9} parent=31 // pred_check
          %p235 = pneg %p36
        $region34: #{decoder_forward.9} parent=31 // pred_check_branch
          %237 = sbr.rel (%p235) target = $region36
        $region35: #{decoder_forward.9} parent=31 // pred_region
          %p238 = scmp.lt.s32.totalorder %s16, 1
          %s239 = scalar_select %p238, %s16, 1
          %s240 = smul.addr %s239, 8
          %s241 = scalar_lea.vmem %s0, %s240
        $region36: #{decoder_forward.9} parent=31 // pred_fallthru
          _
        // Predicated region
        $region37: #{decoder_forward.9} parent=31 // pred_check
          %p242 = pneg %p62
        $region38: #{decoder_forward.9} parent=31 // pred_check_branch
          %244 = sbr.rel (%p242) target = $region40
        $region39: #{decoder_forward.9} parent=31 // pred_region
          %p245 = scmp.lt.s32.totalorder %s16, 1
          %s246 = scalar_select %p245, %s16, 1
          %s247 = smul.addr %s246, 2
          %s248 = smul.addr %s247, 8
          %s249 = scalar_lea.vmem %s1, %s248
        $region40: #{decoder_forward.9} parent=31 // pred_fallthru
          _
        // Predicated region
        $region41: #{decoder_forward.9} parent=31 // pred_check
          %p250 = pneg %p88
        $region42: #{decoder_forward.9} parent=31 // pred_check_branch
          %252 = sbr.rel (%p250) target = $region44
        $region43: #{decoder_forward.9} parent=31 // pred_region
          %p253 = scmp.lt.s32.totalorder %s16, 1
          %s254 = scalar_select %p253, %s16, 1
          %s255 = smul.addr %s254, 3
          %s256 = smul.addr %s255, 8
          %s257 = scalar_lea.vmem %s2, %s256
        $region44: #{decoder_forward.9} parent=31 // pred_fallthru
          _
      $region32: #{decoder_forward.9} parent=5 // pred_fallthru
        _
      %p258 = scmp.le.s32.totalorder 1, %s16
      %p259 = scmp.lt.s32.totalorder %s16, 3
      %p260 = pnand %p258, %p259
      %p261 = pneg %p260
      // Predicated region
      $region45: #{decoder_forward.9} parent=5 // pred_check
        _
      $region46: #{decoder_forward.9} parent=5 // pred_check_branch
        %263 = sbr.rel (%p260) target = $region48
      $region47: #{decoder_forward.9} parent=5 // pred_region
        %s264 = ssub.s32 %s16, 1
        %p265 = scmp.lt.s32.totalorder %s21, 1
        %s266 = scalar_select %p265, %s21, 1
        %s267 = smul.addr %s266, 8
        %s268 = scalar_lea.vmem %s0, %s267
        %p269 = pneg %p42
        %p270 = pneg %p39
        %p271 = scmp.lt.s32.totalorder %s21, 1
        %s272 = scalar_select %p271, %s21, 1
        %s273 = smul.addr %s272, 2
        %s274 = smul.addr %s273, 8
        %s275 = scalar_lea.vmem %s1, %s274
        %p276 = pneg %p68
        %p277 = pneg %p65
        %p278 = scmp.lt.s32.totalorder %s21, 1
        %s279 = scalar_select %p278, %s21, 1
        %s280 = smul.addr %s279, 3
        %s281 = smul.addr %s280, 8
        %s282 = scalar_lea.vmem %s2, %s281
        %p283 = pneg %p94
        %p284 = pneg %p91
        %p285 = pneg %p115
        %p286 = pneg %p112
        %p287 = pneg %p136
        %p288 = pneg %p133
        %p289 = pneg %p157
        %p290 = pneg %p154
        %p291 = pneg %p178
        %p292 = pneg %p175
        %p293 = pneg %p204
        %p294 = pneg %p201
        %s295 = sand.u32 %s191, 1
        %s296 = scalar_lea.sflag [#allocation3], %s295
        %s297 = sand.u32 %s191, 1
        %s298 = smul.addr %s297, 16
        %s299 = scalar_lea.vmem [#allocation2], %s298
        %p300 = scmp.lt.s32.totalorder %s21, 1
        %s301 = scalar_select %p300, %s21, 1
        %s302 = smul.addr %s301, 8
        %s303 = scalar_lea.vmem %s0, %s302
        %p304 = scmp.lt.s32.totalorder %s21, 1
        %s305 = scalar_select %p304, %s21, 1
        %s306 = smul.addr %s305, 2
        %s307 = smul.addr %s306, 8
        %s308 = scalar_lea.vmem %s1, %s307
        %p309 = scmp.lt.s32.totalorder %s21, 1
        %s310 = scalar_select %p309, %s21, 1
        %s311 = smul.addr %s310, 3
        %s312 = smul.addr %s311, 8
        %s313 = scalar_lea.vmem %s2, %s312
        %v314 = vld [vmem:[%s303] sm:$0xff]
        %v315 = vld [vmem:[%s308] sm:$0xff]
        %v316 = vld [vmem:[%s308 + $0x8] sm:$0xff]
        %v317 = vld [vmem:[%s313] sm:$0xff]
        %v318 = vld [vmem:[%s313 + $0x8] sm:$0xff]
        %v319 = vld [vmem:[%s313 + $0x10] sm:$0xff]
        %320 = vmatpush.xpose.msra.mxu0 0.0
        %321 = vmatpush.xpose.msra.mxu0 0.0
        %322 = vmatpush.xpose.msra.mxu0 0.0
        %323 = vmatpush.xpose.msra.mxu0 0.0
        %324 = vmatpush.xpose.msra.mxu0 0.0
        %325 = vmatpush.xpose.msra.mxu0 0.0
        %326 = vmatpush.xpose.msra.mxu0 0.0
        %327 = vmatpush.xpose.msra.mxu0 0.0
        %328 = vmatpush.xpose.msra.mxu0 0.0
        %329 = vmatpush.xpose.msra.mxu0 0.0
        %330 = vmatpush.xpose.msra.mxu0 0.0
        %331 = vmatpush.xpose.msra.mxu0 0.0
        %332 = vmatpush.xpose.msra.mxu0 0.0
        %333 = vmatpush.xpose.msra.mxu0 0.0
        %334 = vmatpush.xpose.msra.mxu0 %v316
        %335 = vmatpush.xpose.msra.mxu0 %v315
        %336 = vmatmul.f32.gmra.mxu0 %v314
        %v337 = vpop.f32.mrf.mxu0
        %v338 = vadd.f32 0.0, %v337
        %339 = vdwg.mxu0
        %vm340 = vcmask 130048
        %v341 = vsel %vm340, %v338, -inf
        %342 = vmax.xlane.f32.xlu0 %v341
        %v343 = vpop.xlane.xlu0 %342
        %v344 = vsub.f32 %v338, %v343
        %v345 = vmul.f32 %v344, 1.442695
        %v346 = vpow.pop %v345
        %v347 = vsel %vm340, %v346, 0.0
        %348 = vadd.xlane.f32.xlu0 %v347
        %v349 = vpop.xlane.xlu0 %348
        %v350 = vrcp.pop %v349
        %v351 = vmul.f32 %v349, %v350
        %v352 = vsub.f32 1.0, %v351
        %v353 = vmul.f32 %v350, %v352
        %v354 = vadd.f32 %v350, %v353
        %vm355 = vweird.f32 %v349
        %vm356 = vweird.f32 %v350
        %vm357 = vmor %vm355, %vm356
        %v358 = vsel %vm357, %v350, %v354
        %v359 = vand.u32 2147483647, %v349
        %vm360 = vcmp.eq.f32.partialorder %v359, 8.507059e+37
        %v361 = vand.u32 %v349, 2147483648
        %v362 = vor.u32 1.1754944e-38, %v361
        %v363 = vsel %vm360, %v362, %v358
        %v364 = vmul.f32 %v346, %v363
        %v366 = vsel %vm340, %v364, 0
        %368 = vmatpush.msra.mxu0 0.0
        %369 = vmatpush.msra.mxu0 0.0
        %370 = vmatpush.msra.mxu0 0.0
        %371 = vmatpush.msra.mxu0 0.0
        %372 = vmatpush.msra.mxu0 0.0
        %373 = vmatpush.msra.mxu0 0.0
        %374 = vmatpush.msra.mxu0 0.0
        %375 = vmatpush.msra.mxu0 0.0
        %376 = vmatpush.msra.mxu0 0.0
        %377 = vmatpush.msra.mxu0 0.0
        %378 = vmatpush.msra.mxu0 0.0
        %379 = vmatpush.msra.mxu0 0.0
        %380 = vmatpush.msra.mxu0 0.0
        %381 = vmatpush.msra.mxu0 0.0
        %382 = vmatpush.msra.mxu0 %v316
        %383 = vmatpush.msra.mxu0 %v315
        %384 = vmatmul.f32.gmra.mxu0 %v366
        %v385 = vpop.f32.mrf.mxu0
        %v386 = vadd.f32 0.0, %v385
        %387 = vdwg.mxu0
        %388 = vmatpush.xpose.msra.mxu0 0.0
        %389 = vmatpush.xpose.msra.mxu0 0.0
        %390 = vmatpush.xpose.msra.mxu0 0.0
        %391 = vmatpush.xpose.msra.mxu0 0.0
        %392 = vmatpush.xpose.msra.mxu0 0.0
        %393 = vmatpush.xpose.msra.mxu0 0.0
        %394 = vmatpush.xpose.msra.mxu0 0.0
        %395 = vmatpush.xpose.msra.mxu0 0.0
        %396 = vmatpush.xpose.msra.mxu0 0.0
        %397 = vmatpush.xpose.msra.mxu0 0.0
        %398 = vmatpush.xpose.msra.mxu0 0.0
        %399 = vmatpush.xpose.msra.mxu0 0.0
        %400 = vmatpush.xpose.msra.mxu0 0.0
        %401 = vmatpush.xpose.msra.mxu0 %v319
        %402 = vmatpush.xpose.msra.mxu0 %v318
        %403 = vmatpush.xpose.msra.mxu0 %v317
        %404 = vmatmul.f32.gmra.mxu0 %v314
        %v405 = vpop.f32.mrf.mxu0
        %v406 = vadd.f32 0.0, %v405
        %407 = vdwg.mxu0
        %vm408 = vcmask 195584
        %v409 = vsel %vm408, %v406, -inf
        %410 = vmax.xlane.f32.xlu0 %v409
        %v411 = vpop.xlane.xlu0 %410
        %v412 = vsub.f32 %v406, %v411
        %v413 = vmul.f32 %v412, 1.442695
        %v414 = vpow.pop %v413
        %v415 = vsel %vm408, %v414, 0.0
        %416 = vadd.xlane.f32.xlu0 %v415
        %v417 = vpop.xlane.xlu0 %416
        %v418 = vrcp.pop %v417
        %v419 = vmul.f32 %v417, %v418
        %v420 = vsub.f32 1.0, %v419
        %v421 = vmul.f32 %v418, %v420
        %v422 = vadd.f32 %v418, %v421
        %vm423 = vweird.f32 %v417
        %vm424 = vweird.f32 %v418
        %vm425 = vmor %vm423, %vm424
        %v426 = vsel %vm425, %v418, %v422
        %v427 = vand.u32 2147483647, %v417
        %vm428 = vcmp.eq.f32.partialorder %v427, 8.507059e+37
        %v429 = vand.u32 %v417, 2147483648
        %v430 = vor.u32 1.1754944e-38, %v429
        %v431 = vsel %vm428, %v430, %v426
        %v432 = vmul.f32 %v414, %v431
        %v434 = vsel %vm408, %v432, 0
        %436 = vmatpush.msra.mxu0 0.0
        %437 = vmatpush.msra.mxu0 0.0
        %438 = vmatpush.msra.mxu0 0.0
        %439 = vmatpush.msra.mxu0 0.0
        %440 = vmatpush.msra.mxu0 0.0
        %441 = vmatpush.msra.mxu0 0.0
        %442 = vmatpush.msra.mxu0 0.0
        %443 = vmatpush.msra.mxu0 0.0
        %444 = vmatpush.msra.mxu0 0.0
        %445 = vmatpush.msra.mxu0 0.0
        %446 = vmatpush.msra.mxu0 0.0
        %447 = vmatpush.msra.mxu0 0.0
        %448 = vmatpush.msra.mxu0 0.0
        %449 = vmatpush.msra.mxu0 %v319
        %450 = vmatpush.msra.mxu0 %v318
        %451 = vmatpush.msra.mxu0 %v317
        %452 = vmatmul.f32.gmra.mxu0 %v434
        %v453 = vpop.f32.mrf.mxu0
        %v454 = vadd.f32 0.0, %v453
        %455 = vdwg.mxu0
        %v456 = vmul.f32 %v314, %v386
        %v457 = vmul.f32 %v314, %v454
        %v458 = vld [vmem:[%s3] sm:$0xff]
        %v459 = vld [vmem:[%s3 + $0x8] sm:$0xff]
        %v460 = vld [vmem:[%s3 + $0x10] sm:$0xff]
        %v461 = vld [vmem:[%s3 + $0x18] sm:$0xff]
        %v462 = vld [vmem:[%s3 + $0x20] sm:$0xff]
        %v463 = vld [vmem:[%s3 + $0x28] sm:$0xff]
        %v464 = vld [vmem:[%s3 + $0x30] sm:$0xff]
        %v465 = vld [vmem:[%s3 + $0x38] sm:$0xff]
        %v466 = vld [vmem:[%s3 + $0x40] sm:$0xff]
        %v467 = vld [vmem:[%s3 + $0x48] sm:$0xff]
        %v468 = vld [vmem:[%s3 + $0x50] sm:$0xff]
        %v469 = vld [vmem:[%s3 + $0x58] sm:$0xff]
        %v470 = vld [vmem:[%s3 + $0x60] sm:$0xff]
        %v471 = vld [vmem:[%s3 + $0x68] sm:$0xff]
        %v472 = vld [vmem:[%s3 + $0x70] sm:$0xff]
        %v473 = vld [vmem:[%s3 + $0x78] sm:$0xff]
        %v474 = vld [vmem:[%s3 + $0x80] sm:$0xff]
        %v475 = vld [vmem:[%s3 + $0x88] sm:$0xff]
        %v476 = vld [vmem:[%s3 + $0x90] sm:$0xff]
        %v477 = vld [vmem:[%s3 + $0x98] sm:$0xff]
        %v478 = vld [vmem:[%s3 + $0xa0] sm:$0xff]
        %v479 = vld [vmem:[%s3 + $0xa8] sm:$0xff]
        %v480 = vld [vmem:[%s3 + $0xb0] sm:$0xff]
        %v481 = vld [vmem:[%s3 + $0xb8] sm:$0xff]
        %v482 = vld [vmem:[%s3 + $0xc0] sm:$0xff]
        %v483 = vld [vmem:[%s3 + $0xc8] sm:$0xff]
        %v484 = vld [vmem:[%s3 + $0xd0] sm:$0xff]
        %v485 = vld [vmem:[%s3 + $0xd8] sm:$0xff]
        %v486 = vld [vmem:[%s3 + $0xe0] sm:$0xff]
        %v487 = vld [vmem:[%s3 + $0xe8] sm:$0xff]
        %v488 = vld [vmem:[%s3 + $0xf0] sm:$0xff]
        %v489 = vld [vmem:[%s3 + $0xf8] sm:$0xff]
        %v490 = vld [vmem:[%s3 + $0x100] sm:$0xff]
        %v491 = vld [vmem:[%s3 + $0x108] sm:$0xff]
        %v492 = vld [vmem:[%s3 + $0x110] sm:$0xff]
        %v493 = vld [vmem:[%s3 + $0x118] sm:$0xff]
        %v494 = vld [vmem:[%s3 + $0x120] sm:$0xff]
        %v495 = vld [vmem:[%s3 + $0x128] sm:$0xff]
        %v496 = vld [vmem:[%s3 + $0x130] sm:$0xff]
        %v497 = vld [vmem:[%s3 + $0x138] sm:$0xff]
        %v498 = vld [vmem:[%s3 + $0x140] sm:$0xff]
        %v499 = vld [vmem:[%s3 + $0x148] sm:$0xff]
        %v500 = vld [vmem:[%s3 + $0x150] sm:$0xff]
        %v501 = vld [vmem:[%s3 + $0x158] sm:$0xff]
        %v502 = vld [vmem:[%s3 + $0x160] sm:$0xff]
        %v503 = vld [vmem:[%s3 + $0x168] sm:$0xff]
        %v504 = vld [vmem:[%s3 + $0x170] sm:$0xff]
        %v505 = vld [vmem:[%s3 + $0x178] sm:$0xff]
        %v506 = vld [vmem:[%s3 + $0x180] sm:$0xff]
        %v507 = vld [vmem:[%s3 + $0x188] sm:$0xff]
        %v508 = vld [vmem:[%s3 + $0x190] sm:$0xff]
        %v509 = vld [vmem:[%s3 + $0x198] sm:$0xff]
        %v510 = vld [vmem:[%s3 + $0x1a0] sm:$0xff]
        %v511 = vld [vmem:[%s3 + $0x1a8] sm:$0xff]
        %v512 = vld [vmem:[%s3 + $0x1b0] sm:$0xff]
        %v513 = vld [vmem:[%s3 + $0x1b8] sm:$0xff]
        %v514 = vld [vmem:[%s3 + $0x1c0] sm:$0xff]
        %v515 = vld [vmem:[%s3 + $0x1c8] sm:$0xff]
        %v516 = vld [vmem:[%s3 + $0x1d0] sm:$0xff]
        %v517 = vld [vmem:[%s3 + $0x1d8] sm:$0xff]
        %v518 = vld [vmem:[%s3 + $0x1e0] sm:$0xff]
        %v519 = vld [vmem:[%s3 + $0x1e8] sm:$0xff]
        %v520 = vld [vmem:[%s3 + $0x1f0] sm:$0xff]
        %v521 = vld [vmem:[%s3 + $0x1f8] sm:$0xff]
        %v522 = vld [vmem:[%s3 + $0x200] sm:$0xff]
        %v523 = vld [vmem:[%s3 + $0x208] sm:$0xff]
        %v524 = vld [vmem:[%s3 + $0x210] sm:$0xff]
        %v525 = vld [vmem:[%s3 + $0x218] sm:$0xff]
        %v526 = vld [vmem:[%s3 + $0x220] sm:$0xff]
        %v527 = vld [vmem:[%s3 + $0x228] sm:$0xff]
        %v528 = vld [vmem:[%s3 + $0x230] sm:$0xff]
        %v529 = vld [vmem:[%s3 + $0x238] sm:$0xff]
        %v530 = vld [vmem:[%s3 + $0x240] sm:$0xff]
        %v531 = vld [vmem:[%s3 + $0x248] sm:$0xff]
        %v532 = vld [vmem:[%s3 + $0x250] sm:$0xff]
        %v533 = vld [vmem:[%s3 + $0x258] sm:$0xff]
        %v534 = vld [vmem:[%s3 + $0x260] sm:$0xff]
        %v535 = vld [vmem:[%s3 + $0x268] sm:$0xff]
        %v536 = vld [vmem:[%s3 + $0x270] sm:$0xff]
        %v537 = vld [vmem:[%s3 + $0x278] sm:$0xff]
        %v538 = vld [vmem:[%s4] sm:$0x1]
        %v540 = vperm.slane %v538, 0
        %542 = vmatpush.msra.mxu0 %v473
        %543 = vmatpush.msra.mxu0 %v472
        %544 = vmatpush.msra.mxu0 %v471
        %545 = vmatpush.msra.mxu0 %v470
        %546 = vmatpush.msra.mxu0 %v469
        %547 = vmatpush.msra.mxu0 %v468
        %548 = vmatpush.msra.mxu0 %v467
        %549 = vmatpush.msra.mxu0 %v466
        %550 = vmatpush.msra.mxu0 %v465
        %551 = vmatpush.msra.mxu0 %v464
        %552 = vmatpush.msra.mxu0 %v463
        %553 = vmatpush.msra.mxu0 %v462
        %554 = vmatpush.msra.mxu0 %v461
        %555 = vmatpush.msra.mxu0 %v460
        %556 = vmatpush.msra.mxu0 %v459
        %557 = vmatpush.msra.mxu0 %v458
        %558 = vmatmul.f32.gmra.mxu0 %v386
        %v559 = vpop.f32.mrf.mxu0
        %v560 = vadd.f32 %v540, %v559
        %561 = vdwg.mxu0
        %562 = vmatpush.msra.mxu0 %v489
        %563 = vmatpush.msra.mxu0 %v488
        %564 = vmatpush.msra.mxu0 %v487
        %565 = vmatpush.msra.mxu0 %v486
        %566 = vmatpush.msra.mxu0 %v485
        %567 = vmatpush.msra.mxu0 %v484
        %568 = vmatpush.msra.mxu0 %v483
        %569 = vmatpush.msra.mxu0 %v482
        %570 = vmatpush.msra.mxu0 %v481
        %571 = vmatpush.msra.mxu0 %v480
        %572 = vmatpush.msra.mxu0 %v479
        %573 = vmatpush.msra.mxu0 %v478
        %574 = vmatpush.msra.mxu0 %v477
        %575 = vmatpush.msra.mxu0 %v476
        %576 = vmatpush.msra.mxu0 %v475
        %577 = vmatpush.msra.mxu0 %v474
        %578 = vmatmul.f32.gmra.mxu0 %v454
        %v579 = vpop.f32.mrf.mxu0
        %v580 = vadd.f32 %v560, %v579
        %581 = vdwg.mxu0
        %582 = vmatpush.msra.mxu0 %v505
        %583 = vmatpush.msra.mxu0 %v504
        %584 = vmatpush.msra.mxu0 %v503
        %585 = vmatpush.msra.mxu0 %v502
        %586 = vmatpush.msra.mxu0 %v501
        %587 = vmatpush.msra.mxu0 %v500
        %588 = vmatpush.msra.mxu0 %v499
        %589 = vmatpush.msra.mxu0 %v498
        %590 = vmatpush.msra.mxu0 %v497
        %591 = vmatpush.msra.mxu0 %v496
        %592 = vmatpush.msra.mxu0 %v495
        %593 = vmatpush.msra.mxu0 %v494
        %594 = vmatpush.msra.mxu0 %v493
        %595 = vmatpush.msra.mxu0 %v492
        %596 = vmatpush.msra.mxu0 %v491
        %597 = vmatpush.msra.mxu0 %v490
        %598 = vmatmul.f32.gmra.mxu0 %v314
        %v599 = vpop.f32.mrf.mxu0
        %v600 = vadd.f32 %v580, %v599
        %601 = vdwg.mxu0
        %602 = vmatpush.msra.mxu0 %v521
        %603 = vmatpush.msra.mxu0 %v520
        %604 = vmatpush.msra.mxu0 %v519
        %605 = vmatpush.msra.mxu0 %v518
        %606 = vmatpush.msra.mxu0 %v517
        %607 = vmatpush.msra.mxu0 %v516
        %608 = vmatpush.msra.mxu0 %v515
        %609 = vmatpush.msra.mxu0 %v514
        %610 = vmatpush.msra.mxu0 %v513
        %611 = vmatpush.msra.mxu0 %v512
        %612 = vmatpush.msra.mxu0 %v511
        %613 = vmatpush.msra.mxu0 %v510
        %614 = vmatpush.msra.mxu0 %v509
        %615 = vmatpush.msra.mxu0 %v508
        %616 = vmatpush.msra.mxu0 %v507
        %617 = vmatpush.msra.mxu0 %v506
        %618 = vmatmul.f32.gmra.mxu0 %v456
        %v619 = vpop.f32.mrf.mxu0
        %v620 = vadd.f32 %v600, %v619
        %621 = vdwg.mxu0
        %622 = vmatpush.msra.mxu0 %v537
        %623 = vmatpush.msra.mxu0 %v536
        %624 = vmatpush.msra.mxu0 %v535
        %625 = vmatpush.msra.mxu0 %v534
        %626 = vmatpush.msra.mxu0 %v533
        %627 = vmatpush.msra.mxu0 %v532
        %628 = vmatpush.msra.mxu0 %v531
        %629 = vmatpush.msra.mxu0 %v530
        %630 = vmatpush.msra.mxu0 %v529
        %631 = vmatpush.msra.mxu0 %v528
        %632 = vmatpush.msra.mxu0 %v527
        %633 = vmatpush.msra.mxu0 %v526
        %634 = vmatpush.msra.mxu0 %v525
        %635 = vmatpush.msra.mxu0 %v524
        %636 = vmatpush.msra.mxu0 %v523
        %637 = vmatpush.msra.mxu0 %v522
        %638 = vmatmul.f32.gmra.mxu0 %v457
        %v639 = vpop.f32.mrf.mxu0
        %v640 = vadd.f32 %v620, %v639
        %641 = vdwg.mxu0
        %v642 = vld [vmem:[%s5] sm:$0xff]
        %v643 = vld [vmem:[%s5 + $0x8] sm:$0xff]
        %v644 = vld [vmem:[%s5 + $0x10] sm:$0xff]
        %v645 = vld [vmem:[%s5 + $0x18] sm:$0xff]
        %v646 = vld [vmem:[%s5 + $0x20] sm:$0xff]
        %v647 = vld [vmem:[%s5 + $0x28] sm:$0xff]
        %v648 = vld [vmem:[%s5 + $0x30] sm:$0xff]
        %v649 = vld [vmem:[%s5 + $0x38] sm:$0xff]
        %v650 = vld [vmem:[%s5 + $0x40] sm:$0xff]
        %v651 = vld [vmem:[%s5 + $0x48] sm:$0xff]
        %v652 = vld [vmem:[%s5 + $0x50] sm:$0xff]
        %v653 = vld [vmem:[%s5 + $0x58] sm:$0xff]
        %v654 = vld [vmem:[%s5 + $0x60] sm:$0xff]
        %v655 = vld [vmem:[%s5 + $0x68] sm:$0xff]
        %v656 = vld [vmem:[%s5 + $0x70] sm:$0xff]
        %v657 = vld [vmem:[%s5 + $0x78] sm:$0xff]
        %v658 = vld [vmem:[%s5 + $0x80] sm:$0xff]
        %v659 = vld [vmem:[%s5 + $0x88] sm:$0xff]
        %v660 = vld [vmem:[%s5 + $0x90] sm:$0xff]
        %v661 = vld [vmem:[%s5 + $0x98] sm:$0xff]
        %v662 = vld [vmem:[%s5 + $0xa0] sm:$0xff]
        %v663 = vld [vmem:[%s5 + $0xa8] sm:$0xff]
        %v664 = vld [vmem:[%s5 + $0xb0] sm:$0xff]
        %v665 = vld [vmem:[%s5 + $0xb8] sm:$0xff]
        %v666 = vld [vmem:[%s5 + $0xc0] sm:$0xff]
        %v667 = vld [vmem:[%s5 + $0xc8] sm:$0xff]
        %v668 = vld [vmem:[%s5 + $0xd0] sm:$0xff]
        %v669 = vld [vmem:[%s5 + $0xd8] sm:$0xff]
        %v670 = vld [vmem:[%s5 + $0xe0] sm:$0xff]
        %v671 = vld [vmem:[%s5 + $0xe8] sm:$0xff]
        %v672 = vld [vmem:[%s5 + $0xf0] sm:$0xff]
        %v673 = vld [vmem:[%s5 + $0xf8] sm:$0xff]
        %v674 = vld [vmem:[%s6] sm:$0x3]
        %v676 = vperm.slane %v674, 0
        %v677 = vperm.slane %v674, 1
        %680 = vmatpush.msra.mxu0 %v672
        %681 = vmatpush.msra.mxu0 %v670
        %682 = vmatpush.msra.mxu0 %v668
        %683 = vmatpush.msra.mxu0 %v666
        %684 = vmatpush.msra.mxu0 %v664
        %685 = vmatpush.msra.mxu0 %v662
        %686 = vmatpush.msra.mxu0 %v660
        %687 = vmatpush.msra.mxu0 %v658
        %688 = vmatpush.msra.mxu0 %v656
        %689 = vmatpush.msra.mxu0 %v654
        %690 = vmatpush.msra.mxu0 %v652
        %691 = vmatpush.msra.mxu0 %v650
        %692 = vmatpush.msra.mxu0 %v648
        %693 = vmatpush.msra.mxu0 %v646
        %694 = vmatpush.msra.mxu0 %v644
        %695 = vmatpush.msra.mxu0 %v642
        %696 = vmatmul.f32.gmra.mxu0 %v640
        %v697 = vpop.f32.mrf.mxu0
        %v698 = vadd.f32 %v676, %v697
        %699 = vdwg.mxu0
        %700 = vmatpush.msra.mxu0 %v673
        %701 = vmatpush.msra.mxu0 %v671
        %702 = vmatpush.msra.mxu0 %v669
        %703 = vmatpush.msra.mxu0 %v667
        %704 = vmatpush.msra.mxu0 %v665
        %705 = vmatpush.msra.mxu0 %v663
        %706 = vmatpush.msra.mxu0 %v661
        %707 = vmatpush.msra.mxu0 %v659
        %708 = vmatpush.msra.mxu0 %v657
        %709 = vmatpush.msra.mxu0 %v655
        %710 = vmatpush.msra.mxu0 %v653
        %711 = vmatpush.msra.mxu0 %v651
        %712 = vmatpush.msra.mxu0 %v649
        %713 = vmatpush.msra.mxu0 %v647
        %714 = vmatpush.msra.mxu0 %v645
        %715 = vmatpush.msra.mxu0 %v643
        %716 = vmatmul.f32.gmra.mxu0 %v640
        %v717 = vpop.f32.mrf.mxu0
        %v718 = vadd.f32 %v677, %v717
        %719 = vdwg.mxu0
        %720 = vst [vmem:[%s299] sm:$0xff] %v698
        %721 = vst [vmem:[%s299 + $0x8] sm:$0xff] %v718
        %s722 = sand.u32 %s191, 1
        %s723 = scalar_lea.sflag [#allocation3], %s722
        %s724 = sand.u32 %s191, 1
        %s725 = smul.addr %s724, 16
        %s726 = scalar_lea.vmem [#allocation2], %s725
        // Predicated region
        $region49: #{decoder_forward.9} parent=47 // pred_check
          %p727 = pneg %p201
        $region50: #{decoder_forward.9} parent=47 // pred_check_branch
          %729 = sbr.rel (%p727) target = $region52
        $region51: #{decoder_forward.9} parent=47 // pred_region
          %731 = vsyncadd %s723, 0
          %s732 = smul.addr %s21, 2
          %s733 = smul.addr %s732, 8
          %s734 = scalar_lea.hbm %s7, %s733
          %s736 = sshll.u32 %s726, 4
          %s737 = int_to_ptr.vmem [resolvable:$true] %s736
          %s738 = sshll.u32 %s734, 4
          %s739 = int_to_ptr.hbm [resolvable:$true] %s738
          %741 = dma.vmem_to_hbm [thread:$0]  %s737, 256, %s739, %s723
        $region52: #{decoder_forward.9} parent=47 // pred_fallthru
          _
      $region48: #{decoder_forward.9} parent=5 // pred_fallthru
        _
      %p742 = scmp.le.s32.totalorder 2, %s16
      // Predicated region
      $region53: #{decoder_forward.9} parent=5 // pred_check
        %p743 = pneg %p742
      $region54: #{decoder_forward.9} parent=5 // pred_check_branch
        %745 = sbr.rel (%p743) target = $region56
      $region55: #{decoder_forward.9} parent=5 // pred_region
        %s746 = ssub.s32 %s16, 2
        // Predicated region
        $region57: #{decoder_forward.9} parent=55 // pred_check
          %p747 = pneg %p207
        $region58: #{decoder_forward.9} parent=55 // pred_check_branch
          %749 = sbr.rel (%p747) target = $region60
        $region59: #{decoder_forward.9} parent=55 // pred_region
          %s750 = sand.u32 %s192, 1
          %s751 = scalar_lea.sflag [#allocation3], %s750
          %s752 = sand.u32 %s192, 1
          %s753 = smul.addr %s752, 16
          %s754 = scalar_lea.vmem [#allocation2], %s753
          %756 = dma.done %s751, 256
        $region60: #{decoder_forward.9} parent=55 // pred_fallthru
          _
      $region56: #{decoder_forward.9} parent=5 // pred_fallthru
        _
    $region6: #{decoder_forward.9} parent=1 // loop_footer
      %s20 = sadd.s32 1, %s16
    $region7: #{decoder_forward.9} parent=1 // loop_footer_branch
      %15 = sbr.rel target = $region3
    $region8: #{decoder_forward.9} parent=1 // loop_exit
      _
    %757 = vsyncpa [#allocation3], 1
    %s758 = scalar_lea.sflag [#allocation3], 1
    %759 = vsyncpa %s758, 1

</llo_original>
